<compile_context>
chip_gen: v7x
topology: tpu7x:2x2x1
jax: 0.10.0
libtpu: 0.0.40
codegen_flags: <defaults>
</compile_context>

<pallas_src>
import jax
import jax.numpy as jnp
from jax.experimental import pallas as pl
from jax.experimental.pallas import tpu as pltpu

# ---------------- deterministic config ----------------
B = 2
H = W = 16
HW = H * W                       # 256 -> lane-dense
FEATURE_NUM = 4                  # texture feature channels
TEX_SIZE = 32                    # configs.NEURAL_TEXTURE.SIZE
LP_DIM = 384
LP_OUT = 6                       # LinearNet(384, 6).out_dim
GEN_IN = FEATURE_NUM + LP_OUT + 6  # tex(4) + normal(3) + view(3) + lp(6) = 16
NGF = 64

_TAPS = [(dy, dx) for dy in (-1, 0, 1) for dx in (-1, 0, 1)]


# -------------- fused kernel (one grid step = one batch item) --------------
def _fused_kernel(uv_ref, nrm_ref, view_ref, lp_ref, tex_ref,
                  lw_ref, lb_ref,
                  w1_ref, b1_ref, w2_ref, b2_ref, w3_ref, b3_ref,
                  x_out_ref, y_out_ref,
                  x_scr, patch_scr):
    f32 = jnp.float32
    bf16 = jnp.bfloat16
    T = TEX_SIZE

    # ---- neural texture: separable bilinear sample (two-stage contraction) ----
    u = uv_ref[0, 0:1, :]                              # (1, HW)
    v = uv_ref[0, 1:2, :]                              # (1, HW)
    gx = (u + 1.0) * (0.5 * (T - 1))
    gy = (v + 1.0) * (0.5 * (T - 1))
    x0f = jnp.floor(gx)
    y0f = jnp.floor(gy)
    wx = gx - x0f
    wy = gy - y0f
    x0 = jnp.clip(x0f, 0, T - 1).astype(jnp.int32)
    x1 = jnp.clip(x0f + 1.0, 0, T - 1).astype(jnp.int32)
    y0 = jnp.clip(y0f, 0, T - 1).astype(jnp.int32)
    y1 = jnp.clip(y0f + 1.0, 0, T - 1).astype(jnp.int32)

    t_iota = jax.lax.broadcasted_iota(jnp.int32, (T, HW), 0)      # (32, 256)
    wy_mat = (jnp.where(t_iota == y0, 1.0 - wy, 0.0)
              + jnp.where(t_iota == y1, wy, 0.0))                 # (Ty, HW)
    wx_mat = (jnp.where(t_iota == x0, 1.0 - wx, 0.0)
              + jnp.where(t_iota == x1, wx, 0.0))                 # (Tx, HW)

    # stage 1: (F*Tx, Ty) x (Ty, HW) -> (F*Tx, HW)  on the MXU (M=128)
    s1 = jnp.dot(tex_ref[...], wy_mat.astype(bf16),
                 preferred_element_type=f32)                      # (128, HW)
    # stage 2: multiply by Wx (broadcast over F), reduce over Tx
    tex_feat = jnp.sum(s1.reshape(FEATURE_NUM, T, HW) * wx_mat[None, :, :],
                       axis=1)                                    # (F, HW)

    # ---- LinearNet lp reduce: (6,384)*(1,384) lane-reduce -> (6,1) ----
    lp_row = lp_ref[0]                                            # (1, 384)
    lp_red = jnp.sum(lw_ref[...] * lp_row, axis=1, keepdims=True) + lb_ref[...]

    # ---- assemble x = cat([tex, normal, view, lp], channel axis) ----
    view_map = jnp.broadcast_to(view_ref[0], (3, HW))             # (3, HW)
    lp_map = jnp.broadcast_to(lp_red, (LP_OUT, HW))               # (6, HW)
    # Stage through a small f32 VMEM scratch (unaligned channel offsets), then
    # ONE full-tile store to the output DMA buffer.
    x_scr[0:FEATURE_NUM, :] = tex_feat
    x_scr[FEATURE_NUM:FEATURE_NUM + 3, :] = nrm_ref[0]
    x_scr[FEATURE_NUM + 3:FEATURE_NUM + 6, :] = view_map
    x_scr[FEATURE_NUM + 6:GEN_IN, :] = lp_map
    x_cm = x_scr[...]                                             # (GEN_IN, HW)
    x_out_ref[0] = x_cm

    # ---- hoisted per-pixel boundary masks (shared by all three convs) ----
    pix = jax.lax.broadcasted_iota(jnp.int32, (1, HW), 1)
    py = pix >> 4            # W == 16 (power of two)
    px = pix & (W - 1)
    masks = {}
    for dy, dx in _TAPS:
        if (dy, dx) == (0, 0):
            continue
        valid = ((py + dy >= 0) & (py + dy < H)
                 & (px + dx >= 0) & (px + dx < W))
        masks[(dy, dx)] = valid.astype(f32)                       # (1, HW)

    # ---- Generator: 3x conv3x3, each one im2col matmul from a shared scratch ----
    def conv3x3(x, w_ref_, b_ref_, cin, act):
        for t, (dy, dx) in enumerate(_TAPS):
            s = dy * W + dx
            sh = x if s == 0 else pltpu.roll(x, shift=(-s) % HW, axis=1)
            if (dy, dx) != (0, 0):
                sh = sh * masks[(dy, dx)]
            patch_scr[t * cin:(t + 1) * cin, :] = sh.astype(bf16)
        out = jnp.dot(w_ref_[...], patch_scr[0:9 * cin, :],
                      preferred_element_type=f32) + b_ref_[...]   # (Cout, HW)
        if act == "relu":
            return jnp.maximum(out, 0.0)
        return jnp.tanh(out)

    h1 = conv3x3(x_cm, w1_ref, b1_ref, GEN_IN, "relu")            # (64, HW)
    h2 = conv3x3(h1, w2_ref, b2_ref, NGF, "relu")                 # (64, HW)
    y = conv3x3(h2, w3_ref, b3_ref, NGF, "tanh")                  # (3, HW)
    y_out_ref[0] = y


# ---------------- wrapper ----------------
def _prep_conv_w(w_hwio):
    kh, kw, cin, cout = w_hwio.shape
    # column order = (ky*3+kx)*Cin + ci, matching the patch row order above
    return w_hwio.reshape(kh * kw * cin, cout).T.astype(jnp.bfloat16)


def lp_generator_forward(params, uv_map, normal, view_dir, lp):
    """uv_map, normal: (B,3,H,W) NCHW; view_dir: (B,3); lp: (B,384)."""
    Bn = uv_map.shape[0]
    uv_cm = uv_map[:, :2, :, :].reshape(Bn, 2, HW)      # == permute(0,2,3,1)[...,:2]
    nrm_cm = normal.reshape(Bn, 3, HW)
    view_c = view_dir[:, :, None]                       # (B, 3, 1)
    lp_c = lp[:, None, :]                               # (B, 1, 384)

    # texture (F, Ty, Tx) -> (F*Tx, Ty) for the separable bilinear contraction
    tex_t = jnp.transpose(params["texture"], (0, 2, 1)).reshape(
        FEATURE_NUM * TEX_SIZE, TEX_SIZE).astype(jnp.bfloat16)
    lw_t = params["lin_w"].T                            # (6, 384)
    lb_c = params["lin_b"][:, None]                     # (6, 1)
    w1 = _prep_conv_w(params["g_w1"]); b1 = params["g_b1"][:, None]
    w2 = _prep_conv_w(params["g_w2"]); b2 = params["g_b2"][:, None]
    w3 = _prep_conv_w(params["g_w3"]); b3 = params["g_b3"][:, None]

    x_cm, y_cm = pl.pallas_call(
        _fused_kernel,
        out_shape=(jax.ShapeDtypeStruct((Bn, GEN_IN, HW), jnp.float32),
                   jax.ShapeDtypeStruct((Bn, 3, HW), jnp.float32)),
        grid=(Bn,),
        in_specs=[
            pl.BlockSpec((1, 2, HW), lambda b: (b, 0, 0)),          # uv
            pl.BlockSpec((1, 3, HW), lambda b: (b, 0, 0)),          # normal
            pl.BlockSpec((1, 3, 1), lambda b: (b, 0, 0)),           # view_dir
            pl.BlockSpec((1, 1, LP_DIM), lambda b: (b, 0, 0)),      # lp
            pl.BlockSpec((FEATURE_NUM * TEX_SIZE, TEX_SIZE), lambda b: (0, 0)),
            pl.BlockSpec((LP_OUT, LP_DIM), lambda b: (0, 0)),       # lin W^T
            pl.BlockSpec((LP_OUT, 1), lambda b: (0, 0)),            # lin b
            pl.BlockSpec((NGF, 9 * GEN_IN), lambda b: (0, 0)),      # conv1 W
            pl.BlockSpec((NGF, 1), lambda b: (0, 0)),
            pl.BlockSpec((NGF, 9 * NGF), lambda b: (0, 0)),         # conv2 W
            pl.BlockSpec((NGF, 1), lambda b: (0, 0)),
            pl.BlockSpec((3, 9 * NGF), lambda b: (0, 0)),           # conv3 W
            pl.BlockSpec((3, 1), lambda b: (0, 0)),
        ],
        out_specs=(
            pl.BlockSpec((1, GEN_IN, HW), lambda b: (b, 0, 0)),
            pl.BlockSpec((1, 3, HW), lambda b: (b, 0, 0)),
        ),
        scratch_shapes=[
            pltpu.VMEM((GEN_IN, HW), jnp.float32),       # x assembly buffer
            pltpu.VMEM((9 * NGF, HW), jnp.bfloat16),     # shared im2col patches
        ],
        compiler_params=pltpu.CompilerParams(dimension_semantics=("parallel",)),
    )(uv_cm, nrm_cm, view_c, lp_c, tex_t, lw_t, lb_c, w1, b1, w2, b2, w3, b3)

    # channel-major (B, C, H*W) -> NCHW, a free reshape (matches torch.cat dim=1)
    x = x_cm.reshape(Bn, GEN_IN, H, W)
    y = y_cm.reshape(Bn, 3, H, W)
    return x, y


def init_params(key):
    ks = jax.random.split(key, 8)

    def he(k, shape, fan_in):
        return jax.random.normal(k, shape, jnp.float32) / jnp.sqrt(fan_in)

    return {
        "texture": 0.1 * jax.random.normal(ks[0], (FEATURE_NUM, TEX_SIZE, TEX_SIZE),
                                           jnp.float32),
        "lin_w": he(ks[1], (LP_DIM, LP_OUT), LP_DIM),
        "lin_b": jnp.zeros((LP_OUT,), jnp.float32),
        "g_w1": he(ks[2], (3, 3, GEN_IN, NGF), 9 * GEN_IN),
        "g_b1": jnp.zeros((NGF,), jnp.float32),
        "g_w2": he(ks[3], (3, 3, NGF, NGF), 9 * NGF),
        "g_b2": jnp.zeros((NGF,), jnp.float32),
        "g_w3": he(ks[4], (3, 3, NGF, 3), 9 * NGF),
        "g_b3": jnp.zeros((3,), jnp.float32),
    }


if __name__ == "__main__":
    key = jax.random.PRNGKey(0)
    pkey, k1, k2, k3, k4 = jax.random.split(key, 5)
    params = init_params(pkey)

    uv_map = jax.random.uniform(k1, (B, 3, H, W), jnp.float32, -1.0, 1.0)
    normal = jax.random.normal(k2, (B, 3, H, W), jnp.float32)
    view_dir = jax.random.normal(k3, (B, 3), jnp.float32)
    lp = jax.random.normal(k4, (B, LP_DIM), jnp.float32)

    x, y = jax.jit(lp_generator_forward)(params, uv_map, normal, view_dir, lp)
    jax.block_until_ready((x, y))

    assert x.shape == (B, GEN_IN, H, W) and x.dtype == jnp.float32
    assert y.shape == (B, 3, H, W) and y.dtype == jnp.float32
    assert bool(jnp.all(jnp.isfinite(x))) and bool(jnp.all(jnp.isfinite(y)))
    print("KERNEL_OK")
</pallas_src>

<mosaic_0001>
module attributes {stable_mosaic.version = 11 : i64} {
  func.func @_fused_kernel(%arg0: i32, %arg1: memref<1x2x256xf32, #tpu.memory_space<vmem>>, %arg2: memref<1x3x256xf32, #tpu.memory_space<vmem>>, %arg3: memref<1x3x1xf32, #tpu.memory_space<vmem>>, %arg4: memref<1x1x384xf32, #tpu.memory_space<vmem>>, %arg5: memref<128x32xbf16, #tpu.memory_space<vmem>>, %arg6: memref<6x384xf32, #tpu.memory_space<vmem>>, %arg7: memref<6x1xf32, #tpu.memory_space<vmem>>, %arg8: memref<64x144xbf16, #tpu.memory_space<vmem>>, %arg9: memref<64x1xf32, #tpu.memory_space<vmem>>, %arg10: memref<64x576xbf16, #tpu.memory_space<vmem>>, %arg11: memref<64x1xf32, #tpu.memory_space<vmem>>, %arg12: memref<3x576xbf16, #tpu.memory_space<vmem>>, %arg13: memref<3x1xf32, #tpu.memory_space<vmem>>, %arg14: memref<1x16x256xf32, #tpu.memory_space<vmem>>, %arg15: memref<1x3x256xf32, #tpu.memory_space<vmem>>, %arg16: memref<16x256xf32, #tpu.memory_space<vmem>>, %arg17: memref<576x256xbf16, #tpu.memory_space<vmem>>) attributes {dimension_semantics = [#tpu.dimension_semantics<parallel>], iteration_bounds = array<i64: 2>, scalar_prefetch = 0 : i64, scratch_operands = 2 : i64, tpu.core_type = #tpu.core_type<tc>, window_params = [{transform_indices = @transform_0, window_bounds = array<i64: 1, 2, 256>}, {transform_indices = @transform_1, window_bounds = array<i64: 1, 3, 256>}, {transform_indices = @transform_2, window_bounds = array<i64: 1, 3, 1>}, {transform_indices = @transform_3, window_bounds = array<i64: 1, 1, 384>}, {pipeline_mode = #tpu.pipeline_mode<synchronous>, transform_indices = @transform_4, window_bounds = array<i64: 128, 32>}, {pipeline_mode = #tpu.pipeline_mode<synchronous>, transform_indices = @transform_5, window_bounds = array<i64: 6, 384>}, {pipeline_mode = #tpu.pipeline_mode<synchronous>, transform_indices = @transform_6, window_bounds = array<i64: 6, 1>}, {pipeline_mode = #tpu.pipeline_mode<synchronous>, transform_indices = @transform_7, window_bounds = array<i64: 64, 144>}, {pipeline_mode = #tpu.pipeline_mode<synchronous>, transform_indices = @transform_8, window_bounds = array<i64: 64, 1>}, {pipeline_mode = #tpu.pipeline_mode<synchronous>, transform_indices = @transform_9, window_bounds = array<i64: 64, 576>}, {pipeline_mode = #tpu.pipeline_mode<synchronous>, transform_indices = @transform_10, window_bounds = array<i64: 64, 1>}, {pipeline_mode = #tpu.pipeline_mode<synchronous>, transform_indices = @transform_11, window_bounds = array<i64: 3, 576>}, {pipeline_mode = #tpu.pipeline_mode<synchronous>, transform_indices = @transform_12, window_bounds = array<i64: 3, 1>}, {transform_indices = @transform_13, window_bounds = array<i64: 1, 16, 256>}, {transform_indices = @transform_14, window_bounds = array<i64: 1, 3, 256>}]} {
    %c0 = arith.constant 0 : index
    %c0_0 = arith.constant 0 : index
    %c0_1 = arith.constant 0 : index
    %0 = vector.load %arg1[%c0, %c0_0, %c0_1] : memref<1x2x256xf32, #tpu.memory_space<vmem>>, vector<1x1x256xf32>
    %1 = vector.shape_cast %0 : vector<1x1x256xf32> to vector<1x256xf32>
    %c0_2 = arith.constant 0 : index
    %c1 = arith.constant 1 : index
    %c0_3 = arith.constant 0 : index
    %2 = vector.load %arg1[%c0_2, %c1, %c0_3] : memref<1x2x256xf32, #tpu.memory_space<vmem>>, vector<1x1x256xf32>
    %3 = vector.shape_cast %2 : vector<1x1x256xf32> to vector<1x256xf32>
    %cst = arith.constant 1.000000e+00 : f32
    %4 = vector.broadcast %cst : f32 to vector<1x256xf32>
    %5 = arith.addf %1, %4 : vector<1x256xf32>
    %cst_4 = arith.constant 1.550000e+01 : f32
    %6 = vector.broadcast %cst_4 : f32 to vector<1x256xf32>
    %7 = arith.mulf %5, %6 : vector<1x256xf32>
    %cst_5 = arith.constant 1.000000e+00 : f32
    %8 = vector.broadcast %cst_5 : f32 to vector<1x256xf32>
    %9 = arith.addf %3, %8 : vector<1x256xf32>
    %cst_6 = arith.constant 1.550000e+01 : f32
    %10 = vector.broadcast %cst_6 : f32 to vector<1x256xf32>
    %11 = arith.mulf %9, %10 : vector<1x256xf32>
    %12 = math.floor %7 : vector<1x256xf32>
    %13 = math.floor %11 : vector<1x256xf32>
    %14 = arith.subf %7, %12 : vector<1x256xf32>
    %15 = arith.subf %11, %13 : vector<1x256xf32>
    %c0_i32 = arith.constant 0 : i32
    %c31_i32 = arith.constant 31 : i32
    %16 = arith.sitofp %c0_i32 : i32 to f32
    %17 = vector.broadcast %16 : f32 to vector<1x256xf32>
    %18 = arith.maximumf %17, %12 : vector<1x256xf32>
    %19 = arith.sitofp %c31_i32 : i32 to f32
    %20 = vector.broadcast %19 : f32 to vector<1x256xf32>
    %21 = arith.minimumf %20, %18 : vector<1x256xf32>
    %22 = arith.fptosi %21 : vector<1x256xf32> to vector<1x256xi32>
    %cst_7 = arith.constant 1.000000e+00 : f32
    %23 = vector.broadcast %cst_7 : f32 to vector<1x256xf32>
    %24 = arith.addf %12, %23 : vector<1x256xf32>
    %c0_i32_8 = arith.constant 0 : i32
    %c31_i32_9 = arith.constant 31 : i32
    %25 = arith.sitofp %c0_i32_8 : i32 to f32
    %26 = vector.broadcast %25 : f32 to vector<1x256xf32>
    %27 = arith.maximumf %26, %24 : vector<1x256xf32>
    %28 = arith.sitofp %c31_i32_9 : i32 to f32
    %29 = vector.broadcast %28 : f32 to vector<1x256xf32>
    %30 = arith.minimumf %29, %27 : vector<1x256xf32>
    %31 = arith.fptosi %30 : vector<1x256xf32> to vector<1x256xi32>
    %c0_i32_10 = arith.constant 0 : i32
    %c31_i32_11 = arith.constant 31 : i32
    %32 = arith.sitofp %c0_i32_10 : i32 to f32
    %33 = vector.broadcast %32 : f32 to vector<1x256xf32>
    %34 = arith.maximumf %33, %13 : vector<1x256xf32>
    %35 = arith.sitofp %c31_i32_11 : i32 to f32
    %36 = vector.broadcast %35 : f32 to vector<1x256xf32>
    %37 = arith.minimumf %36, %34 : vector<1x256xf32>
    %38 = arith.fptosi %37 : vector<1x256xf32> to vector<1x256xi32>
    %cst_12 = arith.constant 1.000000e+00 : f32
    %39 = vector.broadcast %cst_12 : f32 to vector<1x256xf32>
    %40 = arith.addf %13, %39 : vector<1x256xf32>
    %c0_i32_13 = arith.constant 0 : i32
    %c31_i32_14 = arith.constant 31 : i32
    %41 = arith.sitofp %c0_i32_13 : i32 to f32
    %42 = vector.broadcast %41 : f32 to vector<1x256xf32>
    %43 = arith.maximumf %42, %40 : vector<1x256xf32>
    %44 = arith.sitofp %c31_i32_14 : i32 to f32
    %45 = vector.broadcast %44 : f32 to vector<1x256xf32>
    %46 = arith.minimumf %45, %43 : vector<1x256xf32>
    %47 = arith.fptosi %46 : vector<1x256xf32> to vector<1x256xi32>
    %48 = tpu.iota {dimensions = array<i32: 0>} : vector<32x256xi32>
    %49 = vector.broadcast %38 : vector<1x256xi32> to vector<32x256xi32>
    %50 = arith.cmpi eq, %48, %49 : vector<32x256xi32>
    %cst_15 = arith.constant 1.000000e+00 : f32
    %51 = vector.broadcast %cst_15 : f32 to vector<1x256xf32>
    %52 = arith.subf %51, %15 : vector<1x256xf32>
    %cst_16 = arith.constant 0.000000e+00 : f32
    %53 = vector.shape_cast %52 : vector<1x256xf32> to vector<1x256xf32>
    %54 = vector.broadcast %53 : vector<1x256xf32> to vector<32x256xf32>
    %55 = vector.broadcast %cst_16 : f32 to vector<32x256xf32>
    %56 = arith.select %50, %54, %55 : vector<32x256xi1>, vector<32x256xf32>
    %57 = vector.broadcast %47 : vector<1x256xi32> to vector<32x256xi32>
    %58 = arith.cmpi eq, %48, %57 : vector<32x256xi32>
    %cst_17 = arith.constant 0.000000e+00 : f32
    %59 = vector.shape_cast %15 : vector<1x256xf32> to vector<1x256xf32>
    %60 = vector.broadcast %59 : vector<1x256xf32> to vector<32x256xf32>
    %61 = vector.broadcast %cst_17 : f32 to vector<32x256xf32>
    %62 = arith.select %58, %60, %61 : vector<32x256xi1>, vector<32x256xf32>
    %63 = arith.addf %56, %62 : vector<32x256xf32>
    %64 = vector.broadcast %22 : vector<1x256xi32> to vector<32x256xi32>
    %65 = arith.cmpi eq, %48, %64 : vector<32x256xi32>
    %cst_18 = arith.constant 1.000000e+00 : f32
    %66 = vector.broadcast %cst_18 : f32 to vector<1x256xf32>
    %67 = arith.subf %66, %14 : vector<1x256xf32>
    %cst_19 = arith.constant 0.000000e+00 : f32
    %68 = vector.shape_cast %67 : vector<1x256xf32> to vector<1x256xf32>
    %69 = vector.broadcast %68 : vector<1x256xf32> to vector<32x256xf32>
    %70 = vector.broadcast %cst_19 : f32 to vector<32x256xf32>
    %71 = arith.select %65, %69, %70 : vector<32x256xi1>, vector<32x256xf32>
    %72 = vector.broadcast %31 : vector<1x256xi32> to vector<32x256xi32>
    %73 = arith.cmpi eq, %48, %72 : vector<32x256xi32>
    %cst_20 = arith.constant 0.000000e+00 : f32
    %74 = vector.shape_cast %14 : vector<1x256xf32> to vector<1x256xf32>
    %75 = vector.broadcast %74 : vector<1x256xf32> to vector<32x256xf32>
    %76 = vector.broadcast %cst_20 : f32 to vector<32x256xf32>
    %77 = arith.select %73, %75, %76 : vector<32x256xi1>, vector<32x256xf32>
    %78 = arith.addf %71, %77 : vector<32x256xf32>
    %c0_21 = arith.constant 0 : index
    %c0_22 = arith.constant 0 : index
    %79 = vector.load %arg5[%c0_21, %c0_22] : memref<128x32xbf16, #tpu.memory_space<vmem>>, vector<128x32xbf16>
    %80 = arith.truncf %63 : vector<32x256xf32> to vector<32x256xbf16>
    %cst_23 = arith.constant dense<0.000000e+00> : vector<128x256xf32>
    %81 = tpu.matmul %79, %80, %cst_23 {dimension_numbers = #tpu.dot_dimension_numbers<[1], [0], [0], [1], [0, 0, 1, 1], [], []>} : vector<128x32xbf16>, vector<32x256xbf16>, vector<128x256xf32> -> vector<128x256xf32>
    %82 = vector.shape_cast %81 : vector<128x256xf32> to vector<4x32x256xf32>
    %83 = vector.shape_cast %78 : vector<32x256xf32> to vector<1x32x256xf32>
    %84 = vector.broadcast %83 : vector<1x32x256xf32> to vector<4x32x256xf32>
    %85 = arith.mulf %82, %84 : vector<4x32x256xf32>
    %cst_24 = arith.constant dense<0.000000e+00> : vector<4x256xf32>
    %86 = vector.multi_reduction <add>, %85, %cst_24 [1] : vector<4x32x256xf32> to vector<4x256xf32>
    %c0_25 = arith.constant 0 : index
    %c0_26 = arith.constant 0 : index
    %c0_27 = arith.constant 0 : index
    %87 = vector.load %arg4[%c0_25, %c0_26, %c0_27] : memref<1x1x384xf32, #tpu.memory_space<vmem>>, vector<1x1x384xf32>
    %88 = vector.shape_cast %87 : vector<1x1x384xf32> to vector<1x384xf32>
    %c0_28 = arith.constant 0 : index
    %c0_29 = arith.constant 0 : index
    %89 = vector.load %arg6[%c0_28, %c0_29] : memref<6x384xf32, #tpu.memory_space<vmem>>, vector<6x384xf32>
    %90 = vector.broadcast %88 : vector<1x384xf32> to vector<6x384xf32>
    %91 = arith.mulf %89, %90 : vector<6x384xf32>
    %cst_30 = arith.constant dense<0.000000e+00> : vector<6xf32>
    %92 = vector.multi_reduction <add>, %91, %cst_30 [1] : vector<6x384xf32> to vector<6xf32>
    %93 = vector.shape_cast %92 : vector<6xf32> to vector<6x1xf32>
    %c0_31 = arith.constant 0 : index
    %c0_32 = arith.constant 0 : index
    %94 = vector.load %arg7[%c0_31, %c0_32] : memref<6x1xf32, #tpu.memory_space<vmem>>, vector<6x1xf32>
    %95 = arith.addf %93, %94 : vector<6x1xf32>
    %c0_33 = arith.constant 0 : index
    %c0_34 = arith.constant 0 : index
    %c0_35 = arith.constant 0 : index
    %96 = vector.load %arg3[%c0_33, %c0_34, %c0_35] : memref<1x3x1xf32, #tpu.memory_space<vmem>>, vector<1x3x1xf32>
    %97 = vector.shape_cast %96 : vector<1x3x1xf32> to vector<3x1xf32>
    %98 = vector.shape_cast %97 : vector<3x1xf32> to vector<3x1xf32>
    %99 = vector.broadcast %98 : vector<3x1xf32> to vector<3x256xf32>
    %100 = vector.shape_cast %95 : vector<6x1xf32> to vector<6x1xf32>
    %101 = vector.broadcast %100 : vector<6x1xf32> to vector<6x256xf32>
    %c0_36 = arith.constant 0 : index
    %c0_37 = arith.constant 0 : index
    %102 = vector.load %arg16[%c0_36, %c0_37] : memref<16x256xf32, #tpu.memory_space<vmem>>, vector<4x256xf32>
    tpu.vector_store %arg16[%c0_36, %c0_37], %86 {strides = array<i32>} : memref<16x256xf32, #tpu.memory_space<vmem>>, vector<4x256xf32>,
    %c0_38 = arith.constant 0 : index
    %c0_39 = arith.constant 0 : index
    %c0_40 = arith.constant 0 : index
    %103 = vector.load %arg2[%c0_38, %c0_39, %c0_40] : memref<1x3x256xf32, #tpu.memory_space<vmem>>, vector<1x3x256xf32>
    %104 = vector.shape_cast %103 : vector<1x3x256xf32> to vector<3x256xf32>
    %c4 = arith.constant 4 : index
    %c0_41 = arith.constant 0 : index
    %105 = vector.load %arg16[%c4, %c0_41] : memref<16x256xf32, #tpu.memory_space<vmem>>, vector<3x256xf32>
    tpu.vector_store %arg16[%c4, %c0_41], %104 {strides = array<i32>} : memref<16x256xf32, #tpu.memory_space<vmem>>, vector<3x256xf32>,
    %c7 = arith.constant 7 : index
    %c0_42 = arith.constant 0 : index
    %106 = vector.load %arg16[%c7, %c0_42] : memref<16x256xf32, #tpu.memory_space<vmem>>, vector<3x256xf32>
    tpu.vector_store %arg16[%c7, %c0_42], %99 {strides = array<i32>} : memref<16x256xf32, #tpu.memory_space<vmem>>, vector<3x256xf32>,
    %c10 = arith.constant 10 : index
    %c0_43 = arith.constant 0 : index
    %107 = vector.load %arg16[%c10, %c0_43] : memref<16x256xf32, #tpu.memory_space<vmem>>, vector<6x256xf32>
    tpu.vector_store %arg16[%c10, %c0_43], %101 {strides = array<i32>} : memref<16x256xf32, #tpu.memory_space<vmem>>, vector<6x256xf32>,
    %c0_44 = arith.constant 0 : index
    %c0_45 = arith.constant 0 : index
    %108 = vector.load %arg16[%c0_44, %c0_45] : memref<16x256xf32, #tpu.memory_space<vmem>>, vector<16x256xf32>
    %c0_46 = arith.constant 0 : index
    %c0_47 = arith.constant 0 : index
    %c0_48 = arith.constant 0 : index
    %109 = vector.load %arg14[%c0_46, %c0_47, %c0_48] : memref<1x16x256xf32, #tpu.memory_space<vmem>>, vector<1x16x256xf32>
    %110 = vector.shape_cast %109 : vector<1x16x256xf32> to vector<16x256xf32>
    %111 = vector.shape_cast %108 : vector<16x256xf32> to vector<1x16x256xf32>
    tpu.vector_store %arg14[%c0_46, %c0_47, %c0_48], %111 {strides = array<i32>} : memref<1x16x256xf32, #tpu.memory_space<vmem>>, vector<1x16x256xf32>,
    %112 = tpu.iota {dimensions = array<i32: 1>} : vector<1x256xi32>
    %c4_i32 = arith.constant 4 : i32
    %113 = vector.broadcast %c4_i32 : i32 to vector<1x256xi32>
    %114 = arith.shrsi %112, %113 : vector<1x256xi32>
    %c15_i32 = arith.constant 15 : i32
    %115 = vector.broadcast %c15_i32 : i32 to vector<1x256xi32>
    %116 = arith.andi %112, %115 : vector<1x256xi32>
    %c-1_i32 = arith.constant -1 : i32
    %117 = vector.broadcast %c-1_i32 : i32 to vector<1x256xi32>
    %118 = arith.addi %114, %117 : vector<1x256xi32>
    %c0_i32_49 = arith.constant 0 : i32
    %119 = vector.broadcast %c0_i32_49 : i32 to vector<1x256xi32>
    %120 = arith.cmpi sge, %118, %119 : vector<1x256xi32>
    %c-1_i32_50 = arith.constant -1 : i32
    %121 = vector.broadcast %c-1_i32_50 : i32 to vector<1x256xi32>
    %122 = arith.addi %114, %121 : vector<1x256xi32>
    %c16_i32 = arith.constant 16 : i32
    %123 = vector.broadcast %c16_i32 : i32 to vector<1x256xi32>
    %124 = arith.cmpi slt, %122, %123 : vector<1x256xi32>
    %125 = arith.andi %120, %124 : vector<1x256xi1>
    %c-1_i32_51 = arith.constant -1 : i32
    %126 = vector.broadcast %c-1_i32_51 : i32 to vector<1x256xi32>
    %127 = arith.addi %116, %126 : vector<1x256xi32>
    %c0_i32_52 = arith.constant 0 : i32
    %128 = vector.broadcast %c0_i32_52 : i32 to vector<1x256xi32>
    %129 = arith.cmpi sge, %127, %128 : vector<1x256xi32>
    %130 = arith.andi %125, %129 : vector<1x256xi1>
    %c-1_i32_53 = arith.constant -1 : i32
    %131 = vector.broadcast %c-1_i32_53 : i32 to vector<1x256xi32>
    %132 = arith.addi %116, %131 : vector<1x256xi32>
    %c16_i32_54 = arith.constant 16 : i32
    %133 = vector.broadcast %c16_i32_54 : i32 to vector<1x256xi32>
    %134 = arith.cmpi slt, %132, %133 : vector<1x256xi32>
    %135 = arith.andi %130, %134 : vector<1x256xi1>
    %136 = arith.extui %135 : vector<1x256xi1> to vector<1x256xi32>
    %137 = arith.sitofp %136 : vector<1x256xi32> to vector<1x256xf32>
    %c-1_i32_55 = arith.constant -1 : i32
    %138 = vector.broadcast %c-1_i32_55 : i32 to vector<1x256xi32>
    %139 = arith.addi %114, %138 : vector<1x256xi32>
    %c0_i32_56 = arith.constant 0 : i32
    %140 = vector.broadcast %c0_i32_56 : i32 to vector<1x256xi32>
    %141 = arith.cmpi sge, %139, %140 : vector<1x256xi32>
    %c-1_i32_57 = arith.constant -1 : i32
    %142 = vector.broadcast %c-1_i32_57 : i32 to vector<1x256xi32>
    %143 = arith.addi %114, %142 : vector<1x256xi32>
    %c16_i32_58 = arith.constant 16 : i32
    %144 = vector.broadcast %c16_i32_58 : i32 to vector<1x256xi32>
    %145 = arith.cmpi slt, %143, %144 : vector<1x256xi32>
    %146 = arith.andi %141, %145 : vector<1x256xi1>
    %c0_i32_59 = arith.constant 0 : i32
    %147 = vector.broadcast %c0_i32_59 : i32 to vector<1x256xi32>
    %148 = arith.addi %116, %147 : vector<1x256xi32>
    %c0_i32_60 = arith.constant 0 : i32
    %149 = vector.broadcast %c0_i32_60 : i32 to vector<1x256xi32>
    %150 = arith.cmpi sge, %148, %149 : vector<1x256xi32>
    %151 = arith.andi %146, %150 : vector<1x256xi1>
    %c0_i32_61 = arith.constant 0 : i32
    %152 = vector.broadcast %c0_i32_61 : i32 to vector<1x256xi32>
    %153 = arith.addi %116, %152 : vector<1x256xi32>
    %c16_i32_62 = arith.constant 16 : i32
    %154 = vector.broadcast %c16_i32_62 : i32 to vector<1x256xi32>
    %155 = arith.cmpi slt, %153, %154 : vector<1x256xi32>
    %156 = arith.andi %151, %155 : vector<1x256xi1>
    %157 = arith.extui %156 : vector<1x256xi1> to vector<1x256xi32>
    %158 = arith.sitofp %157 : vector<1x256xi32> to vector<1x256xf32>
    %c-1_i32_63 = arith.constant -1 : i32
    %159 = vector.broadcast %c-1_i32_63 : i32 to vector<1x256xi32>
    %160 = arith.addi %114, %159 : vector<1x256xi32>
    %c0_i32_64 = arith.constant 0 : i32
    %161 = vector.broadcast %c0_i32_64 : i32 to vector<1x256xi32>
    %162 = arith.cmpi sge, %160, %161 : vector<1x256xi32>
    %c-1_i32_65 = arith.constant -1 : i32
    %163 = vector.broadcast %c-1_i32_65 : i32 to vector<1x256xi32>
    %164 = arith.addi %114, %163 : vector<1x256xi32>
    %c16_i32_66 = arith.constant 16 : i32
    %165 = vector.broadcast %c16_i32_66 : i32 to vector<1x256xi32>
    %166 = arith.cmpi slt, %164, %165 : vector<1x256xi32>
    %167 = arith.andi %162, %166 : vector<1x256xi1>
    %c1_i32 = arith.constant 1 : i32
    %168 = vector.broadcast %c1_i32 : i32 to vector<1x256xi32>
    %169 = arith.addi %116, %168 : vector<1x256xi32>
    %c0_i32_67 = arith.constant 0 : i32
    %170 = vector.broadcast %c0_i32_67 : i32 to vector<1x256xi32>
    %171 = arith.cmpi sge, %169, %170 : vector<1x256xi32>
    %172 = arith.andi %167, %171 : vector<1x256xi1>
    %c1_i32_68 = arith.constant 1 : i32
    %173 = vector.broadcast %c1_i32_68 : i32 to vector<1x256xi32>
    %174 = arith.addi %116, %173 : vector<1x256xi32>
    %c16_i32_69 = arith.constant 16 : i32
    %175 = vector.broadcast %c16_i32_69 : i32 to vector<1x256xi32>
    %176 = arith.cmpi slt, %174, %175 : vector<1x256xi32>
    %177 = arith.andi %172, %176 : vector<1x256xi1>
    %178 = arith.extui %177 : vector<1x256xi1> to vector<1x256xi32>
    %179 = arith.sitofp %178 : vector<1x256xi32> to vector<1x256xf32>
    %c0_i32_70 = arith.constant 0 : i32
    %180 = vector.broadcast %c0_i32_70 : i32 to vector<1x256xi32>
    %181 = arith.addi %114, %180 : vector<1x256xi32>
    %c0_i32_71 = arith.constant 0 : i32
    %182 = vector.broadcast %c0_i32_71 : i32 to vector<1x256xi32>
    %183 = arith.cmpi sge, %181, %182 : vector<1x256xi32>
    %c0_i32_72 = arith.constant 0 : i32
    %184 = vector.broadcast %c0_i32_72 : i32 to vector<1x256xi32>
    %185 = arith.addi %114, %184 : vector<1x256xi32>
    %c16_i32_73 = arith.constant 16 : i32
    %186 = vector.broadcast %c16_i32_73 : i32 to vector<1x256xi32>
    %187 = arith.cmpi slt, %185, %186 : vector<1x256xi32>
    %188 = arith.andi %183, %187 : vector<1x256xi1>
    %c-1_i32_74 = arith.constant -1 : i32
    %189 = vector.broadcast %c-1_i32_74 : i32 to vector<1x256xi32>
    %190 = arith.addi %116, %189 : vector<1x256xi32>
    %c0_i32_75 = arith.constant 0 : i32
    %191 = vector.broadcast %c0_i32_75 : i32 to vector<1x256xi32>
    %192 = arith.cmpi sge, %190, %191 : vector<1x256xi32>
    %193 = arith.andi %188, %192 : vector<1x256xi1>
    %c-1_i32_76 = arith.constant -1 : i32
    %194 = vector.broadcast %c-1_i32_76 : i32 to vector<1x256xi32>
    %195 = arith.addi %116, %194 : vector<1x256xi32>
    %c16_i32_77 = arith.constant 16 : i32
    %196 = vector.broadcast %c16_i32_77 : i32 to vector<1x256xi32>
    %197 = arith.cmpi slt, %195, %196 : vector<1x256xi32>
    %198 = arith.andi %193, %197 : vector<1x256xi1>
    %199 = arith.extui %198 : vector<1x256xi1> to vector<1x256xi32>
    %200 = arith.sitofp %199 : vector<1x256xi32> to vector<1x256xf32>
    %c0_i32_78 = arith.constant 0 : i32
    %201 = vector.broadcast %c0_i32_78 : i32 to vector<1x256xi32>
    %202 = arith.addi %114, %201 : vector<1x256xi32>
    %c0_i32_79 = arith.constant 0 : i32
    %203 = vector.broadcast %c0_i32_79 : i32 to vector<1x256xi32>
    %204 = arith.cmpi sge, %202, %203 : vector<1x256xi32>
    %c0_i32_80 = arith.constant 0 : i32
    %205 = vector.broadcast %c0_i32_80 : i32 to vector<1x256xi32>
    %206 = arith.addi %114, %205 : vector<1x256xi32>
    %c16_i32_81 = arith.constant 16 : i32
    %207 = vector.broadcast %c16_i32_81 : i32 to vector<1x256xi32>
    %208 = arith.cmpi slt, %206, %207 : vector<1x256xi32>
    %209 = arith.andi %204, %208 : vector<1x256xi1>
    %c1_i32_82 = arith.constant 1 : i32
    %210 = vector.broadcast %c1_i32_82 : i32 to vector<1x256xi32>
    %211 = arith.addi %116, %210 : vector<1x256xi32>
    %c0_i32_83 = arith.constant 0 : i32
    %212 = vector.broadcast %c0_i32_83 : i32 to vector<1x256xi32>
    %213 = arith.cmpi sge, %211, %212 : vector<1x256xi32>
    %214 = arith.andi %209, %213 : vector<1x256xi1>
    %c1_i32_84 = arith.constant 1 : i32
    %215 = vector.broadcast %c1_i32_84 : i32 to vector<1x256xi32>
    %216 = arith.addi %116, %215 : vector<1x256xi32>
    %c16_i32_85 = arith.constant 16 : i32
    %217 = vector.broadcast %c16_i32_85 : i32 to vector<1x256xi32>
    %218 = arith.cmpi slt, %216, %217 : vector<1x256xi32>
    %219 = arith.andi %214, %218 : vector<1x256xi1>
    %220 = arith.extui %219 : vector<1x256xi1> to vector<1x256xi32>
    %221 = arith.sitofp %220 : vector<1x256xi32> to vector<1x256xf32>
    %c1_i32_86 = arith.constant 1 : i32
    %222 = vector.broadcast %c1_i32_86 : i32 to vector<1x256xi32>
    %223 = arith.addi %114, %222 : vector<1x256xi32>
    %c0_i32_87 = arith.constant 0 : i32
    %224 = vector.broadcast %c0_i32_87 : i32 to vector<1x256xi32>
    %225 = arith.cmpi sge, %223, %224 : vector<1x256xi32>
    %c1_i32_88 = arith.constant 1 : i32
    %226 = vector.broadcast %c1_i32_88 : i32 to vector<1x256xi32>
    %227 = arith.addi %114, %226 : vector<1x256xi32>
    %c16_i32_89 = arith.constant 16 : i32
    %228 = vector.broadcast %c16_i32_89 : i32 to vector<1x256xi32>
    %229 = arith.cmpi slt, %227, %228 : vector<1x256xi32>
    %230 = arith.andi %225, %229 : vector<1x256xi1>
    %c-1_i32_90 = arith.constant -1 : i32
    %231 = vector.broadcast %c-1_i32_90 : i32 to vector<1x256xi32>
    %232 = arith.addi %116, %231 : vector<1x256xi32>
    %c0_i32_91 = arith.constant 0 : i32
    %233 = vector.broadcast %c0_i32_91 : i32 to vector<1x256xi32>
    %234 = arith.cmpi sge, %232, %233 : vector<1x256xi32>
    %235 = arith.andi %230, %234 : vector<1x256xi1>
    %c-1_i32_92 = arith.constant -1 : i32
    %236 = vector.broadcast %c-1_i32_92 : i32 to vector<1x256xi32>
    %237 = arith.addi %116, %236 : vector<1x256xi32>
    %c16_i32_93 = arith.constant 16 : i32
    %238 = vector.broadcast %c16_i32_93 : i32 to vector<1x256xi32>
    %239 = arith.cmpi slt, %237, %238 : vector<1x256xi32>
    %240 = arith.andi %235, %239 : vector<1x256xi1>
    %241 = arith.extui %240 : vector<1x256xi1> to vector<1x256xi32>
    %242 = arith.sitofp %241 : vector<1x256xi32> to vector<1x256xf32>
    %c1_i32_94 = arith.constant 1 : i32
    %243 = vector.broadcast %c1_i32_94 : i32 to vector<1x256xi32>
    %244 = arith.addi %114, %243 : vector<1x256xi32>
    %c0_i32_95 = arith.constant 0 : i32
    %245 = vector.broadcast %c0_i32_95 : i32 to vector<1x256xi32>
    %246 = arith.cmpi sge, %244, %245 : vector<1x256xi32>
    %c1_i32_96 = arith.constant 1 : i32
    %247 = vector.broadcast %c1_i32_96 : i32 to vector<1x256xi32>
    %248 = arith.addi %114, %247 : vector<1x256xi32>
    %c16_i32_97 = arith.constant 16 : i32
    %249 = vector.broadcast %c16_i32_97 : i32 to vector<1x256xi32>
    %250 = arith.cmpi slt, %248, %249 : vector<1x256xi32>
    %251 = arith.andi %246, %250 : vector<1x256xi1>
    %c0_i32_98 = arith.constant 0 : i32
    %252 = vector.broadcast %c0_i32_98 : i32 to vector<1x256xi32>
    %253 = arith.addi %116, %252 : vector<1x256xi32>
    %c0_i32_99 = arith.constant 0 : i32
    %254 = vector.broadcast %c0_i32_99 : i32 to vector<1x256xi32>
    %255 = arith.cmpi sge, %253, %254 : vector<1x256xi32>
    %256 = arith.andi %251, %255 : vector<1x256xi1>
    %c0_i32_100 = arith.constant 0 : i32
    %257 = vector.broadcast %c0_i32_100 : i32 to vector<1x256xi32>
    %258 = arith.addi %116, %257 : vector<1x256xi32>
    %c16_i32_101 = arith.constant 16 : i32
    %259 = vector.broadcast %c16_i32_101 : i32 to vector<1x256xi32>
    %260 = arith.cmpi slt, %258, %259 : vector<1x256xi32>
    %261 = arith.andi %256, %260 : vector<1x256xi1>
    %262 = arith.extui %261 : vector<1x256xi1> to vector<1x256xi32>
    %263 = arith.sitofp %262 : vector<1x256xi32> to vector<1x256xf32>
    %c1_i32_102 = arith.constant 1 : i32
    %264 = vector.broadcast %c1_i32_102 : i32 to vector<1x256xi32>
    %265 = arith.addi %114, %264 : vector<1x256xi32>
    %c0_i32_103 = arith.constant 0 : i32
    %266 = vector.broadcast %c0_i32_103 : i32 to vector<1x256xi32>
    %267 = arith.cmpi sge, %265, %266 : vector<1x256xi32>
    %c1_i32_104 = arith.constant 1 : i32
    %268 = vector.broadcast %c1_i32_104 : i32 to vector<1x256xi32>
    %269 = arith.addi %114, %268 : vector<1x256xi32>
    %c16_i32_105 = arith.constant 16 : i32
    %270 = vector.broadcast %c16_i32_105 : i32 to vector<1x256xi32>
    %271 = arith.cmpi slt, %269, %270 : vector<1x256xi32>
    %272 = arith.andi %267, %271 : vector<1x256xi1>
    %c1_i32_106 = arith.constant 1 : i32
    %273 = vector.broadcast %c1_i32_106 : i32 to vector<1x256xi32>
    %274 = arith.addi %116, %273 : vector<1x256xi32>
    %c0_i32_107 = arith.constant 0 : i32
    %275 = vector.broadcast %c0_i32_107 : i32 to vector<1x256xi32>
    %276 = arith.cmpi sge, %274, %275 : vector<1x256xi32>
    %277 = arith.andi %272, %276 : vector<1x256xi1>
    %c1_i32_108 = arith.constant 1 : i32
    %278 = vector.broadcast %c1_i32_108 : i32 to vector<1x256xi32>
    %279 = arith.addi %116, %278 : vector<1x256xi32>
    %c16_i32_109 = arith.constant 16 : i32
    %280 = vector.broadcast %c16_i32_109 : i32 to vector<1x256xi32>
    %281 = arith.cmpi slt, %279, %280 : vector<1x256xi32>
    %282 = arith.andi %277, %281 : vector<1x256xi1>
    %283 = arith.extui %282 : vector<1x256xi1> to vector<1x256xi32>
    %284 = arith.sitofp %283 : vector<1x256xi32> to vector<1x256xf32>
    %c17_i32 = arith.constant 17 : i32
    %285 = tpu.dynamic_rotate %108 by %c17_i32 dim 1 : vector<16x256xf32>, i32 -> vector<16x256xf32>
    %286 = vector.broadcast %137 : vector<1x256xf32> to vector<16x256xf32>
    %287 = arith.mulf %285, %286 : vector<16x256xf32>
    %288 = arith.truncf %287 : vector<16x256xf32> to vector<16x256xbf16>
    %c0_110 = arith.constant 0 : index
    %c0_111 = arith.constant 0 : index
    %289 = vector.load %arg17[%c0_110, %c0_111] : memref<576x256xbf16, #tpu.memory_space<vmem>>, vector<16x256xbf16>
    tpu.vector_store %arg17[%c0_110, %c0_111], %288 {strides = array<i32>} : memref<576x256xbf16, #tpu.memory_space<vmem>>, vector<16x256xbf16>,
    %c16_i32_112 = arith.constant 16 : i32
    %290 = tpu.dynamic_rotate %108 by %c16_i32_112 dim 1 : vector<16x256xf32>, i32 -> vector<16x256xf32>
    %291 = vector.broadcast %158 : vector<1x256xf32> to vector<16x256xf32>
    %292 = arith.mulf %290, %291 : vector<16x256xf32>
    %293 = arith.truncf %292 : vector<16x256xf32> to vector<16x256xbf16>
    %c16 = arith.constant 16 : index
    %c0_113 = arith.constant 0 : index
    %294 = vector.load %arg17[%c16, %c0_113] : memref<576x256xbf16, #tpu.memory_space<vmem>>, vector<16x256xbf16>
    tpu.vector_store %arg17[%c16, %c0_113], %293 {strides = array<i32>} : memref<576x256xbf16, #tpu.memory_space<vmem>>, vector<16x256xbf16>,
    %c15_i32_114 = arith.constant 15 : i32
    %295 = tpu.dynamic_rotate %108 by %c15_i32_114 dim 1 : vector<16x256xf32>, i32 -> vector<16x256xf32>
    %296 = vector.broadcast %179 : vector<1x256xf32> to vector<16x256xf32>
    %297 = arith.mulf %295, %296 : vector<16x256xf32>
    %298 = arith.truncf %297 : vector<16x256xf32> to vector<16x256xbf16>
    %c32 = arith.constant 32 : index
    %c0_115 = arith.constant 0 : index
    %299 = vector.load %arg17[%c32, %c0_115] : memref<576x256xbf16, #tpu.memory_space<vmem>>, vector<16x256xbf16>
    tpu.vector_store %arg17[%c32, %c0_115], %298 {strides = array<i32>} : memref<576x256xbf16, #tpu.memory_space<vmem>>, vector<16x256xbf16>,
    %c1_i32_116 = arith.constant 1 : i32
    %300 = tpu.dynamic_rotate %108 by %c1_i32_116 dim 1 : vector<16x256xf32>, i32 -> vector<16x256xf32>
    %301 = vector.broadcast %200 : vector<1x256xf32> to vector<16x256xf32>
    %302 = arith.mulf %300, %301 : vector<16x256xf32>
    %303 = arith.truncf %302 : vector<16x256xf32> to vector<16x256xbf16>
    %c48 = arith.constant 48 : index
    %c0_117 = arith.constant 0 : index
    %304 = vector.load %arg17[%c48, %c0_117] : memref<576x256xbf16, #tpu.memory_space<vmem>>, vector<16x256xbf16>
    tpu.vector_store %arg17[%c48, %c0_117], %303 {strides = array<i32>} : memref<576x256xbf16, #tpu.memory_space<vmem>>, vector<16x256xbf16>,
    %305 = arith.truncf %108 : vector<16x256xf32> to vector<16x256xbf16>
    %c64 = arith.constant 64 : index
    %c0_118 = arith.constant 0 : index
    %306 = vector.load %arg17[%c64, %c0_118] : memref<576x256xbf16, #tpu.memory_space<vmem>>, vector<16x256xbf16>
    tpu.vector_store %arg17[%c64, %c0_118], %305 {strides = array<i32>} : memref<576x256xbf16, #tpu.memory_space<vmem>>, vector<16x256xbf16>,
    %c255_i32 = arith.constant 255 : i32
    %307 = tpu.dynamic_rotate %108 by %c255_i32 dim 1 : vector<16x256xf32>, i32 -> vector<16x256xf32>
    %308 = vector.broadcast %221 : vector<1x256xf32> to vector<16x256xf32>
    %309 = arith.mulf %307, %308 : vector<16x256xf32>
    %310 = arith.truncf %309 : vector<16x256xf32> to vector<16x256xbf16>
    %c80 = arith.constant 80 : index
    %c0_119 = arith.constant 0 : index
    %311 = vector.load %arg17[%c80, %c0_119] : memref<576x256xbf16, #tpu.memory_space<vmem>>, vector<16x256xbf16>
    tpu.vector_store %arg17[%c80, %c0_119], %310 {strides = array<i32>} : memref<576x256xbf16, #tpu.memory_space<vmem>>, vector<16x256xbf16>,
    %c241_i32 = arith.constant 241 : i32
    %312 = tpu.dynamic_rotate %108 by %c241_i32 dim 1 : vector<16x256xf32>, i32 -> vector<16x256xf32>
    %313 = vector.broadcast %242 : vector<1x256xf32> to vector<16x256xf32>
    %314 = arith.mulf %312, %313 : vector<16x256xf32>
    %315 = arith.truncf %314 : vector<16x256xf32> to vector<16x256xbf16>
    %c96 = arith.constant 96 : index
    %c0_120 = arith.constant 0 : index
    %316 = vector.load %arg17[%c96, %c0_120] : memref<576x256xbf16, #tpu.memory_space<vmem>>, vector<16x256xbf16>
    tpu.vector_store %arg17[%c96, %c0_120], %315 {strides = array<i32>} : memref<576x256xbf16, #tpu.memory_space<vmem>>, vector<16x256xbf16>,
    %c240_i32 = arith.constant 240 : i32
    %317 = tpu.dynamic_rotate %108 by %c240_i32 dim 1 : vector<16x256xf32>, i32 -> vector<16x256xf32>
    %318 = vector.broadcast %263 : vector<1x256xf32> to vector<16x256xf32>
    %319 = arith.mulf %317, %318 : vector<16x256xf32>
    %320 = arith.truncf %319 : vector<16x256xf32> to vector<16x256xbf16>
    %c112 = arith.constant 112 : index
    %c0_121 = arith.constant 0 : index
    %321 = vector.load %arg17[%c112, %c0_121] : memref<576x256xbf16, #tpu.memory_space<vmem>>, vector<16x256xbf16>
    tpu.vector_store %arg17[%c112, %c0_121], %320 {strides = array<i32>} : memref<576x256xbf16, #tpu.memory_space<vmem>>, vector<16x256xbf16>,
    %c239_i32 = arith.constant 239 : i32
    %322 = tpu.dynamic_rotate %108 by %c239_i32 dim 1 : vector<16x256xf32>, i32 -> vector<16x256xf32>
    %323 = vector.broadcast %284 : vector<1x256xf32> to vector<16x256xf32>
    %324 = arith.mulf %322, %323 : vector<16x256xf32>
    %325 = arith.truncf %324 : vector<16x256xf32> to vector<16x256xbf16>
    %c128 = arith.constant 128 : index
    %c0_122 = arith.constant 0 : index
    %326 = vector.load %arg17[%c128, %c0_122] : memref<576x256xbf16, #tpu.memory_space<vmem>>, vector<16x256xbf16>
    tpu.vector_store %arg17[%c128, %c0_122], %325 {strides = array<i32>} : memref<576x256xbf16, #tpu.memory_space<vmem>>, vector<16x256xbf16>,
    %c0_123 = arith.constant 0 : index
    %c0_124 = arith.constant 0 : index
    %327 = vector.load %arg8[%c0_123, %c0_124] : memref<64x144xbf16, #tpu.memory_space<vmem>>, vector<64x144xbf16>
    %c0_125 = arith.constant 0 : index
    %c0_126 = arith.constant 0 : index
    %328 = vector.load %arg17[%c0_125, %c0_126] : memref<576x256xbf16, #tpu.memory_space<vmem>>, vector<144x256xbf16>
    %cst_127 = arith.constant dense<0.000000e+00> : vector<64x256xf32>
    %329 = tpu.matmul %327, %328, %cst_127 {dimension_numbers = #tpu.dot_dimension_numbers<[1], [0], [0], [1], [0, 0, 1, 1], [], []>} : vector<64x144xbf16>, vector<144x256xbf16>, vector<64x256xf32> -> vector<64x256xf32>
    %c0_128 = arith.constant 0 : index
    %c0_129 = arith.constant 0 : index
    %330 = vector.load %arg9[%c0_128, %c0_129] : memref<64x1xf32, #tpu.memory_space<vmem>>, vector<64x1xf32>
    %331 = vector.broadcast %330 : vector<64x1xf32> to vector<64x256xf32>
    %332 = arith.addf %329, %331 : vector<64x256xf32>
    %cst_130 = arith.constant 0.000000e+00 : f32
    %333 = vector.broadcast %cst_130 : f32 to vector<64x256xf32>
    %334 = arith.maximumf %332, %333 : vector<64x256xf32>
    %c17_i32_131 = arith.constant 17 : i32
    %335 = tpu.dynamic_rotate %334 by %c17_i32_131 dim 1 : vector<64x256xf32>, i32 -> vector<64x256xf32>
    %336 = vector.broadcast %137 : vector<1x256xf32> to vector<64x256xf32>
    %337 = arith.mulf %335, %336 : vector<64x256xf32>
    %338 = arith.truncf %337 : vector<64x256xf32> to vector<64x256xbf16>
    %c0_132 = arith.constant 0 : index
    %c0_133 = arith.constant 0 : index
    %339 = vector.load %arg17[%c0_132, %c0_133] : memref<576x256xbf16, #tpu.memory_space<vmem>>, vector<64x256xbf16>
    tpu.vector_store %arg17[%c0_132, %c0_133], %338 {strides = array<i32>} : memref<576x256xbf16, #tpu.memory_space<vmem>>, vector<64x256xbf16>,
    %c16_i32_134 = arith.constant 16 : i32
    %340 = tpu.dynamic_rotate %334 by %c16_i32_134 dim 1 : vector<64x256xf32>, i32 -> vector<64x256xf32>
    %341 = vector.broadcast %158 : vector<1x256xf32> to vector<64x256xf32>
    %342 = arith.mulf %340, %341 : vector<64x256xf32>
    %343 = arith.truncf %342 : vector<64x256xf32> to vector<64x256xbf16>
    %c64_135 = arith.constant 64 : index
    %c0_136 = arith.constant 0 : index
    %344 = vector.load %arg17[%c64_135, %c0_136] : memref<576x256xbf16, #tpu.memory_space<vmem>>, vector<64x256xbf16>
    tpu.vector_store %arg17[%c64_135, %c0_136], %343 {strides = array<i32>} : memref<576x256xbf16, #tpu.memory_space<vmem>>, vector<64x256xbf16>,
    %c15_i32_137 = arith.constant 15 : i32
    %345 = tpu.dynamic_rotate %334 by %c15_i32_137 dim 1 : vector<64x256xf32>, i32 -> vector<64x256xf32>
    %346 = vector.broadcast %179 : vector<1x256xf32> to vector<64x256xf32>
    %347 = arith.mulf %345, %346 : vector<64x256xf32>
    %348 = arith.truncf %347 : vector<64x256xf32> to vector<64x256xbf16>
    %c128_138 = arith.constant 128 : index
    %c0_139 = arith.constant 0 : index
    %349 = vector.load %arg17[%c128_138, %c0_139] : memref<576x256xbf16, #tpu.memory_space<vmem>>, vector<64x256xbf16>
    tpu.vector_store %arg17[%c128_138, %c0_139], %348 {strides = array<i32>} : memref<576x256xbf16, #tpu.memory_space<vmem>>, vector<64x256xbf16>,
    %c1_i32_140 = arith.constant 1 : i32
    %350 = tpu.dynamic_rotate %334 by %c1_i32_140 dim 1 : vector<64x256xf32>, i32 -> vector<64x256xf32>
    %351 = vector.broadcast %200 : vector<1x256xf32> to vector<64x256xf32>
    %352 = arith.mulf %350, %351 : vector<64x256xf32>
    %353 = arith.truncf %352 : vector<64x256xf32> to vector<64x256xbf16>
    %c192 = arith.constant 192 : index
    %c0_141 = arith.constant 0 : index
    %354 = vector.load %arg17[%c192, %c0_141] : memref<576x256xbf16, #tpu.memory_space<vmem>>, vector<64x256xbf16>
    tpu.vector_store %arg17[%c192, %c0_141], %353 {strides = array<i32>} : memref<576x256xbf16, #tpu.memory_space<vmem>>, vector<64x256xbf16>,
    %355 = arith.truncf %334 : vector<64x256xf32> to vector<64x256xbf16>
    %c256 = arith.constant 256 : index
    %c0_142 = arith.constant 0 : index
    %356 = vector.load %arg17[%c256, %c0_142] : memref<576x256xbf16, #tpu.memory_space<vmem>>, vector<64x256xbf16>
    tpu.vector_store %arg17[%c256, %c0_142], %355 {strides = array<i32>} : memref<576x256xbf16, #tpu.memory_space<vmem>>, vector<64x256xbf16>,
    %c255_i32_143 = arith.constant 255 : i32
    %357 = tpu.dynamic_rotate %334 by %c255_i32_143 dim 1 : vector<64x256xf32>, i32 -> vector<64x256xf32>
    %358 = vector.broadcast %221 : vector<1x256xf32> to vector<64x256xf32>
    %359 = arith.mulf %357, %358 : vector<64x256xf32>
    %360 = arith.truncf %359 : vector<64x256xf32> to vector<64x256xbf16>
    %c320 = arith.constant 320 : index
    %c0_144 = arith.constant 0 : index
    %361 = vector.load %arg17[%c320, %c0_144] : memref<576x256xbf16, #tpu.memory_space<vmem>>, vector<64x256xbf16>
    tpu.vector_store %arg17[%c320, %c0_144], %360 {strides = array<i32>} : memref<576x256xbf16, #tpu.memory_space<vmem>>, vector<64x256xbf16>,
    %c241_i32_145 = arith.constant 241 : i32
    %362 = tpu.dynamic_rotate %334 by %c241_i32_145 dim 1 : vector<64x256xf32>, i32 -> vector<64x256xf32>
    %363 = vector.broadcast %242 : vector<1x256xf32> to vector<64x256xf32>
    %364 = arith.mulf %362, %363 : vector<64x256xf32>
    %365 = arith.truncf %364 : vector<64x256xf32> to vector<64x256xbf16>
    %c384 = arith.constant 384 : index
    %c0_146 = arith.constant 0 : index
    %366 = vector.load %arg17[%c384, %c0_146] : memref<576x256xbf16, #tpu.memory_space<vmem>>, vector<64x256xbf16>
    tpu.vector_store %arg17[%c384, %c0_146], %365 {strides = array<i32>} : memref<576x256xbf16, #tpu.memory_space<vmem>>, vector<64x256xbf16>,
    %c240_i32_147 = arith.constant 240 : i32
    %367 = tpu.dynamic_rotate %334 by %c240_i32_147 dim 1 : vector<64x256xf32>, i32 -> vector<64x256xf32>
    %368 = vector.broadcast %263 : vector<1x256xf32> to vector<64x256xf32>
    %369 = arith.mulf %367, %368 : vector<64x256xf32>
    %370 = arith.truncf %369 : vector<64x256xf32> to vector<64x256xbf16>
    %c448 = arith.constant 448 : index
    %c0_148 = arith.constant 0 : index
    %371 = vector.load %arg17[%c448, %c0_148] : memref<576x256xbf16, #tpu.memory_space<vmem>>, vector<64x256xbf16>
    tpu.vector_store %arg17[%c448, %c0_148], %370 {strides = array<i32>} : memref<576x256xbf16, #tpu.memory_space<vmem>>, vector<64x256xbf16>,
    %c239_i32_149 = arith.constant 239 : i32
    %372 = tpu.dynamic_rotate %334 by %c239_i32_149 dim 1 : vector<64x256xf32>, i32 -> vector<64x256xf32>
    %373 = vector.broadcast %284 : vector<1x256xf32> to vector<64x256xf32>
    %374 = arith.mulf %372, %373 : vector<64x256xf32>
    %375 = arith.truncf %374 : vector<64x256xf32> to vector<64x256xbf16>
    %c512 = arith.constant 512 : index
    %c0_150 = arith.constant 0 : index
    %376 = vector.load %arg17[%c512, %c0_150] : memref<576x256xbf16, #tpu.memory_space<vmem>>, vector<64x256xbf16>
    tpu.vector_store %arg17[%c512, %c0_150], %375 {strides = array<i32>} : memref<576x256xbf16, #tpu.memory_space<vmem>>, vector<64x256xbf16>,
    %c0_151 = arith.constant 0 : index
    %c0_152 = arith.constant 0 : index
    %377 = vector.load %arg10[%c0_151, %c0_152] : memref<64x576xbf16, #tpu.memory_space<vmem>>, vector<64x576xbf16>
    %c0_153 = arith.constant 0 : index
    %c0_154 = arith.constant 0 : index
    %378 = vector.load %arg17[%c0_153, %c0_154] : memref<576x256xbf16, #tpu.memory_space<vmem>>, vector<576x256xbf16>
    %cst_155 = arith.constant dense<0.000000e+00> : vector<64x256xf32>
    %379 = tpu.matmul %377, %378, %cst_155 {dimension_numbers = #tpu.dot_dimension_numbers<[1], [0], [0], [1], [0, 0, 1, 1], [], []>} : vector<64x576xbf16>, vector<576x256xbf16>, vector<64x256xf32> -> vector<64x256xf32>
    %c0_156 = arith.constant 0 : index
    %c0_157 = arith.constant 0 : index
    %380 = vector.load %arg11[%c0_156, %c0_157] : memref<64x1xf32, #tpu.memory_space<vmem>>, vector<64x1xf32>
    %381 = vector.broadcast %380 : vector<64x1xf32> to vector<64x256xf32>
    %382 = arith.addf %379, %381 : vector<64x256xf32>
    %cst_158 = arith.constant 0.000000e+00 : f32
    %383 = vector.broadcast %cst_158 : f32 to vector<64x256xf32>
    %384 = arith.maximumf %382, %383 : vector<64x256xf32>
    %c17_i32_159 = arith.constant 17 : i32
    %385 = tpu.dynamic_rotate %384 by %c17_i32_159 dim 1 : vector<64x256xf32>, i32 -> vector<64x256xf32>
    %386 = vector.broadcast %137 : vector<1x256xf32> to vector<64x256xf32>
    %387 = arith.mulf %385, %386 : vector<64x256xf32>
    %388 = arith.truncf %387 : vector<64x256xf32> to vector<64x256xbf16>
    %c0_160 = arith.constant 0 : index
    %c0_161 = arith.constant 0 : index
    %389 = vector.load %arg17[%c0_160, %c0_161] : memref<576x256xbf16, #tpu.memory_space<vmem>>, vector<64x256xbf16>
    tpu.vector_store %arg17[%c0_160, %c0_161], %388 {strides = array<i32>} : memref<576x256xbf16, #tpu.memory_space<vmem>>, vector<64x256xbf16>,
    %c16_i32_162 = arith.constant 16 : i32
    %390 = tpu.dynamic_rotate %384 by %c16_i32_162 dim 1 : vector<64x256xf32>, i32 -> vector<64x256xf32>
    %391 = vector.broadcast %158 : vector<1x256xf32> to vector<64x256xf32>
    %392 = arith.mulf %390, %391 : vector<64x256xf32>
    %393 = arith.truncf %392 : vector<64x256xf32> to vector<64x256xbf16>
    %c64_163 = arith.constant 64 : index
    %c0_164 = arith.constant 0 : index
    %394 = vector.load %arg17[%c64_163, %c0_164] : memref<576x256xbf16, #tpu.memory_space<vmem>>, vector<64x256xbf16>
    tpu.vector_store %arg17[%c64_163, %c0_164], %393 {strides = array<i32>} : memref<576x256xbf16, #tpu.memory_space<vmem>>, vector<64x256xbf16>,
    %c15_i32_165 = arith.constant 15 : i32
    %395 = tpu.dynamic_rotate %384 by %c15_i32_165 dim 1 : vector<64x256xf32>, i32 -> vector<64x256xf32>
    %396 = vector.broadcast %179 : vector<1x256xf32> to vector<64x256xf32>
    %397 = arith.mulf %395, %396 : vector<64x256xf32>
    %398 = arith.truncf %397 : vector<64x256xf32> to vector<64x256xbf16>
    %c128_166 = arith.constant 128 : index
    %c0_167 = arith.constant 0 : index
    %399 = vector.load %arg17[%c128_166, %c0_167] : memref<576x256xbf16, #tpu.memory_space<vmem>>, vector<64x256xbf16>
    tpu.vector_store %arg17[%c128_166, %c0_167], %398 {strides = array<i32>} : memref<576x256xbf16, #tpu.memory_space<vmem>>, vector<64x256xbf16>,
    %c1_i32_168 = arith.constant 1 : i32
    %400 = tpu.dynamic_rotate %384 by %c1_i32_168 dim 1 : vector<64x256xf32>, i32 -> vector<64x256xf32>
    %401 = vector.broadcast %200 : vector<1x256xf32> to vector<64x256xf32>
    %402 = arith.mulf %400, %401 : vector<64x256xf32>
    %403 = arith.truncf %402 : vector<64x256xf32> to vector<64x256xbf16>
    %c192_169 = arith.constant 192 : index
    %c0_170 = arith.constant 0 : index
    %404 = vector.load %arg17[%c192_169, %c0_170] : memref<576x256xbf16, #tpu.memory_space<vmem>>, vector<64x256xbf16>
    tpu.vector_store %arg17[%c192_169, %c0_170], %403 {strides = array<i32>} : memref<576x256xbf16, #tpu.memory_space<vmem>>, vector<64x256xbf16>,
    %405 = arith.truncf %384 : vector<64x256xf32> to vector<64x256xbf16>
    %c256_171 = arith.constant 256 : index
    %c0_172 = arith.constant 0 : index
    %406 = vector.load %arg17[%c256_171, %c0_172] : memref<576x256xbf16, #tpu.memory_space<vmem>>, vector<64x256xbf16>
    tpu.vector_store %arg17[%c256_171, %c0_172], %405 {strides = array<i32>} : memref<576x256xbf16, #tpu.memory_space<vmem>>, vector<64x256xbf16>,
    %c255_i32_173 = arith.constant 255 : i32
    %407 = tpu.dynamic_rotate %384 by %c255_i32_173 dim 1 : vector<64x256xf32>, i32 -> vector<64x256xf32>
    %408 = vector.broadcast %221 : vector<1x256xf32> to vector<64x256xf32>
    %409 = arith.mulf %407, %408 : vector<64x256xf32>
    %410 = arith.truncf %409 : vector<64x256xf32> to vector<64x256xbf16>
    %c320_174 = arith.constant 320 : index
    %c0_175 = arith.constant 0 : index
    %411 = vector.load %arg17[%c320_174, %c0_175] : memref<576x256xbf16, #tpu.memory_space<vmem>>, vector<64x256xbf16>
    tpu.vector_store %arg17[%c320_174, %c0_175], %410 {strides = array<i32>} : memref<576x256xbf16, #tpu.memory_space<vmem>>, vector<64x256xbf16>,
    %c241_i32_176 = arith.constant 241 : i32
    %412 = tpu.dynamic_rotate %384 by %c241_i32_176 dim 1 : vector<64x256xf32>, i32 -> vector<64x256xf32>
    %413 = vector.broadcast %242 : vector<1x256xf32> to vector<64x256xf32>
    %414 = arith.mulf %412, %413 : vector<64x256xf32>
    %415 = arith.truncf %414 : vector<64x256xf32> to vector<64x256xbf16>
    %c384_177 = arith.constant 384 : index
    %c0_178 = arith.constant 0 : index
    %416 = vector.load %arg17[%c384_177, %c0_178] : memref<576x256xbf16, #tpu.memory_space<vmem>>, vector<64x256xbf16>
    tpu.vector_store %arg17[%c384_177, %c0_178], %415 {strides = array<i32>} : memref<576x256xbf16, #tpu.memory_space<vmem>>, vector<64x256xbf16>,
    %c240_i32_179 = arith.constant 240 : i32
    %417 = tpu.dynamic_rotate %384 by %c240_i32_179 dim 1 : vector<64x256xf32>, i32 -> vector<64x256xf32>
    %418 = vector.broadcast %263 : vector<1x256xf32> to vector<64x256xf32>
    %419 = arith.mulf %417, %418 : vector<64x256xf32>
    %420 = arith.truncf %419 : vector<64x256xf32> to vector<64x256xbf16>
    %c448_180 = arith.constant 448 : index
    %c0_181 = arith.constant 0 : index
    %421 = vector.load %arg17[%c448_180, %c0_181] : memref<576x256xbf16, #tpu.memory_space<vmem>>, vector<64x256xbf16>
    tpu.vector_store %arg17[%c448_180, %c0_181], %420 {strides = array<i32>} : memref<576x256xbf16, #tpu.memory_space<vmem>>, vector<64x256xbf16>,
    %c239_i32_182 = arith.constant 239 : i32
    %422 = tpu.dynamic_rotate %384 by %c239_i32_182 dim 1 : vector<64x256xf32>, i32 -> vector<64x256xf32>
    %423 = vector.broadcast %284 : vector<1x256xf32> to vector<64x256xf32>
    %424 = arith.mulf %422, %423 : vector<64x256xf32>
    %425 = arith.truncf %424 : vector<64x256xf32> to vector<64x256xbf16>
    %c512_183 = arith.constant 512 : index
    %c0_184 = arith.constant 0 : index
    %426 = vector.load %arg17[%c512_183, %c0_184] : memref<576x256xbf16, #tpu.memory_space<vmem>>, vector<64x256xbf16>
    tpu.vector_store %arg17[%c512_183, %c0_184], %425 {strides = array<i32>} : memref<576x256xbf16, #tpu.memory_space<vmem>>, vector<64x256xbf16>,
    %c0_185 = arith.constant 0 : index
    %c0_186 = arith.constant 0 : index
    %427 = vector.load %arg12[%c0_185, %c0_186] : memref<3x576xbf16, #tpu.memory_space<vmem>>, vector<3x576xbf16>
    %c0_187 = arith.constant 0 : index
    %c0_188 = arith.constant 0 : index
    %428 = vector.load %arg17[%c0_187, %c0_188] : memref<576x256xbf16, #tpu.memory_space<vmem>>, vector<576x256xbf16>
    %cst_189 = arith.constant dense<0.000000e+00> : vector<3x256xf32>
    %429 = tpu.matmul %427, %428, %cst_189 {dimension_numbers = #tpu.dot_dimension_numbers<[1], [0], [0], [1], [0, 0, 1, 1], [], []>} : vector<3x576xbf16>, vector<576x256xbf16>, vector<3x256xf32> -> vector<3x256xf32>
    %c0_190 = arith.constant 0 : index
    %c0_191 = arith.constant 0 : index
    %430 = vector.load %arg13[%c0_190, %c0_191] : memref<3x1xf32, #tpu.memory_space<vmem>>, vector<3x1xf32>
    %431 = vector.broadcast %430 : vector<3x1xf32> to vector<3x256xf32>
    %432 = arith.addf %429, %431 : vector<3x256xf32>
    %433 = math.tanh %432 : vector<3x256xf32>
    %c0_192 = arith.constant 0 : index
    %c0_193 = arith.constant 0 : index
    %c0_194 = arith.constant 0 : index
    %434 = vector.load %arg15[%c0_192, %c0_193, %c0_194] : memref<1x3x256xf32, #tpu.memory_space<vmem>>, vector<1x3x256xf32>
    %435 = vector.shape_cast %434 : vector<1x3x256xf32> to vector<3x256xf32>
    %436 = vector.shape_cast %433 : vector<3x256xf32> to vector<1x3x256xf32>
    tpu.vector_store %arg15[%c0_192, %c0_193, %c0_194], %436 {strides = array<i32>} : memref<1x3x256xf32, #tpu.memory_space<vmem>>, vector<1x3x256xf32>,
    return
  }
  func.func @transform_0(%arg0: i32) -> (i32, i32, i32) {
    %c0_i32 = arith.constant 0 : i32
    %c0_i32_0 = arith.constant 0 : i32
    %c0_i32_1 = arith.constant 0 : i32
    return %arg0, %c0_i32, %c0_i32_0 : i32, i32, i32
  }
  func.func @transform_1(%arg0: i32) -> (i32, i32, i32) {
    %c0_i32 = arith.constant 0 : i32
    %c0_i32_0 = arith.constant 0 : i32
    %c0_i32_1 = arith.constant 0 : i32
    return %arg0, %c0_i32, %c0_i32_0 : i32, i32, i32
  }
  func.func @transform_2(%arg0: i32) -> (i32, i32, i32) {
    %c0_i32 = arith.constant 0 : i32
    %c0_i32_0 = arith.constant 0 : i32
    %c0_i32_1 = arith.constant 0 : i32
    return %arg0, %c0_i32, %c0_i32_0 : i32, i32, i32
  }
  func.func @transform_3(%arg0: i32) -> (i32, i32, i32) {
    %c0_i32 = arith.constant 0 : i32
    %c0_i32_0 = arith.constant 0 : i32
    %c0_i32_1 = arith.constant 0 : i32
    return %arg0, %c0_i32, %c0_i32_0 : i32, i32, i32
  }
  func.func @transform_4(%arg0: i32) -> (i32, i32) {
    %c0_i32 = arith.constant 0 : i32
    %c0_i32_0 = arith.constant 0 : i32
    %c0_i32_1 = arith.constant 0 : i32
    return %c0_i32, %c0_i32_0 : i32, i32
  }
  func.func @transform_5(%arg0: i32) -> (i32, i32) {
    %c0_i32 = arith.constant 0 : i32
    %c0_i32_0 = arith.constant 0 : i32
    %c0_i32_1 = arith.constant 0 : i32
    return %c0_i32, %c0_i32_0 : i32, i32
  }
  func.func @transform_6(%arg0: i32) -> (i32, i32) {
    %c0_i32 = arith.constant 0 : i32
    %c0_i32_0 = arith.constant 0 : i32
    %c0_i32_1 = arith.constant 0 : i32
    return %c0_i32, %c0_i32_0 : i32, i32
  }
  func.func @transform_7(%arg0: i32) -> (i32, i32) {
    %c0_i32 = arith.constant 0 : i32
    %c0_i32_0 = arith.constant 0 : i32
    %c0_i32_1 = arith.constant 0 : i32
    return %c0_i32, %c0_i32_0 : i32, i32
  }
  func.func @transform_8(%arg0: i32) -> (i32, i32) {
    %c0_i32 = arith.constant 0 : i32
    %c0_i32_0 = arith.constant 0 : i32
    %c0_i32_1 = arith.constant 0 : i32
    return %c0_i32, %c0_i32_0 : i32, i32
  }
  func.func @transform_9(%arg0: i32) -> (i32, i32) {
    %c0_i32 = arith.constant 0 : i32
    %c0_i32_0 = arith.constant 0 : i32
    %c0_i32_1 = arith.constant 0 : i32
    return %c0_i32, %c0_i32_0 : i32, i32
  }
  func.func @transform_10(%arg0: i32) -> (i32, i32) {
    %c0_i32 = arith.constant 0 : i32
    %c0_i32_0 = arith.constant 0 : i32
    %c0_i32_1 = arith.constant 0 : i32
    return %c0_i32, %c0_i32_0 : i32, i32
  }
  func.func @transform_11(%arg0: i32) -> (i32, i32) {
    %c0_i32 = arith.constant 0 : i32
    %c0_i32_0 = arith.constant 0 : i32
    %c0_i32_1 = arith.constant 0 : i32
    return %c0_i32, %c0_i32_0 : i32, i32
  }
  func.func @transform_12(%arg0: i32) -> (i32, i32) {
    %c0_i32 = arith.constant 0 : i32
    %c0_i32_0 = arith.constant 0 : i32
    %c0_i32_1 = arith.constant 0 : i32
    return %c0_i32, %c0_i32_0 : i32, i32
  }
  func.func @transform_13(%arg0: i32) -> (i32, i32, i32) {
    %c0_i32 = arith.constant 0 : i32
    %c0_i32_0 = arith.constant 0 : i32
    %c0_i32_1 = arith.constant 0 : i32
    return %arg0, %c0_i32, %c0_i32_0 : i32, i32, i32
  }
  func.func @transform_14(%arg0: i32) -> (i32, i32, i32) {
    %c0_i32 = arith.constant 0 : i32
    %c0_i32_0 = arith.constant 0 : i32
    %c0_i32_1 = arith.constant 0 : i32
    return %arg0, %c0_i32, %c0_i32_0 : i32, i32, i32
  }
}

</mosaic_0001>

<llo_original>
// kernel: lp_generator_forward.1
$region0: #{lp_generator_forward.1}
  #allocation0 [shape = 'u32[]', space=smem, size = 0x4, offset = 0x4, fixed_abs, tag = 'smem constant byte address 0x4 - core index']
  #allocation1 [shape = 'u32[144,128]{1,0:T(1,128)}', space=vmem, size = 0x12000, scoped, tag = 'internal scratch']
  #allocation2 [shape = 'f32[16,256]{1,0:T(8,128)}', space=vmem, size = 0x4000, scoped, tag = 'scratch operand']
  #allocation3 [shape = 'bf16[576,256]{1,0:T(16,128)(2,1)}', space=vmem, size = 0x48000, scoped, tag = 'scratch operand']
  %s0 = inlined_call_operand.vmem [shape: f32[2,2,256], index: 0, kind: input, shape index: {}]
  %s1 = inlined_call_operand.vmem [shape: f32[2,3,256], index: 1, kind: input, shape index: {}]
  %s2 = inlined_call_operand.vmem [shape: f32[2,3,1], index: 2, kind: input, shape index: {}]
  %s3 = inlined_call_operand.vmem [shape: f32[2,1,384], index: 3, kind: input, shape index: {}]
  %s4 = inlined_call_operand.vmem [shape: bf16[128,32], index: 4, kind: input, shape index: {}]
  %s5 = inlined_call_operand.vmem [shape: f32[6,384], index: 5, kind: input, shape index: {}]
  %s6 = inlined_call_operand.vmem [shape: f32[6,1], index: 6, kind: input, shape index: {}]
  %s7 = inlined_call_operand.vmem [shape: bf16[64,144], index: 7, kind: input, shape index: {}]
  %s8 = inlined_call_operand.vmem [shape: f32[64,1], index: 8, kind: input, shape index: {}]
  %s9 = inlined_call_operand.vmem [shape: bf16[64,576], index: 9, kind: input, shape index: {}]
  %s10 = inlined_call_operand.vmem [shape: f32[64,1], index: 10, kind: input, shape index: {}]
  %s11 = inlined_call_operand.vmem [shape: bf16[3,576], index: 11, kind: input, shape index: {}]
  %s12 = inlined_call_operand.vmem [shape: f32[3,1], index: 12, kind: input, shape index: {}]
  %s13 = inlined_call_operand.vmem [shape: f32[2,16,256], index: 13, kind: output, shape index: {0}]
  %s14 = inlined_call_operand.vmem [shape: f32[2,3,256], index: 14, kind: output, shape index: {1}]
  %15 = xla_tuple %s13, %s14
  %s16 = sld [smem:[#allocation0]]
  $region93: #{lp_generator_forward.1} parent=0
    _
  %s18 = ssub.s32 1, %s16
  %s19 = scalar_select 0, %s18, %s16
  loop: start=0, step=1, limit=4
  $region2: #{lp_generator_forward.1} parent=0 // loop_pre_header
    _
  $region3: #{lp_generator_forward.1} parent=0 // loop_header
    %s21 = sphi 0, %s25
    %p22 = scmp.ge.s32.totalorder %s21, 4
    %s31 = sphi 0, %s33
    %s34 = sphi 0, %s31
    %s35 = sphi 0, %s34
    %s51 = sphi 0, %s35
    %s57 = sphi 0, %s59
    %s60 = sphi 0, %s57
    %s61 = sphi 0, %s60
    %s77 = sphi 0, %s61
    %s83 = sphi 0, %s85
    %s86 = sphi 0, %s83
    %s87 = sphi 0, %s86
    %s103 = sphi 0, %s87
    %s109 = sphi 0, %s111
    %s112 = sphi 0, %s109
    %s113 = sphi 0, %s112
    %s129 = sphi 0, %s113
    %s133 = sphi 0, %s133
    %s135 = sphi 0, %s133
    %s136 = sphi 0, %s135
    %s150 = sphi 0, %s136
    %s154 = sphi 0, %s154
    %s156 = sphi 0, %s154
    %s157 = sphi 0, %s156
    %s171 = sphi 0, %s157
    %s175 = sphi 0, %s175
    %s177 = sphi 0, %s175
    %s178 = sphi 0, %s177
    %s192 = sphi 0, %s178
    %s196 = sphi 0, %s196
    %s198 = sphi 0, %s196
    %s199 = sphi 0, %s198
    %s213 = sphi 0, %s199
    %s217 = sphi 0, %s217
    %s219 = sphi 0, %s217
    %s220 = sphi 0, %s219
    %s234 = sphi 0, %s220
    %s238 = sphi 0, %s238
    %s240 = sphi 0, %s238
    %s241 = sphi 0, %s240
    %s255 = sphi 0, %s241
    %s259 = sphi 0, %s259
    %s261 = sphi 0, %s259
    %s262 = sphi 0, %s261
    %s276 = sphi 0, %s262
    %s280 = sphi 0, %s280
    %s282 = sphi 0, %s280
    %s283 = sphi 0, %s282
    %s297 = sphi 0, %s283
    %s301 = sphi 0, %s301
    %s303 = sphi 0, %s301
    %s304 = sphi 0, %s303
    %s318 = sphi 0, %s304
    %s324 = sphi 0, %s326
    %s327 = sphi 0, %s324
    %s328 = sphi 0, %s327
    %s344 = sphi 0, %s328
    %s350 = sphi 0, %s352
    %s353 = sphi 0, %s350
    %s354 = sphi 0, %s353
    %s370 = sphi 0, %s354
  $region4: #{lp_generator_forward.1} parent=0 // loop_header_branch
    %24 = sbr.rel (%p22) target = $region8
  $region5: #{lp_generator_forward.1} parent=0 // loop_body
    %s26 = ssub.s32 %s21, 1
    %s27 = ssub.s32 %s21, 2
    %s28 = sadd.s32 %s21, 1
    %s29 = ssub.s32 %s21, %s28
    %p30 = scmp.eq.s32.totalorder %s29, 0
    %s32 = sadd.s32 %s31, 1
    %s33 = scalar_select %p30, %s31, %s32
    %p36 = pneg %p30
    %p37 = scmp.eq.s32.totalorder %s21, 1
    %p38 = por %p36, %p37
    %p39 = scmp.ne.s32.totalorder %s31, %s34
    %p40 = scmp.eq.s32.totalorder %s21, 0
    %p41 = por %p39, %p40
    %p42 = scmp.ne.s32.totalorder %s31, %s34
    %p43 = scmp.eq.s32.totalorder %s26, 1
    %p44 = por %p42, %p43
    %p45 = scmp.ne.s32.totalorder %s34, %s35
    %p46 = scmp.eq.s32.totalorder %s26, 0
    %p47 = por %p45, %p46
    %p48 = scmp.ne.s32.totalorder %s34, %s35
    %p49 = scmp.eq.s32.totalorder %s27, 1
    %p50 = por %p48, %p49
    %p52 = scmp.ne.s32.totalorder %s35, %s51
    %p53 = scmp.eq.s32.totalorder %s27, 0
    %p54 = por %p52, %p53
    %s55 = ssub.s32 %s21, %s28
    %p56 = scmp.eq.s32.totalorder %s55, 0
    %s58 = sadd.s32 %s57, 1
    %s59 = scalar_select %p56, %s57, %s58
    %p62 = pneg %p56
    %p63 = scmp.eq.s32.totalorder %s21, 1
    %p64 = por %p62, %p63
    %p65 = scmp.ne.s32.totalorder %s57, %s60
    %p66 = scmp.eq.s32.totalorder %s21, 0
    %p67 = por %p65, %p66
    %p68 = scmp.ne.s32.totalorder %s57, %s60
    %p69 = scmp.eq.s32.totalorder %s26, 1
    %p70 = por %p68, %p69
    %p71 = scmp.ne.s32.totalorder %s60, %s61
    %p72 = scmp.eq.s32.totalorder %s26, 0
    %p73 = por %p71, %p72
    %p74 = scmp.ne.s32.totalorder %s60, %s61
    %p75 = scmp.eq.s32.totalorder %s27, 1
    %p76 = por %p74, %p75
    %p78 = scmp.ne.s32.totalorder %s61, %s77
    %p79 = scmp.eq.s32.totalorder %s27, 0
    %p80 = por %p78, %p79
    %s81 = ssub.s32 %s21, %s28
    %p82 = scmp.eq.s32.totalorder %s81, 0
    %s84 = sadd.s32 %s83, 1
    %s85 = scalar_select %p82, %s83, %s84
    %p88 = pneg %p82
    %p89 = scmp.eq.s32.totalorder %s21, 1
    %p90 = por %p88, %p89
    %p91 = scmp.ne.s32.totalorder %s83, %s86
    %p92 = scmp.eq.s32.totalorder %s21, 0
    %p93 = por %p91, %p92
    %p94 = scmp.ne.s32.totalorder %s83, %s86
    %p95 = scmp.eq.s32.totalorder %s26, 1
    %p96 = por %p94, %p95
    %p97 = scmp.ne.s32.totalorder %s86, %s87
    %p98 = scmp.eq.s32.totalorder %s26, 0
    %p99 = por %p97, %p98
    %p100 = scmp.ne.s32.totalorder %s86, %s87
    %p101 = scmp.eq.s32.totalorder %s27, 1
    %p102 = por %p100, %p101
    %p104 = scmp.ne.s32.totalorder %s87, %s103
    %p105 = scmp.eq.s32.totalorder %s27, 0
    %p106 = por %p104, %p105
    %s107 = ssub.s32 %s21, %s28
    %p108 = scmp.eq.s32.totalorder %s107, 0
    %s110 = sadd.s32 %s109, 1
    %s111 = scalar_select %p108, %s109, %s110
    %p114 = pneg %p108
    %p115 = scmp.eq.s32.totalorder %s21, 1
    %p116 = por %p114, %p115
    %p117 = scmp.ne.s32.totalorder %s109, %s112
    %p118 = scmp.eq.s32.totalorder %s21, 0
    %p119 = por %p117, %p118
    %p120 = scmp.ne.s32.totalorder %s109, %s112
    %p121 = scmp.eq.s32.totalorder %s26, 1
    %p122 = por %p120, %p121
    %p123 = scmp.ne.s32.totalorder %s112, %s113
    %p124 = scmp.eq.s32.totalorder %s26, 0
    %p125 = por %p123, %p124
    %p126 = scmp.ne.s32.totalorder %s112, %s113
    %p127 = scmp.eq.s32.totalorder %s27, 1
    %p128 = por %p126, %p127
    %p130 = scmp.ne.s32.totalorder %s113, %s129
    %p131 = scmp.eq.s32.totalorder %s27, 0
    %p132 = por %p130, %p131
    %s134 = sadd.s32 %s133, 1
    %p137 = scmp.eq.s32.totalorder %s21, 1
    %p138 = scmp.ne.s32.totalorder %s133, %s135
    %p139 = scmp.eq.s32.totalorder %s21, 0
    %p140 = por %p138, %p139
    %p141 = scmp.ne.s32.totalorder %s133, %s135
    %p142 = scmp.eq.s32.totalorder %s26, 1
    %p143 = por %p141, %p142
    %p144 = scmp.ne.s32.totalorder %s135, %s136
    %p145 = scmp.eq.s32.totalorder %s26, 0
    %p146 = por %p144, %p145
    %p147 = scmp.ne.s32.totalorder %s135, %s136
    %p148 = scmp.eq.s32.totalorder %s27, 1
    %p149 = por %p147, %p148
    %p151 = scmp.ne.s32.totalorder %s136, %s150
    %p152 = scmp.eq.s32.totalorder %s27, 0
    %p153 = por %p151, %p152
    %s155 = sadd.s32 %s154, 1
    %p158 = scmp.eq.s32.totalorder %s21, 1
    %p159 = scmp.ne.s32.totalorder %s154, %s156
    %p160 = scmp.eq.s32.totalorder %s21, 0
    %p161 = por %p159, %p160
    %p162 = scmp.ne.s32.totalorder %s154, %s156
    %p163 = scmp.eq.s32.totalorder %s26, 1
    %p164 = por %p162, %p163
    %p165 = scmp.ne.s32.totalorder %s156, %s157
    %p166 = scmp.eq.s32.totalorder %s26, 0
    %p167 = por %p165, %p166
    %p168 = scmp.ne.s32.totalorder %s156, %s157
    %p169 = scmp.eq.s32.totalorder %s27, 1
    %p170 = por %p168, %p169
    %p172 = scmp.ne.s32.totalorder %s157, %s171
    %p173 = scmp.eq.s32.totalorder %s27, 0
    %p174 = por %p172, %p173
    %s176 = sadd.s32 %s175, 1
    %p179 = scmp.eq.s32.totalorder %s21, 1
    %p180 = scmp.ne.s32.totalorder %s175, %s177
    %p181 = scmp.eq.s32.totalorder %s21, 0
    %p182 = por %p180, %p181
    %p183 = scmp.ne.s32.totalorder %s175, %s177
    %p184 = scmp.eq.s32.totalorder %s26, 1
    %p185 = por %p183, %p184
    %p186 = scmp.ne.s32.totalorder %s177, %s178
    %p187 = scmp.eq.s32.totalorder %s26, 0
    %p188 = por %p186, %p187
    %p189 = scmp.ne.s32.totalorder %s177, %s178
    %p190 = scmp.eq.s32.totalorder %s27, 1
    %p191 = por %p189, %p190
    %p193 = scmp.ne.s32.totalorder %s178, %s192
    %p194 = scmp.eq.s32.totalorder %s27, 0
    %p195 = por %p193, %p194
    %s197 = sadd.s32 %s196, 1
    %p200 = scmp.eq.s32.totalorder %s21, 1
    %p201 = scmp.ne.s32.totalorder %s196, %s198
    %p202 = scmp.eq.s32.totalorder %s21, 0
    %p203 = por %p201, %p202
    %p204 = scmp.ne.s32.totalorder %s196, %s198
    %p205 = scmp.eq.s32.totalorder %s26, 1
    %p206 = por %p204, %p205
    %p207 = scmp.ne.s32.totalorder %s198, %s199
    %p208 = scmp.eq.s32.totalorder %s26, 0
    %p209 = por %p207, %p208
    %p210 = scmp.ne.s32.totalorder %s198, %s199
    %p211 = scmp.eq.s32.totalorder %s27, 1
    %p212 = por %p210, %p211
    %p214 = scmp.ne.s32.totalorder %s199, %s213
    %p215 = scmp.eq.s32.totalorder %s27, 0
    %p216 = por %p214, %p215
    %s218 = sadd.s32 %s217, 1
    %p221 = scmp.eq.s32.totalorder %s21, 1
    %p222 = scmp.ne.s32.totalorder %s217, %s219
    %p223 = scmp.eq.s32.totalorder %s21, 0
    %p224 = por %p222, %p223
    %p225 = scmp.ne.s32.totalorder %s217, %s219
    %p226 = scmp.eq.s32.totalorder %s26, 1
    %p227 = por %p225, %p226
    %p228 = scmp.ne.s32.totalorder %s219, %s220
    %p229 = scmp.eq.s32.totalorder %s26, 0
    %p230 = por %p228, %p229
    %p231 = scmp.ne.s32.totalorder %s219, %s220
    %p232 = scmp.eq.s32.totalorder %s27, 1
    %p233 = por %p231, %p232
    %p235 = scmp.ne.s32.totalorder %s220, %s234
    %p236 = scmp.eq.s32.totalorder %s27, 0
    %p237 = por %p235, %p236
    %s239 = sadd.s32 %s238, 1
    %p242 = scmp.eq.s32.totalorder %s21, 1
    %p243 = scmp.ne.s32.totalorder %s238, %s240
    %p244 = scmp.eq.s32.totalorder %s21, 0
    %p245 = por %p243, %p244
    %p246 = scmp.ne.s32.totalorder %s238, %s240
    %p247 = scmp.eq.s32.totalorder %s26, 1
    %p248 = por %p246, %p247
    %p249 = scmp.ne.s32.totalorder %s240, %s241
    %p250 = scmp.eq.s32.totalorder %s26, 0
    %p251 = por %p249, %p250
    %p252 = scmp.ne.s32.totalorder %s240, %s241
    %p253 = scmp.eq.s32.totalorder %s27, 1
    %p254 = por %p252, %p253
    %p256 = scmp.ne.s32.totalorder %s241, %s255
    %p257 = scmp.eq.s32.totalorder %s27, 0
    %p258 = por %p256, %p257
    %s260 = sadd.s32 %s259, 1
    %p263 = scmp.eq.s32.totalorder %s21, 1
    %p264 = scmp.ne.s32.totalorder %s259, %s261
    %p265 = scmp.eq.s32.totalorder %s21, 0
    %p266 = por %p264, %p265
    %p267 = scmp.ne.s32.totalorder %s259, %s261
    %p268 = scmp.eq.s32.totalorder %s26, 1
    %p269 = por %p267, %p268
    %p270 = scmp.ne.s32.totalorder %s261, %s262
    %p271 = scmp.eq.s32.totalorder %s26, 0
    %p272 = por %p270, %p271
    %p273 = scmp.ne.s32.totalorder %s261, %s262
    %p274 = scmp.eq.s32.totalorder %s27, 1
    %p275 = por %p273, %p274
    %p277 = scmp.ne.s32.totalorder %s262, %s276
    %p278 = scmp.eq.s32.totalorder %s27, 0
    %p279 = por %p277, %p278
    %s281 = sadd.s32 %s280, 1
    %p284 = scmp.eq.s32.totalorder %s21, 1
    %p285 = scmp.ne.s32.totalorder %s280, %s282
    %p286 = scmp.eq.s32.totalorder %s21, 0
    %p287 = por %p285, %p286
    %p288 = scmp.ne.s32.totalorder %s280, %s282
    %p289 = scmp.eq.s32.totalorder %s26, 1
    %p290 = por %p288, %p289
    %p291 = scmp.ne.s32.totalorder %s282, %s283
    %p292 = scmp.eq.s32.totalorder %s26, 0
    %p293 = por %p291, %p292
    %p294 = scmp.ne.s32.totalorder %s282, %s283
    %p295 = scmp.eq.s32.totalorder %s27, 1
    %p296 = por %p294, %p295
    %p298 = scmp.ne.s32.totalorder %s283, %s297
    %p299 = scmp.eq.s32.totalorder %s27, 0
    %p300 = por %p298, %p299
    %s302 = sadd.s32 %s301, 1
    %p305 = scmp.eq.s32.totalorder %s21, 1
    %p306 = scmp.ne.s32.totalorder %s301, %s303
    %p307 = scmp.eq.s32.totalorder %s21, 0
    %p308 = por %p306, %p307
    %p309 = scmp.ne.s32.totalorder %s301, %s303
    %p310 = scmp.eq.s32.totalorder %s26, 1
    %p311 = por %p309, %p310
    %p312 = scmp.ne.s32.totalorder %s303, %s304
    %p313 = scmp.eq.s32.totalorder %s26, 0
    %p314 = por %p312, %p313
    %p315 = scmp.ne.s32.totalorder %s303, %s304
    %p316 = scmp.eq.s32.totalorder %s27, 1
    %p317 = por %p315, %p316
    %p319 = scmp.ne.s32.totalorder %s304, %s318
    %p320 = scmp.eq.s32.totalorder %s27, 0
    %p321 = por %p319, %p320
    %s322 = ssub.s32 %s21, %s28
    %p323 = scmp.eq.s32.totalorder %s322, 0
    %s325 = sadd.s32 %s324, 1
    %s326 = scalar_select %p323, %s324, %s325
    %p329 = pneg %p323
    %p330 = scmp.eq.s32.totalorder %s21, 1
    %p331 = por %p329, %p330
    %p332 = scmp.ne.s32.totalorder %s324, %s327
    %p333 = scmp.eq.s32.totalorder %s21, 0
    %p334 = por %p332, %p333
    %p335 = scmp.ne.s32.totalorder %s324, %s327
    %p336 = scmp.eq.s32.totalorder %s26, 1
    %p337 = por %p335, %p336
    %p338 = scmp.ne.s32.totalorder %s327, %s328
    %p339 = scmp.eq.s32.totalorder %s26, 0
    %p340 = por %p338, %p339
    %p341 = scmp.ne.s32.totalorder %s327, %s328
    %p342 = scmp.eq.s32.totalorder %s27, 1
    %p343 = por %p341, %p342
    %p345 = scmp.ne.s32.totalorder %s328, %s344
    %p346 = scmp.eq.s32.totalorder %s27, 0
    %p347 = por %p345, %p346
    %s348 = ssub.s32 %s21, %s28
    %p349 = scmp.eq.s32.totalorder %s348, 0
    %s351 = sadd.s32 %s350, 1
    %s352 = scalar_select %p349, %s350, %s351
    %p355 = pneg %p349
    %p356 = scmp.eq.s32.totalorder %s21, 1
    %p357 = por %p355, %p356
    %p358 = scmp.ne.s32.totalorder %s350, %s353
    %p359 = scmp.eq.s32.totalorder %s21, 0
    %p360 = por %p358, %p359
    %p361 = scmp.ne.s32.totalorder %s350, %s353
    %p362 = scmp.eq.s32.totalorder %s26, 1
    %p363 = por %p361, %p362
    %p364 = scmp.ne.s32.totalorder %s353, %s354
    %p365 = scmp.eq.s32.totalorder %s26, 0
    %p366 = por %p364, %p365
    %p367 = scmp.ne.s32.totalorder %s353, %s354
    %p368 = scmp.eq.s32.totalorder %s27, 1
    %p369 = por %p367, %p368
    %p371 = scmp.ne.s32.totalorder %s354, %s370
    %p372 = scmp.eq.s32.totalorder %s27, 0
    %p373 = por %p371, %p372
    %p374 = scmp.le.s32.totalorder 1, %s21
    %p375 = scmp.lt.s32.totalorder %s21, 3
    %p376 = pnand %p374, %p375
    %p377 = pneg %p376
    // Predicated region
    $region9: #{lp_generator_forward.1} parent=5 // pred_check
      _
    $region10: #{lp_generator_forward.1} parent=5 // pred_check_branch
      %379 = sbr.rel (%p376) target = $region12
    $region11: #{lp_generator_forward.1} parent=5 // pred_region
      %s380 = ssub.s32 %s21, 1
      // Predicated region
      $region13: #{lp_generator_forward.1} parent=11 // pred_check
        %p381 = pneg %p146
      $region14: #{lp_generator_forward.1} parent=11 // pred_check_branch
        %383 = sbr.rel (%p381) target = $region16
      $region15: #{lp_generator_forward.1} parent=11 // pred_region
        _
      $region16: #{lp_generator_forward.1} parent=11 // pred_fallthru
        _
      // Predicated region
      $region17: #{lp_generator_forward.1} parent=11 // pred_check
        %p384 = pneg %p167
      $region18: #{lp_generator_forward.1} parent=11 // pred_check_branch
        %386 = sbr.rel (%p384) target = $region20
      $region19: #{lp_generator_forward.1} parent=11 // pred_region
        _
      $region20: #{lp_generator_forward.1} parent=11 // pred_fallthru
        _
      // Predicated region
      $region21: #{lp_generator_forward.1} parent=11 // pred_check
        %p387 = pneg %p188
      $region22: #{lp_generator_forward.1} parent=11 // pred_check_branch
        %389 = sbr.rel (%p387) target = $region24
      $region23: #{lp_generator_forward.1} parent=11 // pred_region
        _
      $region24: #{lp_generator_forward.1} parent=11 // pred_fallthru
        _
      // Predicated region
      $region25: #{lp_generator_forward.1} parent=11 // pred_check
        %p390 = pneg %p209
      $region26: #{lp_generator_forward.1} parent=11 // pred_check_branch
        %392 = sbr.rel (%p390) target = $region28
      $region27: #{lp_generator_forward.1} parent=11 // pred_region
        _
      $region28: #{lp_generator_forward.1} parent=11 // pred_fallthru
        _
      // Predicated region
      $region29: #{lp_generator_forward.1} parent=11 // pred_check
        %p393 = pneg %p230
      $region30: #{lp_generator_forward.1} parent=11 // pred_check_branch
        %395 = sbr.rel (%p393) target = $region32
      $region31: #{lp_generator_forward.1} parent=11 // pred_region
        _
      $region32: #{lp_generator_forward.1} parent=11 // pred_fallthru
        _
      // Predicated region
      $region33: #{lp_generator_forward.1} parent=11 // pred_check
        %p396 = pneg %p251
      $region34: #{lp_generator_forward.1} parent=11 // pred_check_branch
        %398 = sbr.rel (%p396) target = $region36
      $region35: #{lp_generator_forward.1} parent=11 // pred_region
        _
      $region36: #{lp_generator_forward.1} parent=11 // pred_fallthru
        _
      // Predicated region
      $region37: #{lp_generator_forward.1} parent=11 // pred_check
        %p399 = pneg %p272
      $region38: #{lp_generator_forward.1} parent=11 // pred_check_branch
        %401 = sbr.rel (%p399) target = $region40
      $region39: #{lp_generator_forward.1} parent=11 // pred_region
        _
      $region40: #{lp_generator_forward.1} parent=11 // pred_fallthru
        _
      // Predicated region
      $region41: #{lp_generator_forward.1} parent=11 // pred_check
        %p402 = pneg %p293
      $region42: #{lp_generator_forward.1} parent=11 // pred_check_branch
        %404 = sbr.rel (%p402) target = $region44
      $region43: #{lp_generator_forward.1} parent=11 // pred_region
        _
      $region44: #{lp_generator_forward.1} parent=11 // pred_fallthru
        _
      // Predicated region
      $region45: #{lp_generator_forward.1} parent=11 // pred_check
        %p405 = pneg %p314
      $region46: #{lp_generator_forward.1} parent=11 // pred_check_branch
        %407 = sbr.rel (%p405) target = $region48
      $region47: #{lp_generator_forward.1} parent=11 // pred_region
        _
      $region48: #{lp_generator_forward.1} parent=11 // pred_fallthru
        _
    $region12: #{lp_generator_forward.1} parent=5 // pred_fallthru
      _
    %p408 = scmp.lt.s32.totalorder %s21, 2
    // Predicated region
    $region49: #{lp_generator_forward.1} parent=5 // pred_check
      %p409 = pneg %p408
    $region50: #{lp_generator_forward.1} parent=5 // pred_check_branch
      %411 = sbr.rel (%p409) target = $region52
    $region51: #{lp_generator_forward.1} parent=5 // pred_region
      // Predicated region
      $region53: #{lp_generator_forward.1} parent=51 // pred_check
        %p412 = pneg %p41
      $region54: #{lp_generator_forward.1} parent=51 // pred_check_branch
        %414 = sbr.rel (%p412) target = $region56
      $region55: #{lp_generator_forward.1} parent=51 // pred_region
        %p415 = scmp.lt.s32.totalorder %s21, 1
        %s416 = scalar_select %p415, %s21, 1
        %s417 = smul.addr %s416, 2
        %s418 = smul.addr %s417, 2
        %s419 = scalar_lea.vmem %s0, %s418
      $region56: #{lp_generator_forward.1} parent=51 // pred_fallthru
        _
      // Predicated region
      $region57: #{lp_generator_forward.1} parent=51 // pred_check
        %p420 = pneg %p67
      $region58: #{lp_generator_forward.1} parent=51 // pred_check_branch
        %422 = sbr.rel (%p420) target = $region60
      $region59: #{lp_generator_forward.1} parent=51 // pred_region
        %p423 = scmp.lt.s32.totalorder %s21, 1
        %s424 = scalar_select %p423, %s21, 1
        %s425 = smul.addr %s424, 2
        %s426 = smul.addr %s425, 4
        %s427 = scalar_lea.vmem %s1, %s426
      $region60: #{lp_generator_forward.1} parent=51 // pred_fallthru
        _
      // Predicated region
      $region61: #{lp_generator_forward.1} parent=51 // pred_check
        %p428 = pneg %p93
      $region62: #{lp_generator_forward.1} parent=51 // pred_check_branch
        %430 = sbr.rel (%p428) target = $region64
      $region63: #{lp_generator_forward.1} parent=51 // pred_region
        %p431 = scmp.lt.s32.totalorder %s21, 1
        %s432 = scalar_select %p431, %s21, 1
        %s433 = smul.addr %s432, 4
        %s434 = scalar_lea.vmem %s2, %s433
      $region64: #{lp_generator_forward.1} parent=51 // pred_fallthru
        _
      // Predicated region
      $region65: #{lp_generator_forward.1} parent=51 // pred_check
        %p435 = pneg %p119
      $region66: #{lp_generator_forward.1} parent=51 // pred_check_branch
        %437 = sbr.rel (%p435) target = $region68
      $region67: #{lp_generator_forward.1} parent=51 // pred_region
        %p438 = scmp.lt.s32.totalorder %s21, 1
        %s439 = scalar_select %p438, %s21, 1
        %s440 = smul.addr %s439, 3
        %s441 = scalar_lea.vmem %s3, %s440
      $region68: #{lp_generator_forward.1} parent=51 // pred_fallthru
        _
    $region52: #{lp_generator_forward.1} parent=5 // pred_fallthru
      _
    %p442 = scmp.le.s32.totalorder 1, %s21
    %p443 = scmp.lt.s32.totalorder %s21, 3
    %p444 = pnand %p442, %p443
    %p445 = pneg %p444
    // Predicated region
    $region69: #{lp_generator_forward.1} parent=5 // pred_check
      _
    $region70: #{lp_generator_forward.1} parent=5 // pred_check_branch
      %447 = sbr.rel (%p444) target = $region72
    $region71: #{lp_generator_forward.1} parent=5 // pred_region
      %s448 = ssub.s32 %s21, 1
      %p449 = scmp.lt.s32.totalorder %s26, 1
      %s450 = scalar_select %p449, %s26, 1
      %s451 = smul.addr %s450, 2
      %s452 = smul.addr %s451, 2
      %s453 = scalar_lea.vmem %s0, %s452
      %p454 = pneg %p47
      %p455 = pneg %p44
      %p456 = scmp.lt.s32.totalorder %s26, 1
      %s457 = scalar_select %p456, %s26, 1
      %s458 = smul.addr %s457, 2
      %s459 = smul.addr %s458, 4
      %s460 = scalar_lea.vmem %s1, %s459
      %p461 = pneg %p73
      %p462 = pneg %p70
      %p463 = scmp.lt.s32.totalorder %s26, 1
      %s464 = scalar_select %p463, %s26, 1
      %s465 = smul.addr %s464, 4
      %s466 = scalar_lea.vmem %s2, %s465
      %p467 = pneg %p99
      %p468 = pneg %p96
      %p469 = scmp.lt.s32.totalorder %s26, 1
      %s470 = scalar_select %p469, %s26, 1
      %s471 = smul.addr %s470, 3
      %s472 = scalar_lea.vmem %s3, %s471
      %p473 = pneg %p125
      %p474 = pneg %p122
      %p475 = pneg %p146
      %p476 = pneg %p143
      %p477 = pneg %p167
      %p478 = pneg %p164
      %p479 = pneg %p188
      %p480 = pneg %p185
      %p481 = pneg %p209
      %p482 = pneg %p206
      %p483 = pneg %p230
      %p484 = pneg %p227
      %p485 = pneg %p251
      %p486 = pneg %p248
      %p487 = pneg %p272
      %p488 = pneg %p269
      %p489 = pneg %p293
      %p490 = pneg %p290
      %p491 = pneg %p314
      %p492 = pneg %p311
      %p493 = pneg %p340
      %p494 = pneg %p337
      %p495 = scmp.lt.s32.totalorder %s26, 1
      %s496 = scalar_select %p495, %s26, 1
      %s497 = smul.addr %s496, 4
      %s498 = smul.addr %s497, 8
      %s499 = scalar_lea.vmem %s13, %s498
      %p500 = pneg %p366
      %p501 = pneg %p363
      %p502 = scmp.lt.s32.totalorder %s26, 1
      %s503 = scalar_select %p502, %s26, 1
      %s504 = smul.addr %s503, 2
      %s505 = smul.addr %s504, 4
      %s506 = scalar_lea.vmem %s14, %s505
      %p507 = scmp.lt.s32.totalorder %s26, 1
      %s508 = scalar_select %p507, %s26, 1
      %s509 = smul.addr %s508, 2
      %s510 = smul.addr %s509, 2
      %s511 = scalar_lea.vmem %s0, %s510
      %p512 = scmp.lt.s32.totalorder %s26, 1
      %s513 = scalar_select %p512, %s26, 1
      %s514 = smul.addr %s513, 2
      %s515 = smul.addr %s514, 4
      %s516 = scalar_lea.vmem %s1, %s515
      %p517 = scmp.lt.s32.totalorder %s26, 1
      %s518 = scalar_select %p517, %s26, 1
      %s519 = smul.addr %s518, 4
      %s520 = scalar_lea.vmem %s2, %s519
      %p521 = scmp.lt.s32.totalorder %s26, 1
      %s522 = scalar_select %p521, %s26, 1
      %s523 = smul.addr %s522, 3
      %s524 = scalar_lea.vmem %s3, %s523
      %p525 = scmp.lt.s32.totalorder %s26, 1
      %s526 = scalar_select %p525, %s26, 1
      %s527 = smul.addr %s526, 4
      %s528 = smul.addr %s527, 8
      %s529 = scalar_lea.vmem %s13, %s528
      %p530 = scmp.lt.s32.totalorder %s26, 1
      %s531 = scalar_select %p530, %s26, 1
      %s532 = smul.addr %s531, 2
      %s533 = smul.addr %s532, 4
      %s534 = scalar_lea.vmem %s14, %s533
      %v536 = vld [vmem:[%s511] ss:$2 sm:$0x3]
      %s537 = scalar_lea.vmem %s511, 1
      %v538 = vld [vmem:[%s537] ss:$2 sm:$0x3]
      %v539 = vadd.f32 %v536, 1.0
      %v540 = vmul.f32 %v539, 15.5
      %v541 = vadd.f32 %v538, 1.0
      %v542 = vmul.f32 %v541, 15.5
      %v543 = vfloor.f32 %v540
      %v544 = vfloor.f32 %v542
      %v545 = vsub.f32 %v540, %v543
      %v546 = vsub.f32 %v542, %v544
      %v547 = vmax.f32 %v543, 0.0
      %v548 = vmin.f32 %v547, 31.0
      %v549 = vcvt.f32.s32.to.zero.pseudo %v548
      %v550 = vadd.f32 %v543, 1.0
      %v551 = vmax.f32 %v550, 0.0
      %v552 = vmin.f32 %v551, 31.0
      %v553 = vcvt.f32.s32.to.zero.pseudo %v552
      %v554 = vmax.f32 %v544, 0.0
      %v555 = vmin.f32 %v554, 31.0
      %v556 = vcvt.f32.s32.to.zero.pseudo %v555
      %v557 = vadd.f32 %v544, 1.0
      %v558 = vmax.f32 %v557, 0.0
      %v559 = vmin.f32 %v558, 31.0
      %v560 = vcvt.f32.s32.to.zero.pseudo %v559
      %v561 = vlaneseq
      %v562 = vshrl.u32 %v561, 7
      %v563 = vadd.s32 %v562, 8
      %v564 = vadd.s32 %v562, 16
      %v565 = vadd.s32 %v562, 24
      %v566 = vlaneseq
      %v567 = vshrl.u32 %v566, 7
      %v568 = vsub.s32 0, %v567
      %v569 = vrot.slane %v556, %v568
      %v570 = vlaneseq
      %v571 = vshrl.u32 %v570, 7
      %v572 = vsub.s32 1, %v571
      %v573 = vrot.slane %v556, %v572
      %vm574 = vcmp.eq.s32.totalorder %v562, %v569
      %vm575 = vcmp.eq.s32.totalorder %v562, %v573
      %vm576 = vcmp.eq.s32.totalorder %v563, %v569
      %vm577 = vcmp.eq.s32.totalorder %v563, %v573
      %vm578 = vcmp.eq.s32.totalorder %v564, %v569
      %vm579 = vcmp.eq.s32.totalorder %v564, %v573
      %vm580 = vcmp.eq.s32.totalorder %v565, %v569
      %vm581 = vcmp.eq.s32.totalorder %v565, %v573
      %v582 = vsub.f32 1.0, %v546
      %v584 = vlaneseq
      %v585 = vshrl.u32 %v584, 7
      %v586 = vsub.s32 0, %v585
      %v587 = vrot.slane %v582, %v586
      %v588 = vlaneseq
      %v589 = vshrl.u32 %v588, 7
      %v590 = vsub.s32 1, %v589
      %v591 = vrot.slane %v582, %v590
      %v594 = vsel %vm574, %v587, 0.0
      %v595 = vsel %vm575, %v591, 0.0
      %v596 = vsel %vm576, %v587, 0.0
      %v597 = vsel %vm577, %v591, 0.0
      %v598 = vsel %vm578, %v587, 0.0
      %v599 = vsel %vm579, %v591, 0.0
      %v600 = vsel %vm580, %v587, 0.0
      %v601 = vsel %vm581, %v591, 0.0
      %v602 = vlaneseq
      %v603 = vshrl.u32 %v602, 7
      %v604 = vsub.s32 0, %v603
      %v605 = vrot.slane %v560, %v604
      %v606 = vlaneseq
      %v607 = vshrl.u32 %v606, 7
      %v608 = vsub.s32 1, %v607
      %v609 = vrot.slane %v560, %v608
      %vm610 = vcmp.eq.s32.totalorder %v562, %v605
      %vm611 = vcmp.eq.s32.totalorder %v562, %v609
      %vm612 = vcmp.eq.s32.totalorder %v563, %v605
      %vm613 = vcmp.eq.s32.totalorder %v563, %v609
      %vm614 = vcmp.eq.s32.totalorder %v564, %v605
      %vm615 = vcmp.eq.s32.totalorder %v564, %v609
      %vm616 = vcmp.eq.s32.totalorder %v565, %v605
      %vm617 = vcmp.eq.s32.totalorder %v565, %v609
      %v619 = vlaneseq
      %v620 = vshrl.u32 %v619, 7
      %v621 = vsub.s32 0, %v620
      %v622 = vrot.slane %v546, %v621
      %v623 = vlaneseq
      %v624 = vshrl.u32 %v623, 7
      %v625 = vsub.s32 1, %v624
      %v626 = vrot.slane %v546, %v625
      %v629 = vsel %vm610, %v622, 0.0
      %v630 = vsel %vm611, %v626, 0.0
      %v631 = vsel %vm612, %v622, 0.0
      %v632 = vsel %vm613, %v626, 0.0
      %v633 = vsel %vm614, %v622, 0.0
      %v634 = vsel %vm615, %v626, 0.0
      %v635 = vsel %vm616, %v622, 0.0
      %v636 = vsel %vm617, %v626, 0.0
      %v637 = vadd.f32 %v594, %v629
      %v638 = vadd.f32 %v595, %v630
      %v639 = vadd.f32 %v596, %v631
      %v640 = vadd.f32 %v597, %v632
      %v641 = vadd.f32 %v598, %v633
      %v642 = vadd.f32 %v599, %v634
      %v643 = vadd.f32 %v600, %v635
      %v644 = vadd.f32 %v601, %v636
      %v645 = vlaneseq
      %v646 = vshrl.u32 %v645, 7
      %v647 = vsub.s32 0, %v646
      %v648 = vrot.slane %v549, %v647
      %v649 = vlaneseq
      %v650 = vshrl.u32 %v649, 7
      %v651 = vsub.s32 1, %v650
      %v652 = vrot.slane %v549, %v651
      %vm653 = vcmp.eq.s32.totalorder %v562, %v648
      %vm654 = vcmp.eq.s32.totalorder %v562, %v652
      %vm655 = vcmp.eq.s32.totalorder %v563, %v648
      %vm656 = vcmp.eq.s32.totalorder %v563, %v652
      %vm657 = vcmp.eq.s32.totalorder %v564, %v648
      %vm658 = vcmp.eq.s32.totalorder %v564, %v652
      %vm659 = vcmp.eq.s32.totalorder %v565, %v648
      %vm660 = vcmp.eq.s32.totalorder %v565, %v652
      %v661 = vsub.f32 1.0, %v545
      %v663 = vlaneseq
      %v664 = vshrl.u32 %v663, 7
      %v665 = vsub.s32 0, %v664
      %v666 = vrot.slane %v661, %v665
      %v667 = vlaneseq
      %v668 = vshrl.u32 %v667, 7
      %v669 = vsub.s32 1, %v668
      %v670 = vrot.slane %v661, %v669
      %v673 = vsel %vm653, %v666, 0.0
      %v674 = vsel %vm654, %v670, 0.0
      %v675 = vsel %vm655, %v666, 0.0
      %v676 = vsel %vm656, %v670, 0.0
      %v677 = vsel %vm657, %v666, 0.0
      %v678 = vsel %vm658, %v670, 0.0
      %v679 = vsel %vm659, %v666, 0.0
      %v680 = vsel %vm660, %v670, 0.0
      %v681 = vlaneseq
      %v682 = vshrl.u32 %v681, 7
      %v683 = vsub.s32 0, %v682
      %v684 = vrot.slane %v553, %v683
      %v685 = vlaneseq
      %v686 = vshrl.u32 %v685, 7
      %v687 = vsub.s32 1, %v686
      %v688 = vrot.slane %v553, %v687
      %vm689 = vcmp.eq.s32.totalorder %v562, %v684
      %vm690 = vcmp.eq.s32.totalorder %v562, %v688
      %vm691 = vcmp.eq.s32.totalorder %v563, %v684
      %vm692 = vcmp.eq.s32.totalorder %v563, %v688
      %vm693 = vcmp.eq.s32.totalorder %v564, %v684
      %vm694 = vcmp.eq.s32.totalorder %v564, %v688
      %vm695 = vcmp.eq.s32.totalorder %v565, %v684
      %vm696 = vcmp.eq.s32.totalorder %v565, %v688
      %v698 = vlaneseq
      %v699 = vshrl.u32 %v698, 7
      %v700 = vsub.s32 0, %v699
      %v701 = vrot.slane %v545, %v700
      %v702 = vlaneseq
      %v703 = vshrl.u32 %v702, 7
      %v704 = vsub.s32 1, %v703
      %v705 = vrot.slane %v545, %v704
      %v708 = vsel %vm689, %v701, 0.0
      %v709 = vsel %vm690, %v705, 0.0
      %v710 = vsel %vm691, %v701, 0.0
      %v711 = vsel %vm692, %v705, 0.0
      %v712 = vsel %vm693, %v701, 0.0
      %v713 = vsel %vm694, %v705, 0.0
      %v714 = vsel %vm695, %v701, 0.0
      %v715 = vsel %vm696, %v705, 0.0
      %v716 = vadd.f32 %v673, %v708
      %v717 = vadd.f32 %v674, %v709
      %v718 = vadd.f32 %v675, %v710
      %v719 = vadd.f32 %v676, %v711
      %v720 = vadd.f32 %v677, %v712
      %v721 = vadd.f32 %v678, %v713
      %v722 = vadd.f32 %v679, %v714
      %v723 = vadd.f32 %v680, %v715
      %v724 = vld [vmem:[%s4] sm:$0xf]
      %v725 = vld [vmem:[%s4 + $0x4] sm:$0xf]
      %v726 = vld [vmem:[%s4 + $0x8] sm:$0xf]
      %v727 = vld [vmem:[%s4 + $0xc] sm:$0xf]
      %v728 = vld [vmem:[%s4 + $0x10] sm:$0xf]
      %v729 = vld [vmem:[%s4 + $0x14] sm:$0xf]
      %v730 = vld [vmem:[%s4 + $0x18] sm:$0xf]
      %v731 = vld [vmem:[%s4 + $0x1c] sm:$0xf]
      %v732 = vld [vmem:[%s4 + $0x20] sm:$0xf]
      %v733 = vld [vmem:[%s4 + $0x24] sm:$0xf]
      %v734 = vld [vmem:[%s4 + $0x28] sm:$0xf]
      %v735 = vld [vmem:[%s4 + $0x2c] sm:$0xf]
      %v736 = vld [vmem:[%s4 + $0x30] sm:$0xf]
      %v737 = vld [vmem:[%s4 + $0x34] sm:$0xf]
      %v738 = vld [vmem:[%s4 + $0x38] sm:$0xf]
      %v739 = vld [vmem:[%s4 + $0x3c] sm:$0xf]
      %v740 = vpack.c.bf16 %v639, %v637
      %v741 = vpack.c.bf16 %v640, %v638
      %v742 = vpack.c.bf16 %v643, %v641
      %v743 = vpack.c.bf16 %v644, %v642
      %v760 = vunpack.c.l.b16 %v724
      %v761 = vunpack.c.l.b16 %v725
      %v762 = vunpack.c.l.b16 %v726
      %v763 = vunpack.c.l.b16 %v727
      %v764 = vunpack.c.l.b16 %v728
      %v765 = vunpack.c.l.b16 %v729
      %v766 = vunpack.c.l.b16 %v730
      %v767 = vunpack.c.l.b16 %v731
      %v768 = vunpack.c.l.b16 %v732
      %v769 = vunpack.c.l.b16 %v733
      %v770 = vunpack.c.l.b16 %v734
      %v771 = vunpack.c.l.b16 %v735
      %v772 = vunpack.c.l.b16 %v736
      %v773 = vunpack.c.l.b16 %v737
      %v774 = vunpack.c.l.b16 %v738
      %v775 = vunpack.c.l.b16 %v739
      %v776 = vpack.c.b16 %v761, %v760
      %v777 = vpack.c.b16 %v763, %v762
      %v778 = vpack.c.b16 %v765, %v764
      %v779 = vpack.c.b16 %v767, %v766
      %v780 = vpack.c.b16 %v769, %v768
      %v781 = vpack.c.b16 %v771, %v770
      %v782 = vpack.c.b16 %v773, %v772
      %v783 = vpack.c.b16 %v775, %v774
      %vm784 = vcmask 261120
      %v786 = vsel %vm784, %v776, 0
      %v789 = vsel %vm784, %v777, 0
      %v792 = vsel %vm784, %v778, 0
      %v795 = vsel %vm784, %v779, 0
      %v798 = vsel %vm784, %v780, 0
      %v801 = vsel %vm784, %v781, 0
      %v804 = vsel %vm784, %v782, 0
      %v807 = vsel %vm784, %v783, 0
      %809 = vmatprep.subr.bf16.mxu0 %v741
      %810 = vmatpush1.bf16.msra.mxu0 %v740
      %811 = vmatprep.subr.bf16.mxu0 %v743
      %812 = vmatpush1.bf16.msra.mxu0 %v742
      %813 = vmatprep.subr.bf16.mxu0 0
      %814 = vmatpush1.bf16.msra.mxu0 0
      %815 = vmatprep.subr.bf16.mxu0 0
      %816 = vmatpush1.bf16.msra.mxu0 0
      %817 = vmatprep.subr.bf16.mxu0 0
      %818 = vmatpush1.bf16.msra.mxu0 0
      %819 = vmatprep.subr.bf16.mxu0 0
      %820 = vmatpush1.bf16.msra.mxu0 0
      %821 = vmatprep.subr.bf16.mxu0 0
      %822 = vmatpush1.bf16.msra.mxu0 0
      %823 = vmatprep.subr.bf16.mxu0 0
      %824 = vmatpush1.bf16.msra.mxu0 0
      %825 = vmatprep.subr.bf16.mxu0 0
      %826 = vmatpush1.bf16.msra.mxu0 0
      %827 = vmatprep.subr.bf16.mxu0 0
      %828 = vmatpush1.bf16.msra.mxu0 0
      %829 = vmatprep.subr.bf16.mxu0 0
      %830 = vmatpush1.bf16.msra.mxu0 0
      %831 = vmatprep.subr.bf16.mxu0 0
      %832 = vmatpush1.bf16.msra.mxu0 0
      %833 = vmatprep.subr.bf16.mxu0 0
      %834 = vmatpush1.bf16.msra.mxu0 0
      %835 = vmatprep.subr.bf16.mxu0 0
      %836 = vmatpush1.bf16.msra.mxu0 0
      %837 = vmatprep.subr.bf16.mxu0 0
      %838 = vmatpush1.bf16.msra.mxu0 0
      %839 = vmatprep.subr.bf16.mxu0 0
      %840 = vmatpush1.bf16.msra.mxu0 0
      %841 = vmatprep.mubr.bf16.mxu0 0
      %842 = vmatmul.mubr.bf16.gmra.mrb[0].mxu0 %v786
      %v843 = vpop.f32.mrb[0].mxu0
      %v844 = vadd.f32 0.0, %v843
      %v845 = vpop.f32.mrb[0].mxu0
      %v846 = vadd.f32 0.0, %v845
      %v847 = vpop.f32.mrb[0].mxu0
      %v848 = vadd.f32 0.0, %v847
      %v849 = vpop.f32.mrb[0].mxu0
      %v850 = vadd.f32 0.0, %v849
      %851 = vmatprep.mubr.bf16.mxu0 0
      %852 = vmatmul.mubr.bf16.gmra.mrb[0].mxu0 %v789
      %v853 = vpop.f32.mrb[0].mxu0
      %v854 = vadd.f32 0.0, %v853
      %v855 = vpop.f32.mrb[0].mxu0
      %v856 = vadd.f32 0.0, %v855
      %v857 = vpop.f32.mrb[0].mxu0
      %v858 = vadd.f32 0.0, %v857
      %v859 = vpop.f32.mrb[0].mxu0
      %v860 = vadd.f32 0.0, %v859
      %861 = vmatprep.mubr.bf16.mxu0 0
      %862 = vmatmul.mubr.bf16.gmra.mrb[0].mxu0 %v792
      %v863 = vpop.f32.mrb[0].mxu0
      %v864 = vadd.f32 0.0, %v863
      %v865 = vpop.f32.mrb[0].mxu0
      %v866 = vadd.f32 0.0, %v865
      %v867 = vpop.f32.mrb[0].mxu0
      %v868 = vadd.f32 0.0, %v867
      %v869 = vpop.f32.mrb[0].mxu0
      %v870 = vadd.f32 0.0, %v869
      %871 = vmatprep.mubr.bf16.mxu0 0
      %872 = vmatmul.mubr.bf16.gmra.mrb[0].mxu0 %v795
      %v873 = vpop.f32.mrb[0].mxu0
      %v874 = vadd.f32 0.0, %v873
      %v875 = vpop.f32.mrb[0].mxu0
      %v876 = vadd.f32 0.0, %v875
      %v877 = vpop.f32.mrb[0].mxu0
      %v878 = vadd.f32 0.0, %v877
      %v879 = vpop.f32.mrb[0].mxu0
      %v880 = vadd.f32 0.0, %v879
      %881 = vmatprep.mubr.bf16.mxu0 0
      %882 = vmatmul.mubr.bf16.gmra.mrb[0].mxu0 %v798
      %v883 = vpop.f32.mrb[0].mxu0
      %v884 = vadd.f32 0.0, %v883
      %v885 = vpop.f32.mrb[0].mxu0
      %v886 = vadd.f32 0.0, %v885
      %v887 = vpop.f32.mrb[0].mxu0
      %v888 = vadd.f32 0.0, %v887
      %v889 = vpop.f32.mrb[0].mxu0
      %v890 = vadd.f32 0.0, %v889
      %891 = vmatprep.mubr.bf16.mxu0 0
      %892 = vmatmul.mubr.bf16.gmra.mrb[0].mxu0 %v801
      %v893 = vpop.f32.mrb[0].mxu0
      %v894 = vadd.f32 0.0, %v893
      %v895 = vpop.f32.mrb[0].mxu0
      %v896 = vadd.f32 0.0, %v895
      %v897 = vpop.f32.mrb[0].mxu0
      %v898 = vadd.f32 0.0, %v897
      %v899 = vpop.f32.mrb[0].mxu0
      %v900 = vadd.f32 0.0, %v899
      %901 = vmatprep.mubr.bf16.mxu0 0
      %902 = vmatmul.mubr.bf16.gmra.mrb[0].mxu0 %v804
      %v903 = vpop.f32.mrb[0].mxu0
      %v904 = vadd.f32 0.0, %v903
      %v905 = vpop.f32.mrb[0].mxu0
      %v906 = vadd.f32 0.0, %v905
      %v907 = vpop.f32.mrb[0].mxu0
      %v908 = vadd.f32 0.0, %v907
      %v909 = vpop.f32.mrb[0].mxu0
      %v910 = vadd.f32 0.0, %v909
      %911 = vmatprep.mubr.bf16.mxu0 0
      %912 = vmatmul.mubr.bf16.gmra.mrb[0].mxu0 %v807
      %v913 = vpop.f32.mrb[0].mxu0
      %v914 = vadd.f32 0.0, %v913
      %v915 = vpop.f32.mrb[0].mxu0
      %v916 = vadd.f32 0.0, %v915
      %v917 = vpop.f32.mrb[0].mxu0
      %v918 = vadd.f32 0.0, %v917
      %v919 = vpop.f32.mrb[0].mxu0
      %v920 = vadd.f32 0.0, %v919
      %921 = vdwg.mxu0
      %v922 = vmul.f32 %v844, %v716
      %v923 = vmul.f32 %v846, %v717
      %v924 = vmul.f32 %v848, %v718
      %v925 = vmul.f32 %v850, %v719
      %v926 = vmul.f32 %v854, %v720
      %v927 = vmul.f32 %v856, %v721
      %v928 = vmul.f32 %v858, %v722
      %v929 = vmul.f32 %v860, %v723
      %v930 = vmul.f32 %v864, %v716
      %v931 = vmul.f32 %v866, %v717
      %v932 = vmul.f32 %v868, %v718
      %v933 = vmul.f32 %v870, %v719
      %v934 = vmul.f32 %v874, %v720
      %v935 = vmul.f32 %v876, %v721
      %v936 = vmul.f32 %v878, %v722
      %v937 = vmul.f32 %v880, %v723
      %v938 = vmul.f32 %v884, %v716
      %v939 = vmul.f32 %v886, %v717
      %v940 = vmul.f32 %v888, %v718
      %v941 = vmul.f32 %v890, %v719
      %v942 = vmul.f32 %v894, %v720
      %v943 = vmul.f32 %v896, %v721
      %v944 = vmul.f32 %v898, %v722
      %v945 = vmul.f32 %v900, %v723
      %v946 = vmul.f32 %v904, %v716
      %v947 = vmul.f32 %v906, %v717
      %v948 = vmul.f32 %v908, %v718
      %v949 = vmul.f32 %v910, %v719
      %v950 = vmul.f32 %v914, %v720
      %v951 = vmul.f32 %v916, %v721
      %v952 = vmul.f32 %v918, %v722
      %v953 = vmul.f32 %v920, %v723
      %v954 = vadd.f32 %v922, %v924
      %v955 = vadd.f32 %v954, %v926
      %v956 = vadd.f32 %v955, %v928
      %v957 = vrot.slane %v956, 4
      %v958 = vadd.f32 %v956, %v957
      %v959 = vrot.slane %v958, 2
      %v960 = vadd.f32 %v958, %v959
      %v961 = vrot.slane %v960, 1
      %v962 = vadd.f32 %v960, %v961
      %v963 = vadd.f32 %v923, %v925
      %v964 = vadd.f32 %v963, %v927
      %v965 = vadd.f32 %v964, %v929
      %v966 = vrot.slane %v965, 4
      %v967 = vadd.f32 %v965, %v966
      %v968 = vrot.slane %v967, 2
      %v969 = vadd.f32 %v967, %v968
      %v970 = vrot.slane %v969, 1
      %v971 = vadd.f32 %v969, %v970
      %v972 = vadd.f32 %v930, %v932
      %v973 = vadd.f32 %v972, %v934
      %v974 = vadd.f32 %v973, %v936
      %v975 = vrot.slane %v974, 4
      %v976 = vadd.f32 %v974, %v975
      %v977 = vrot.slane %v976, 2
      %v978 = vadd.f32 %v976, %v977
      %v979 = vrot.slane %v978, 1
      %v980 = vadd.f32 %v978, %v979
      %v981 = vadd.f32 %v931, %v933
      %v982 = vadd.f32 %v981, %v935
      %v983 = vadd.f32 %v982, %v937
      %v984 = vrot.slane %v983, 4
      %v985 = vadd.f32 %v983, %v984
      %v986 = vrot.slane %v985, 2
      %v987 = vadd.f32 %v985, %v986
      %v988 = vrot.slane %v987, 1
      %v989 = vadd.f32 %v987, %v988
      %v990 = vadd.f32 %v938, %v940
      %v991 = vadd.f32 %v990, %v942
      %v992 = vadd.f32 %v991, %v944
      %v993 = vrot.slane %v992, 4
      %v994 = vadd.f32 %v992, %v993
      %v995 = vrot.slane %v994, 2
      %v996 = vadd.f32 %v994, %v995
      %v997 = vrot.slane %v996, 1
      %v998 = vadd.f32 %v996, %v997
      %v999 = vadd.f32 %v939, %v941
      %v1000 = vadd.f32 %v999, %v943
      %v1001 = vadd.f32 %v1000, %v945
      %v1002 = vrot.slane %v1001, 4
      %v1003 = vadd.f32 %v1001, %v1002
      %v1004 = vrot.slane %v1003, 2
      %v1005 = vadd.f32 %v1003, %v1004
      %v1006 = vrot.slane %v1005, 1
      %v1007 = vadd.f32 %v1005, %v1006
      %v1008 = vadd.f32 %v946, %v948
      %v1009 = vadd.f32 %v1008, %v950
      %v1010 = vadd.f32 %v1009, %v952
      %v1011 = vrot.slane %v1010, 4
      %v1012 = vadd.f32 %v1010, %v1011
      %v1013 = vrot.slane %v1012, 2
      %v1014 = vadd.f32 %v1012, %v1013
      %v1015 = vrot.slane %v1014, 1
      %v1016 = vadd.f32 %v1014, %v1015
      %v1017 = vadd.f32 %v947, %v949
      %v1018 = vadd.f32 %v1017, %v951
      %v1019 = vadd.f32 %v1018, %v953
      %v1020 = vrot.slane %v1019, 4
      %v1021 = vadd.f32 %v1019, %v1020
      %v1022 = vrot.slane %v1021, 2
      %v1023 = vadd.f32 %v1021, %v1022
      %v1024 = vrot.slane %v1023, 1
      %v1025 = vadd.f32 %v1023, %v1024
      %v1026 = vld [vmem:[%s524] sm:$0x7]
      %v1027 = vld [vmem:[%s5] sm:$0x3f]
      %v1028 = vld [vmem:[%s5 + $0x8] sm:$0x3f]
      %v1029 = vld [vmem:[%s5 + $0x10] sm:$0x3f]
      %v1031 = vlaneseq
      %v1032 = vshrl.u32 %v1031, 7
      %v1033 = vsub.s32 0, %v1032
      %v1034 = vrot.slane %v1026, %v1033
      %v1035 = vlaneseq
      %v1036 = vshrl.u32 %v1035, 7
      %v1037 = vsub.s32 1, %v1036
      %v1038 = vrot.slane %v1026, %v1037
      %v1039 = vlaneseq
      %v1040 = vshrl.u32 %v1039, 7
      %v1041 = vsub.s32 2, %v1040
      %v1042 = vrot.slane %v1026, %v1041
      %v1046 = vmul.f32 %v1027, %v1034
      %v1047 = vmul.f32 %v1028, %v1038
      %v1048 = vmul.f32 %v1029, %v1042
      %vm1049 = vcmask 1045504
      %v1050 = vsel %vm1049, %v1046, 0.0
      %v1051 = vsel %vm1049, %v1047, 0.0
      %v1052 = vadd.f32 %v1050, %v1051
      %v1053 = vsel %vm1049, %v1048, 0.0
      %v1054 = vadd.f32 %v1052, %v1053
      %1055 = vadd.xlane.f32.xlu0 %v1054
      %v1056 = vpop.xlane.xlu0 %1055
      %v1057 = vld [vmem:[%s6] sm:$0x3f]
      %v1058 = vadd.f32 %v1056, %v1057
      %v1059 = vld [vmem:[%s520] sm:$0x7]
      %1061 = vset.pattern.permute.xlu0 0
      %1062 = vperm.xlu0 %1061, %v1059
      %v1063 = vpop.permute.xlu0 %1062
      %1065 = vset.pattern.permute.xlu0 0
      %1066 = vperm.xlu0 %1065, %v1058
      %v1067 = vpop.permute.xlu0 %1066
      %vm1076 = vcmask 1041409
      %v1077 = vsel %vm1076, %v980, %v962
      %vm1078 = vcmask 1042434
      %v1079 = vsel %vm1078, %v998, %v1077
      %vm1080 = vcmask 1043459
      %v1081 = vsel %vm1080, %v1016, %v1079
      %v1082 = vsel %vm1076, %v989, %v971
      %v1083 = vsel %vm1078, %v1007, %v1082
      %v1084 = vsel %vm1080, %v1025, %v1083
      %1087 = vst [vmem:[#allocation2] sm:$0xf] %v1081
      %1088 = vst [vmem:[#allocation2 + $0x8] sm:$0xf] %v1084
      %v1089 = vld [vmem:[%s516] sm:$0x77]
      %v1091 = vcombine.low %v1089, %v1089
      %1093 = vst [vmem:[#allocation2] sm:$0x70] %v1091
      %1094 = vst [vmem:[#allocation2 + $0x8] sm:$0x70] %v1089
      %v1095 = vrot.slane %v1063, 1
      %1097 = vst [vmem:[#allocation2] sm:$0x80] %v1095
      %1098 = vst [vmem:[#allocation2 + $0x8] sm:$0x80] %v1095
      %1099 = vst [vmem:[#allocation2 + $0x10] sm:$0x3] %v1095
      %1100 = vst [vmem:[#allocation2 + $0x18] sm:$0x3] %v1095
      %v1101 = vrot.slane %v1067, 6
      %1103 = vst [vmem:[#allocation2 + $0x10] sm:$0xfc] %v1101
      %1104 = vst [vmem:[#allocation2 + $0x18] sm:$0xfc] %v1101
      %v1105 = vld [vmem:[#allocation2] sm:$0xff]
      %v1106 = vld [vmem:[#allocation2 + $0x8] sm:$0xff]
      %v1107 = vld [vmem:[#allocation2 + $0x10] sm:$0xff]
      %v1108 = vld [vmem:[#allocation2 + $0x18] sm:$0xff]
      %1109 = vst [vmem:[%s529] sm:$0xff] %v1105
      %1110 = vst [vmem:[%s529 + $0x8] sm:$0xff] %v1106
      %1111 = vst [vmem:[%s529 + $0x10] sm:$0xff] %v1107
      %1112 = vst [vmem:[%s529 + $0x18] sm:$0xff] %v1108
      %v1113 = vlaneseq
      %v1114 = vand.u32 %v1113, 127
      %v1115 = vadd.s32 %v1114, 128
      %v1116 = vshra.s32 %v1114, 4
      %v1117 = vshra.s32 %v1115, 4
      %v1118 = vand.u32 %v1114, 15
      %v1119 = vand.u32 %v1115, 15
      %v1120 = vadd.s32 %v1116, 4294967295
      %v1121 = vadd.s32 %v1117, 4294967295
      %vm1122 = vcmp.ge.s32.totalorder %v1120, 0
      %vm1123 = vcmp.ge.s32.totalorder %v1121, 0
      %vm1124 = vcmp.lt.s32.totalorder %v1120, 16
      %vm1125 = vcmp.lt.s32.totalorder %v1121, 16
      %vm1126 = vmand %vm1122, %vm1124
      %vm1127 = vmand %vm1123, %vm1125
      %v1128 = vadd.s32 %v1118, 4294967295
      %v1129 = vadd.s32 %v1119, 4294967295
      %vm1130 = vcmp.ge.s32.totalorder %v1128, 0
      %vm1131 = vcmp.ge.s32.totalorder %v1129, 0
      %vm1132 = vmand %vm1126, %vm1130
      %vm1133 = vmand %vm1127, %vm1131
      %vm1134 = vcmp.lt.s32.totalorder %v1128, 16
      %vm1135 = vcmp.lt.s32.totalorder %v1129, 16
      %vm1136 = vmand %vm1132, %vm1134
      %vm1137 = vmand %vm1133, %vm1135
      %v1138 = vsel %vm1136, 1, 0
      %v1139 = vsel %vm1137, 1, 0
      %v1140 = vcvt.s32.f32 %v1138
      %v1141 = vcvt.s32.f32 %v1139
      %vm1142 = vcmp.ge.s32.totalorder %v1118, 0
      %vm1143 = vcmp.ge.s32.totalorder %v1119, 0
      %vm1144 = vmand %vm1126, %vm1142
      %vm1145 = vmand %vm1127, %vm1143
      %vm1146 = vcmp.lt.s32.totalorder %v1118, 16
      %vm1147 = vcmp.lt.s32.totalorder %v1119, 16
      %vm1148 = vmand %vm1144, %vm1146
      %vm1149 = vmand %vm1145, %vm1147
      %v1150 = vsel %vm1148, 1, 0
      %v1151 = vsel %vm1149, 1, 0
      %v1152 = vcvt.s32.f32 %v1150
      %v1153 = vcvt.s32.f32 %v1151
      %v1154 = vadd.s32 %v1118, 1
      %v1155 = vadd.s32 %v1119, 1
      %vm1156 = vcmp.ge.s32.totalorder %v1154, 0
      %vm1157 = vcmp.ge.s32.totalorder %v1155, 0
      %vm1158 = vmand %vm1126, %vm1156
      %vm1159 = vmand %vm1127, %vm1157
      %vm1160 = vcmp.lt.s32.totalorder %v1154, 16
      %vm1161 = vcmp.lt.s32.totalorder %v1155, 16
      %vm1162 = vmand %vm1158, %vm1160
      %vm1163 = vmand %vm1159, %vm1161
      %v1164 = vsel %vm1162, 1, 0
      %v1165 = vsel %vm1163, 1, 0
      %v1166 = vcvt.s32.f32 %v1164
      %v1167 = vcvt.s32.f32 %v1165
      %vm1168 = vcmp.ge.s32.totalorder %v1116, 0
      %vm1169 = vcmp.ge.s32.totalorder %v1117, 0
      %vm1170 = vcmp.lt.s32.totalorder %v1116, 16
      %vm1171 = vcmp.lt.s32.totalorder %v1117, 16
      %vm1172 = vmand %vm1168, %vm1170
      %vm1173 = vmand %vm1169, %vm1171
      %vm1174 = vmand %vm1172, %vm1130
      %vm1175 = vmand %vm1173, %vm1131
      %vm1176 = vmand %vm1174, %vm1134
      %vm1177 = vmand %vm1175, %vm1135
      %v1178 = vsel %vm1176, 1, 0
      %v1179 = vsel %vm1177, 1, 0
      %v1180 = vcvt.s32.f32 %v1178
      %v1181 = vcvt.s32.f32 %v1179
      %vm1182 = vmand %vm1172, %vm1156
      %vm1183 = vmand %vm1173, %vm1157
      %vm1184 = vmand %vm1182, %vm1160
      %vm1185 = vmand %vm1183, %vm1161
      %v1186 = vsel %vm1184, 1, 0
      %v1187 = vsel %vm1185, 1, 0
      %v1188 = vcvt.s32.f32 %v1186
      %v1189 = vcvt.s32.f32 %v1187
      %v1190 = vadd.s32 %v1116, 1
      %v1191 = vadd.s32 %v1117, 1
      %vm1192 = vcmp.ge.s32.totalorder %v1190, 0
      %vm1193 = vcmp.ge.s32.totalorder %v1191, 0
      %vm1194 = vcmp.lt.s32.totalorder %v1190, 16
      %vm1195 = vcmp.lt.s32.totalorder %v1191, 16
      %vm1196 = vmand %vm1192, %vm1194
      %vm1197 = vmand %vm1193, %vm1195
      %vm1198 = vmand %vm1196, %vm1130
      %vm1199 = vmand %vm1197, %vm1131
      %vm1200 = vmand %vm1198, %vm1134
      %vm1201 = vmand %vm1199, %vm1135
      %v1202 = vsel %vm1200, 1, 0
      %v1203 = vsel %vm1201, 1, 0
      %v1204 = vcvt.s32.f32 %v1202
      %v1205 = vcvt.s32.f32 %v1203
      %vm1206 = vmand %vm1196, %vm1142
      %vm1207 = vmand %vm1197, %vm1143
      %vm1208 = vmand %vm1206, %vm1146
      %vm1209 = vmand %vm1207, %vm1147
      %v1210 = vsel %vm1208, 1, 0
      %v1211 = vsel %vm1209, 1, 0
      %v1212 = vcvt.s32.f32 %v1210
      %v1213 = vcvt.s32.f32 %v1211
      %vm1214 = vmand %vm1196, %vm1156
      %vm1215 = vmand %vm1197, %vm1157
      %vm1216 = vmand %vm1214, %vm1160
      %vm1217 = vmand %vm1215, %vm1161
      %v1218 = vsel %vm1216, 1, 0
      %v1219 = vsel %vm1217, 1, 0
      %v1220 = vcvt.s32.f32 %v1218
      %v1221 = vcvt.s32.f32 %v1219
      %1222 = vrot.lane.b32.xlu0 %v1105, 17
      %v1223 = vpop.permute.xlu0 %1222
      %1224 = vrot.lane.b32.xlu0 %v1107, 17
      %v1225 = vpop.permute.xlu0 %1224
      %1226 = vrot.lane.b32.xlu0 %v1106, 17
      %v1227 = vpop.permute.xlu0 %1226
      %1228 = vrot.lane.b32.xlu0 %v1108, 17
      %v1229 = vpop.permute.xlu0 %1228
      %vm1230 = vcmp.lt.s32.totalorder %v1114, 17
      %v1231 = vsel %vm1230, %v1223, %v1227
      %v1232 = vsel %vm1230, %v1225, %v1229
      %v1233 = vsel %vm1230, %v1227, %v1223
      %v1234 = vsel %vm1230, %v1229, %v1225
      %v1235 = vmul.f32 %v1233, %v1140
      %v1236 = vmul.f32 %v1231, %v1141
      %v1237 = vmul.f32 %v1234, %v1140
      %v1238 = vmul.f32 %v1232, %v1141
      %v1239 = vpack.c.bf16 %v1237, %v1235
      %v1240 = vpack.c.bf16 %v1238, %v1236
      %1241 = vst [vmem:[#allocation3] sm:$0xff] %v1239
      %1242 = vst [vmem:[#allocation3 + $0x8] sm:$0xff] %v1240
      %1243 = vrot.lane.b32.xlu0 %v1105, 16
      %v1244 = vpop.permute.xlu0 %1243
      %1245 = vrot.lane.b32.xlu0 %v1107, 16
      %v1246 = vpop.permute.xlu0 %1245
      %1247 = vrot.lane.b32.xlu0 %v1106, 16
      %v1248 = vpop.permute.xlu0 %1247
      %1249 = vrot.lane.b32.xlu0 %v1108, 16
      %v1250 = vpop.permute.xlu0 %1249
      %vm1251 = vcmp.lt.s32.totalorder %v1114, 16
      %v1252 = vsel %vm1251, %v1244, %v1248
      %v1253 = vsel %vm1251, %v1246, %v1250
      %v1254 = vsel %vm1251, %v1248, %v1244
      %v1255 = vsel %vm1251, %v1250, %v1246
      %v1256 = vmul.f32 %v1254, %v1152
      %v1257 = vmul.f32 %v1252, %v1153
      %v1258 = vmul.f32 %v1255, %v1152
      %v1259 = vmul.f32 %v1253, %v1153
      %v1260 = vpack.c.bf16 %v1258, %v1256
      %v1261 = vpack.c.bf16 %v1259, %v1257
      %1262 = vst [vmem:[#allocation3 + $0x10] sm:$0xff] %v1260
      %1263 = vst [vmem:[#allocation3 + $0x18] sm:$0xff] %v1261
      %1264 = vrot.lane.b32.xlu0 %v1105, 15
      %v1265 = vpop.permute.xlu0 %1264
      %1266 = vrot.lane.b32.xlu0 %v1107, 15
      %v1267 = vpop.permute.xlu0 %1266
      %1268 = vrot.lane.b32.xlu0 %v1106, 15
      %v1269 = vpop.permute.xlu0 %1268
      %1270 = vrot.lane.b32.xlu0 %v1108, 15
      %v1271 = vpop.permute.xlu0 %1270
      %vm1272 = vcmp.lt.s32.totalorder %v1114, 15
      %v1273 = vsel %vm1272, %v1265, %v1269
      %v1274 = vsel %vm1272, %v1267, %v1271
      %v1275 = vsel %vm1272, %v1269, %v1265
      %v1276 = vsel %vm1272, %v1271, %v1267
      %v1277 = vmul.f32 %v1275, %v1166
      %v1278 = vmul.f32 %v1273, %v1167
      %v1279 = vmul.f32 %v1276, %v1166
      %v1280 = vmul.f32 %v1274, %v1167
      %v1281 = vpack.c.bf16 %v1279, %v1277
      %v1282 = vpack.c.bf16 %v1280, %v1278
      %1283 = vst [vmem:[#allocation3 + $0x20] sm:$0xff] %v1281
      %1284 = vst [vmem:[#allocation3 + $0x28] sm:$0xff] %v1282
      %1285 = vrot.lane.b32.xlu0 %v1105, 1
      %v1286 = vpop.permute.xlu0 %1285
      %1287 = vrot.lane.b32.xlu0 %v1107, 1
      %v1288 = vpop.permute.xlu0 %1287
      %1289 = vrot.lane.b32.xlu0 %v1106, 1
      %v1290 = vpop.permute.xlu0 %1289
      %1291 = vrot.lane.b32.xlu0 %v1108, 1
      %v1292 = vpop.permute.xlu0 %1291
      %vm1293 = vcmp.lt.s32.totalorder %v1114, 1
      %v1294 = vsel %vm1293, %v1286, %v1290
      %v1295 = vsel %vm1293, %v1288, %v1292
      %v1296 = vsel %vm1293, %v1290, %v1286
      %v1297 = vsel %vm1293, %v1292, %v1288
      %v1298 = vmul.f32 %v1296, %v1180
      %v1299 = vmul.f32 %v1294, %v1181
      %v1300 = vmul.f32 %v1297, %v1180
      %v1301 = vmul.f32 %v1295, %v1181
      %v1302 = vpack.c.bf16 %v1300, %v1298
      %v1303 = vpack.c.bf16 %v1301, %v1299
      %1304 = vst [vmem:[#allocation3 + $0x30] sm:$0xff] %v1302
      %1305 = vst [vmem:[#allocation3 + $0x38] sm:$0xff] %v1303
      %v1306 = vpack.c.bf16 %v1107, %v1105
      %v1307 = vpack.c.bf16 %v1108, %v1106
      %1308 = vst [vmem:[#allocation3 + $0x40] sm:$0xff] %v1306
      %1309 = vst [vmem:[#allocation3 + $0x48] sm:$0xff] %v1307
      %1310 = vrot.lane.b32.xlu0 %v1105, 127
      %v1311 = vpop.permute.xlu0 %1310
      %1312 = vrot.lane.b32.xlu0 %v1107, 127
      %v1313 = vpop.permute.xlu0 %1312
      %1314 = vrot.lane.b32.xlu0 %v1106, 127
      %v1315 = vpop.permute.xlu0 %1314
      %1316 = vrot.lane.b32.xlu0 %v1108, 127
      %v1317 = vpop.permute.xlu0 %1316
      %vm1318 = vcmp.lt.s32.totalorder %v1114, 127
      %v1319 = vsel %vm1318, %v1311, %v1315
      %v1320 = vsel %vm1318, %v1313, %v1317
      %v1321 = vsel %vm1318, %v1315, %v1311
      %v1322 = vsel %vm1318, %v1317, %v1313
      %v1323 = vmul.f32 %v1319, %v1188
      %v1324 = vmul.f32 %v1321, %v1189
      %v1325 = vmul.f32 %v1320, %v1188
      %v1326 = vmul.f32 %v1322, %v1189
      %v1327 = vpack.c.bf16 %v1325, %v1323
      %v1328 = vpack.c.bf16 %v1326, %v1324
      %1329 = vst [vmem:[#allocation3 + $0x50] sm:$0xff] %v1327
      %1330 = vst [vmem:[#allocation3 + $0x58] sm:$0xff] %v1328
      %1331 = vrot.lane.b32.xlu0 %v1105, 113
      %v1332 = vpop.permute.xlu0 %1331
      %1333 = vrot.lane.b32.xlu0 %v1107, 113
      %v1334 = vpop.permute.xlu0 %1333
      %1335 = vrot.lane.b32.xlu0 %v1106, 113
      %v1336 = vpop.permute.xlu0 %1335
      %1337 = vrot.lane.b32.xlu0 %v1108, 113
      %v1338 = vpop.permute.xlu0 %1337
      %vm1339 = vcmp.lt.s32.totalorder %v1114, 113
      %v1340 = vsel %vm1339, %v1332, %v1336
      %v1341 = vsel %vm1339, %v1334, %v1338
      %v1342 = vsel %vm1339, %v1336, %v1332
      %v1343 = vsel %vm1339, %v1338, %v1334
      %v1344 = vmul.f32 %v1340, %v1204
      %v1345 = vmul.f32 %v1342, %v1205
      %v1346 = vmul.f32 %v1341, %v1204
      %v1347 = vmul.f32 %v1343, %v1205
      %v1348 = vpack.c.bf16 %v1346, %v1344
      %v1349 = vpack.c.bf16 %v1347, %v1345
      %1350 = vst [vmem:[#allocation3 + $0x60] sm:$0xff] %v1348
      %1351 = vst [vmem:[#allocation3 + $0x68] sm:$0xff] %v1349
      %1352 = vrot.lane.b32.xlu0 %v1105, 112
      %v1353 = vpop.permute.xlu0 %1352
      %1354 = vrot.lane.b32.xlu0 %v1107, 112
      %v1355 = vpop.permute.xlu0 %1354
      %1356 = vrot.lane.b32.xlu0 %v1106, 112
      %v1357 = vpop.permute.xlu0 %1356
      %1358 = vrot.lane.b32.xlu0 %v1108, 112
      %v1359 = vpop.permute.xlu0 %1358
      %vm1360 = vcmp.lt.s32.totalorder %v1114, 112
      %v1361 = vsel %vm1360, %v1353, %v1357
      %v1362 = vsel %vm1360, %v1355, %v1359
      %v1363 = vsel %vm1360, %v1357, %v1353
      %v1364 = vsel %vm1360, %v1359, %v1355
      %v1365 = vmul.f32 %v1361, %v1212
      %v1366 = vmul.f32 %v1363, %v1213
      %v1367 = vmul.f32 %v1362, %v1212
      %v1368 = vmul.f32 %v1364, %v1213
      %v1369 = vpack.c.bf16 %v1367, %v1365
      %v1370 = vpack.c.bf16 %v1368, %v1366
      %1371 = vst [vmem:[#allocation3 + $0x70] sm:$0xff] %v1369
      %1372 = vst [vmem:[#allocation3 + $0x78] sm:$0xff] %v1370
      %1373 = vrot.lane.b32.xlu0 %v1105, 111
      %v1374 = vpop.permute.xlu0 %1373
      %1375 = vrot.lane.b32.xlu0 %v1107, 111
      %v1376 = vpop.permute.xlu0 %1375
      %1377 = vrot.lane.b32.xlu0 %v1106, 111
      %v1378 = vpop.permute.xlu0 %1377
      %1379 = vrot.lane.b32.xlu0 %v1108, 111
      %v1380 = vpop.permute.xlu0 %1379
      %vm1381 = vcmp.lt.s32.totalorder %v1114, 111
      %v1382 = vsel %vm1381, %v1374, %v1378
      %v1383 = vsel %vm1381, %v1376, %v1380
      %v1384 = vsel %vm1381, %v1378, %v1374
      %v1385 = vsel %vm1381, %v1380, %v1376
      %v1386 = vmul.f32 %v1382, %v1220
      %v1387 = vmul.f32 %v1384, %v1221
      %v1388 = vmul.f32 %v1383, %v1220
      %v1389 = vmul.f32 %v1385, %v1221
      %v1390 = vpack.c.bf16 %v1388, %v1386
      %v1391 = vpack.c.bf16 %v1389, %v1387
      %1392 = vst [vmem:[#allocation3 + $0x80] sm:$0xff] %v1390
      %1393 = vst [vmem:[#allocation3 + $0x88] sm:$0xff] %v1391
      %v1394 = vld [vmem:[%s7] sm:$0xff]
      %v1395 = vld [vmem:[%s7 + $0x8] sm:$0xff]
      %v1396 = vld [vmem:[%s7 + $0x10] sm:$0xff]
      %v1397 = vld [vmem:[%s7 + $0x18] sm:$0xff]
      %v1398 = vld [vmem:[%s7 + $0x20] sm:$0xff]
      %v1399 = vld [vmem:[%s7 + $0x28] sm:$0xff]
      %v1400 = vld [vmem:[%s7 + $0x30] sm:$0xff]
      %v1401 = vld [vmem:[%s7 + $0x38] sm:$0xff]
      %v1402 = vld [vmem:[#allocation3] sm:$0xff]
      %v1403 = vld [vmem:[#allocation3 + $0x8] sm:$0xff]
      %v1404 = vld [vmem:[#allocation3 + $0x10] sm:$0xff]
      %v1405 = vld [vmem:[#allocation3 + $0x18] sm:$0xff]
      %v1406 = vld [vmem:[#allocation3 + $0x20] sm:$0xff]
      %v1407 = vld [vmem:[#allocation3 + $0x28] sm:$0xff]
      %v1408 = vld [vmem:[#allocation3 + $0x30] sm:$0xff]
      %v1409 = vld [vmem:[#allocation3 + $0x38] sm:$0xff]
      %v1410 = vld [vmem:[#allocation3 + $0x40] sm:$0xff]
      %v1411 = vld [vmem:[#allocation3 + $0x48] sm:$0xff]
      %v1412 = vld [vmem:[#allocation3 + $0x50] sm:$0xff]
      %v1413 = vld [vmem:[#allocation3 + $0x58] sm:$0xff]
      %v1414 = vld [vmem:[#allocation3 + $0x60] sm:$0xff]
      %v1415 = vld [vmem:[#allocation3 + $0x68] sm:$0xff]
      %v1416 = vld [vmem:[#allocation3 + $0x70] sm:$0xff]
      %v1417 = vld [vmem:[#allocation3 + $0x78] sm:$0xff]
      %v1418 = vld [vmem:[#allocation3 + $0x80] sm:$0xff]
      %v1419 = vld [vmem:[#allocation3 + $0x88] sm:$0xff]
      %v1420 = vld [vmem:[%s8] sm:$0xff]
      %v1421 = vld [vmem:[%s8 + $0x8] sm:$0xff]
      %v1422 = vld [vmem:[%s8 + $0x10] sm:$0xff]
      %v1423 = vld [vmem:[%s8 + $0x18] sm:$0xff]
      %v1424 = vld [vmem:[%s8 + $0x20] sm:$0xff]
      %v1425 = vld [vmem:[%s8 + $0x28] sm:$0xff]
      %v1426 = vld [vmem:[%s8 + $0x30] sm:$0xff]
      %v1427 = vld [vmem:[%s8 + $0x38] sm:$0xff]
      %1429 = vset.pattern.permute.xlu0 0
      %1430 = vperm.xlu0 %1429, %v1420
      %v1431 = vpop.permute.xlu0 %1430
      %1434 = vset.pattern.permute.xlu0 0
      %1435 = vperm.xlu0 %1434, %v1421
      %v1436 = vpop.permute.xlu0 %1435
      %1439 = vset.pattern.permute.xlu0 0
      %1440 = vperm.xlu0 %1439, %v1422
      %v1441 = vpop.permute.xlu0 %1440
      %1444 = vset.pattern.permute.xlu0 0
      %1445 = vperm.xlu0 %1444, %v1423
      %v1446 = vpop.permute.xlu0 %1445
      %1449 = vset.pattern.permute.xlu0 0
      %1450 = vperm.xlu0 %1449, %v1424
      %v1451 = vpop.permute.xlu0 %1450
      %1454 = vset.pattern.permute.xlu0 0
      %1455 = vperm.xlu0 %1454, %v1425
      %v1456 = vpop.permute.xlu0 %1455
      %1459 = vset.pattern.permute.xlu0 0
      %1460 = vperm.xlu0 %1459, %v1426
      %v1461 = vpop.permute.xlu0 %1460
      %1464 = vset.pattern.permute.xlu0 0
      %1465 = vperm.xlu0 %1464, %v1427
      %v1466 = vpop.permute.xlu0 %1465
      %v1476 = vunpack.c.l.b16 %v1394
      %v1477 = vunpack.c.h.b16 %v1394
      %v1478 = vunpack.c.l.b16 %v1395
      %v1479 = vunpack.c.h.b16 %v1395
      %v1480 = vunpack.c.l.b16 %v1396
      %v1481 = vunpack.c.h.b16 %v1396
      %v1482 = vunpack.c.l.b16 %v1397
      %v1483 = vunpack.c.h.b16 %v1397
      %v1484 = vunpack.c.l.b16 %v1398
      %v1485 = vunpack.c.h.b16 %v1398
      %v1486 = vunpack.c.l.b16 %v1399
      %v1487 = vunpack.c.h.b16 %v1399
      %v1488 = vunpack.c.l.b16 %v1400
      %v1489 = vunpack.c.h.b16 %v1400
      %v1490 = vunpack.c.l.b16 %v1401
      %v1491 = vunpack.c.h.b16 %v1401
      %v1492 = vpack.c.b16 %v1478, %v1476
      %v1493 = vpack.c.b16 %v1479, %v1477
      %v1494 = vpack.c.b16 %v1482, %v1480
      %v1495 = vpack.c.b16 %v1483, %v1481
      %v1496 = vpack.c.b16 %v1486, %v1484
      %v1497 = vpack.c.b16 %v1487, %v1485
      %v1498 = vpack.c.b16 %v1490, %v1488
      %v1499 = vpack.c.b16 %v1491, %v1489
      %vm1504 = vcmask 130048
      %v1506 = vsel %vm1504, %v1493, 0
      %v1509 = vsel %vm1504, %v1495, 0
      %v1512 = vsel %vm1504, %v1497, 0
      %v1515 = vsel %vm1504, %v1499, 0
      %1517 = vmatprep.subr.bf16.mxu0 %v1403
      %1518 = vmatpush1.bf16.msra.mxu0 %v1402
      %1519 = vmatprep.subr.bf16.mxu0 %v1405
      %1520 = vmatpush1.bf16.msra.mxu0 %v1404
      %1521 = vmatprep.subr.bf16.mxu0 %v1407
      %1522 = vmatpush1.bf16.msra.mxu0 %v1406
      %1523 = vmatprep.subr.bf16.mxu0 %v1409
      %1524 = vmatpush1.bf16.msra.mxu0 %v1408
      %1525 = vmatprep.subr.bf16.mxu0 %v1411
      %1526 = vmatpush1.bf16.msra.mxu0 %v1410
      %1527 = vmatprep.subr.bf16.mxu0 %v1413
      %1528 = vmatpush1.bf16.msra.mxu0 %v1412
      %1529 = vmatprep.subr.bf16.mxu0 %v1415
      %1530 = vmatpush1.bf16.msra.mxu0 %v1414
      %1531 = vmatprep.subr.bf16.mxu0 %v1417
      %1532 = vmatpush1.bf16.msra.mxu0 %v1416
      %1533 = vmatprep.subr.bf16.mxu0 %v1419
      %1534 = vmatpush1.bf16.msra.mxu0 %v1418
      %1535 = vmatprep.subr.bf16.mxu0 0
      %1536 = vmatpush1.bf16.msra.mxu0 0
      %1537 = vmatprep.subr.bf16.mxu0 0
      %1538 = vmatpush1.bf16.msra.mxu0 0
      %1539 = vmatprep.subr.bf16.mxu0 0
      %1540 = vmatpush1.bf16.msra.mxu0 0
      %1541 = vmatprep.subr.bf16.mxu0 0
      %1542 = vmatpush1.bf16.msra.mxu0 0
      %1543 = vmatprep.subr.bf16.mxu0 0
      %1544 = vmatpush1.bf16.msra.mxu0 0
      %1545 = vmatprep.subr.bf16.mxu0 0
      %1546 = vmatpush1.bf16.msra.mxu0 0
      %1547 = vmatprep.subr.bf16.mxu0 0
      %1548 = vmatpush1.bf16.msra.mxu0 0
      %1549 = vmatprep.mubr.bf16.mxu0 %v1506
      %1550 = vmatmul.mubr.bf16.gmra.mrb[0].mxu0 %v1492
      %v1551 = vpop.f32.mrb[0].mxu0
      %v1552 = vadd.f32 %v1431, %v1551
      %v1553 = vpop.f32.mrb[0].mxu0
      %v1554 = vadd.f32 %v1431, %v1553
      %v1555 = vpop.f32.mrb[0].mxu0
      %v1556 = vadd.f32 %v1436, %v1555
      %v1557 = vpop.f32.mrb[0].mxu0
      %v1558 = vadd.f32 %v1436, %v1557
      %1559 = vmatprep.mubr.bf16.mxu0 %v1509
      %1560 = vmatmul.mubr.bf16.gmra.mrb[0].mxu0 %v1494
      %v1561 = vpop.f32.mrb[0].mxu0
      %v1562 = vadd.f32 %v1441, %v1561
      %v1563 = vpop.f32.mrb[0].mxu0
      %v1564 = vadd.f32 %v1441, %v1563
      %v1565 = vpop.f32.mrb[0].mxu0
      %v1566 = vadd.f32 %v1446, %v1565
      %v1567 = vpop.f32.mrb[0].mxu0
      %v1568 = vadd.f32 %v1446, %v1567
      %1569 = vmatprep.mubr.bf16.mxu0 %v1512
      %1570 = vmatmul.mubr.bf16.gmra.mrb[0].mxu0 %v1496
      %v1571 = vpop.f32.mrb[0].mxu0
      %v1572 = vadd.f32 %v1451, %v1571
      %v1573 = vpop.f32.mrb[0].mxu0
      %v1574 = vadd.f32 %v1451, %v1573
      %v1575 = vpop.f32.mrb[0].mxu0
      %v1576 = vadd.f32 %v1456, %v1575
      %v1577 = vpop.f32.mrb[0].mxu0
      %v1578 = vadd.f32 %v1456, %v1577
      %1579 = vmatprep.mubr.bf16.mxu0 %v1515
      %1580 = vmatmul.mubr.bf16.gmra.mrb[0].mxu0 %v1498
      %v1581 = vpop.f32.mrb[0].mxu0
      %v1582 = vadd.f32 %v1461, %v1581
      %v1583 = vpop.f32.mrb[0].mxu0
      %v1584 = vadd.f32 %v1461, %v1583
      %v1585 = vpop.f32.mrb[0].mxu0
      %v1586 = vadd.f32 %v1466, %v1585
      %v1587 = vpop.f32.mrb[0].mxu0
      %v1588 = vadd.f32 %v1466, %v1587
      %1589 = vdwg.mxu0
      %v1590 = vmax.f32 %v1552, 0.0
      %v1591 = vmax.f32 %v1554, 0.0
      %v1592 = vmax.f32 %v1556, 0.0
      %v1593 = vmax.f32 %v1558, 0.0
      %v1594 = vmax.f32 %v1562, 0.0
      %v1595 = vmax.f32 %v1564, 0.0
      %v1596 = vmax.f32 %v1566, 0.0
      %v1597 = vmax.f32 %v1568, 0.0
      %v1598 = vmax.f32 %v1572, 0.0
      %v1599 = vmax.f32 %v1574, 0.0
      %v1600 = vmax.f32 %v1576, 0.0
      %v1601 = vmax.f32 %v1578, 0.0
      %v1602 = vmax.f32 %v1582, 0.0
      %v1603 = vmax.f32 %v1584, 0.0
      %v1604 = vmax.f32 %v1586, 0.0
      %v1605 = vmax.f32 %v1588, 0.0
      %1606 = vrot.lane.b32.xlu0 %v1590, 17
      %v1607 = vpop.permute.xlu0 %1606
      %1608 = vrot.lane.b32.xlu0 %v1592, 17
      %v1609 = vpop.permute.xlu0 %1608
      %1610 = vrot.lane.b32.xlu0 %v1594, 17
      %v1611 = vpop.permute.xlu0 %1610
      %1612 = vrot.lane.b32.xlu0 %v1596, 17
      %v1613 = vpop.permute.xlu0 %1612
      %1614 = vrot.lane.b32.xlu0 %v1598, 17
      %v1615 = vpop.permute.xlu0 %1614
      %1616 = vrot.lane.b32.xlu0 %v1600, 17
      %v1617 = vpop.permute.xlu0 %1616
      %1618 = vrot.lane.b32.xlu0 %v1602, 17
      %v1619 = vpop.permute.xlu0 %1618
      %1620 = vrot.lane.b32.xlu0 %v1604, 17
      %v1621 = vpop.permute.xlu0 %1620
      %1622 = vrot.lane.b32.xlu0 %v1591, 17
      %v1623 = vpop.permute.xlu0 %1622
      %1624 = vrot.lane.b32.xlu0 %v1593, 17
      %v1625 = vpop.permute.xlu0 %1624
      %1626 = vrot.lane.b32.xlu0 %v1595, 17
      %v1627 = vpop.permute.xlu0 %1626
      %1628 = vrot.lane.b32.xlu0 %v1597, 17
      %v1629 = vpop.permute.xlu0 %1628
      %1630 = vrot.lane.b32.xlu0 %v1599, 17
      %v1631 = vpop.permute.xlu0 %1630
      %1632 = vrot.lane.b32.xlu0 %v1601, 17
      %v1633 = vpop.permute.xlu0 %1632
      %1634 = vrot.lane.b32.xlu0 %v1603, 17
      %v1635 = vpop.permute.xlu0 %1634
      %1636 = vrot.lane.b32.xlu0 %v1605, 17
      %v1637 = vpop.permute.xlu0 %1636
      %v1638 = vsel %vm1230, %v1607, %v1623
      %v1639 = vsel %vm1230, %v1609, %v1625
      %v1640 = vsel %vm1230, %v1611, %v1627
      %v1641 = vsel %vm1230, %v1613, %v1629
      %v1642 = vsel %vm1230, %v1615, %v1631
      %v1643 = vsel %vm1230, %v1617, %v1633
      %v1644 = vsel %vm1230, %v1619, %v1635
      %v1645 = vsel %vm1230, %v1621, %v1637
      %v1646 = vsel %vm1230, %v1623, %v1607
      %v1647 = vsel %vm1230, %v1625, %v1609
      %v1648 = vsel %vm1230, %v1627, %v1611
      %v1649 = vsel %vm1230, %v1629, %v1613
      %v1650 = vsel %vm1230, %v1631, %v1615
      %v1651 = vsel %vm1230, %v1633, %v1617
      %v1652 = vsel %vm1230, %v1635, %v1619
      %v1653 = vsel %vm1230, %v1637, %v1621
      %v1654 = vmul.f32 %v1646, %v1140
      %v1655 = vmul.f32 %v1638, %v1141
      %v1656 = vmul.f32 %v1647, %v1140
      %v1657 = vmul.f32 %v1639, %v1141
      %v1658 = vmul.f32 %v1648, %v1140
      %v1659 = vmul.f32 %v1640, %v1141
      %v1660 = vmul.f32 %v1649, %v1140
      %v1661 = vmul.f32 %v1641, %v1141
      %v1662 = vmul.f32 %v1650, %v1140
      %v1663 = vmul.f32 %v1642, %v1141
      %v1664 = vmul.f32 %v1651, %v1140
      %v1665 = vmul.f32 %v1643, %v1141
      %v1666 = vmul.f32 %v1652, %v1140
      %v1667 = vmul.f32 %v1644, %v1141
      %v1668 = vmul.f32 %v1653, %v1140
      %v1669 = vmul.f32 %v1645, %v1141
      %v1670 = vpack.c.bf16 %v1656, %v1654
      %v1671 = vpack.c.bf16 %v1657, %v1655
      %v1672 = vpack.c.bf16 %v1660, %v1658
      %v1673 = vpack.c.bf16 %v1661, %v1659
      %v1674 = vpack.c.bf16 %v1664, %v1662
      %v1675 = vpack.c.bf16 %v1665, %v1663
      %v1676 = vpack.c.bf16 %v1668, %v1666
      %v1677 = vpack.c.bf16 %v1669, %v1667
      %1678 = vst [vmem:[#allocation3] sm:$0xff] %v1670
      %1679 = vst [vmem:[#allocation3 + $0x8] sm:$0xff] %v1671
      %1680 = vst [vmem:[#allocation3 + $0x10] sm:$0xff] %v1672
      %1681 = vst [vmem:[#allocation3 + $0x18] sm:$0xff] %v1673
      %1682 = vst [vmem:[#allocation3 + $0x20] sm:$0xff] %v1674
      %1683 = vst [vmem:[#allocation3 + $0x28] sm:$0xff] %v1675
      %1684 = vst [vmem:[#allocation3 + $0x30] sm:$0xff] %v1676
      %1685 = vst [vmem:[#allocation3 + $0x38] sm:$0xff] %v1677
      %1686 = vrot.lane.b32.xlu0 %v1590, 16
      %v1687 = vpop.permute.xlu0 %1686
      %1688 = vrot.lane.b32.xlu0 %v1592, 16
      %v1689 = vpop.permute.xlu0 %1688
      %1690 = vrot.lane.b32.xlu0 %v1594, 16
      %v1691 = vpop.permute.xlu0 %1690
      %1692 = vrot.lane.b32.xlu0 %v1596, 16
      %v1693 = vpop.permute.xlu0 %1692
      %1694 = vrot.lane.b32.xlu0 %v1598, 16
      %v1695 = vpop.permute.xlu0 %1694
      %1696 = vrot.lane.b32.xlu0 %v1600, 16
      %v1697 = vpop.permute.xlu0 %1696
      %1698 = vrot.lane.b32.xlu0 %v1602, 16
      %v1699 = vpop.permute.xlu0 %1698
      %1700 = vrot.lane.b32.xlu0 %v1604, 16
      %v1701 = vpop.permute.xlu0 %1700
      %1702 = vrot.lane.b32.xlu0 %v1591, 16
      %v1703 = vpop.permute.xlu0 %1702
      %1704 = vrot.lane.b32.xlu0 %v1593, 16
      %v1705 = vpop.permute.xlu0 %1704
      %1706 = vrot.lane.b32.xlu0 %v1595, 16
      %v1707 = vpop.permute.xlu0 %1706
      %1708 = vrot.lane.b32.xlu0 %v1597, 16
      %v1709 = vpop.permute.xlu0 %1708
      %1710 = vrot.lane.b32.xlu0 %v1599, 16
      %v1711 = vpop.permute.xlu0 %1710
      %1712 = vrot.lane.b32.xlu0 %v1601, 16
      %v1713 = vpop.permute.xlu0 %1712
      %1714 = vrot.lane.b32.xlu0 %v1603, 16
      %v1715 = vpop.permute.xlu0 %1714
      %1716 = vrot.lane.b32.xlu0 %v1605, 16
      %v1717 = vpop.permute.xlu0 %1716
      %v1718 = vsel %vm1251, %v1687, %v1703
      %v1719 = vsel %vm1251, %v1689, %v1705
      %v1720 = vsel %vm1251, %v1691, %v1707
      %v1721 = vsel %vm1251, %v1693, %v1709
      %v1722 = vsel %vm1251, %v1695, %v1711
      %v1723 = vsel %vm1251, %v1697, %v1713
      %v1724 = vsel %vm1251, %v1699, %v1715
      %v1725 = vsel %vm1251, %v1701, %v1717
      %v1726 = vsel %vm1251, %v1703, %v1687
      %v1727 = vsel %vm1251, %v1705, %v1689
      %v1728 = vsel %vm1251, %v1707, %v1691
      %v1729 = vsel %vm1251, %v1709, %v1693
      %v1730 = vsel %vm1251, %v1711, %v1695
      %v1731 = vsel %vm1251, %v1713, %v1697
      %v1732 = vsel %vm1251, %v1715, %v1699
      %v1733 = vsel %vm1251, %v1717, %v1701
      %v1734 = vmul.f32 %v1726, %v1152
      %v1735 = vmul.f32 %v1718, %v1153
      %v1736 = vmul.f32 %v1727, %v1152
      %v1737 = vmul.f32 %v1719, %v1153
      %v1738 = vmul.f32 %v1728, %v1152
      %v1739 = vmul.f32 %v1720, %v1153
      %v1740 = vmul.f32 %v1729, %v1152
      %v1741 = vmul.f32 %v1721, %v1153
      %v1742 = vmul.f32 %v1730, %v1152
      %v1743 = vmul.f32 %v1722, %v1153
      %v1744 = vmul.f32 %v1731, %v1152
      %v1745 = vmul.f32 %v1723, %v1153
      %v1746 = vmul.f32 %v1732, %v1152
      %v1747 = vmul.f32 %v1724, %v1153
      %v1748 = vmul.f32 %v1733, %v1152
      %v1749 = vmul.f32 %v1725, %v1153
      %v1750 = vpack.c.bf16 %v1736, %v1734
      %v1751 = vpack.c.bf16 %v1737, %v1735
      %v1752 = vpack.c.bf16 %v1740, %v1738
      %v1753 = vpack.c.bf16 %v1741, %v1739
      %v1754 = vpack.c.bf16 %v1744, %v1742
      %v1755 = vpack.c.bf16 %v1745, %v1743
      %v1756 = vpack.c.bf16 %v1748, %v1746
      %v1757 = vpack.c.bf16 %v1749, %v1747
      %1758 = vst [vmem:[#allocation3 + $0x40] sm:$0xff] %v1750
      %1759 = vst [vmem:[#allocation3 + $0x48] sm:$0xff] %v1751
      %1760 = vst [vmem:[#allocation3 + $0x50] sm:$0xff] %v1752
      %1761 = vst [vmem:[#allocation3 + $0x58] sm:$0xff] %v1753
      %1762 = vst [vmem:[#allocation3 + $0x60] sm:$0xff] %v1754
      %1763 = vst [vmem:[#allocation3 + $0x68] sm:$0xff] %v1755
      %1764 = vst [vmem:[#allocation3 + $0x70] sm:$0xff] %v1756
      %1765 = vst [vmem:[#allocation3 + $0x78] sm:$0xff] %v1757
      %1766 = vrot.lane.b32.xlu0 %v1590, 15
      %v1767 = vpop.permute.xlu0 %1766
      %1768 = vrot.lane.b32.xlu0 %v1592, 15
      %v1769 = vpop.permute.xlu0 %1768
      %1770 = vrot.lane.b32.xlu0 %v1594, 15
      %v1771 = vpop.permute.xlu0 %1770
      %1772 = vrot.lane.b32.xlu0 %v1596, 15
      %v1773 = vpop.permute.xlu0 %1772
      %1774 = vrot.lane.b32.xlu0 %v1598, 15
      %v1775 = vpop.permute.xlu0 %1774
      %1776 = vrot.lane.b32.xlu0 %v1600, 15
      %v1777 = vpop.permute.xlu0 %1776
      %1778 = vrot.lane.b32.xlu0 %v1602, 15
      %v1779 = vpop.permute.xlu0 %1778
      %1780 = vrot.lane.b32.xlu0 %v1604, 15
      %v1781 = vpop.permute.xlu0 %1780
      %1782 = vrot.lane.b32.xlu0 %v1591, 15
      %v1783 = vpop.permute.xlu0 %1782
      %1784 = vrot.lane.b32.xlu0 %v1593, 15
      %v1785 = vpop.permute.xlu0 %1784
      %1786 = vrot.lane.b32.xlu0 %v1595, 15
      %v1787 = vpop.permute.xlu0 %1786
      %1788 = vrot.lane.b32.xlu0 %v1597, 15
      %v1789 = vpop.permute.xlu0 %1788
      %1790 = vrot.lane.b32.xlu0 %v1599, 15
      %v1791 = vpop.permute.xlu0 %1790
      %1792 = vrot.lane.b32.xlu0 %v1601, 15
      %v1793 = vpop.permute.xlu0 %1792
      %1794 = vrot.lane.b32.xlu0 %v1603, 15
      %v1795 = vpop.permute.xlu0 %1794
      %1796 = vrot.lane.b32.xlu0 %v1605, 15
      %v1797 = vpop.permute.xlu0 %1796
      %v1798 = vsel %vm1272, %v1767, %v1783
      %v1799 = vsel %vm1272, %v1769, %v1785
      %v1800 = vsel %vm1272, %v1771, %v1787
      %v1801 = vsel %vm1272, %v1773, %v1789
      %v1802 = vsel %vm1272, %v1775, %v1791
      %v1803 = vsel %vm1272, %v1777, %v1793
      %v1804 = vsel %vm1272, %v1779, %v1795
      %v1805 = vsel %vm1272, %v1781, %v1797
      %v1806 = vsel %vm1272, %v1783, %v1767
      %v1807 = vsel %vm1272, %v1785, %v1769
      %v1808 = vsel %vm1272, %v1787, %v1771
      %v1809 = vsel %vm1272, %v1789, %v1773
      %v1810 = vsel %vm1272, %v1791, %v1775
      %v1811 = vsel %vm1272, %v1793, %v1777
      %v1812 = vsel %vm1272, %v1795, %v1779
      %v1813 = vsel %vm1272, %v1797, %v1781
      %v1814 = vmul.f32 %v1806, %v1166
      %v1815 = vmul.f32 %v1798, %v1167
      %v1816 = vmul.f32 %v1807, %v1166
      %v1817 = vmul.f32 %v1799, %v1167
      %v1818 = vmul.f32 %v1808, %v1166
      %v1819 = vmul.f32 %v1800, %v1167
      %v1820 = vmul.f32 %v1809, %v1166
      %v1821 = vmul.f32 %v1801, %v1167
      %v1822 = vmul.f32 %v1810, %v1166
      %v1823 = vmul.f32 %v1802, %v1167
      %v1824 = vmul.f32 %v1811, %v1166
      %v1825 = vmul.f32 %v1803, %v1167
      %v1826 = vmul.f32 %v1812, %v1166
      %v1827 = vmul.f32 %v1804, %v1167
      %v1828 = vmul.f32 %v1813, %v1166
      %v1829 = vmul.f32 %v1805, %v1167
      %v1830 = vpack.c.bf16 %v1816, %v1814
      %v1831 = vpack.c.bf16 %v1817, %v1815
      %v1832 = vpack.c.bf16 %v1820, %v1818
      %v1833 = vpack.c.bf16 %v1821, %v1819
      %v1834 = vpack.c.bf16 %v1824, %v1822
      %v1835 = vpack.c.bf16 %v1825, %v1823
      %v1836 = vpack.c.bf16 %v1828, %v1826
      %v1837 = vpack.c.bf16 %v1829, %v1827
      %1838 = vst [vmem:[#allocation3 + $0x80] sm:$0xff] %v1830
      %1839 = vst [vmem:[#allocation3 + $0x88] sm:$0xff] %v1831
      %1840 = vst [vmem:[#allocation3 + $0x90] sm:$0xff] %v1832
      %1841 = vst [vmem:[#allocation3 + $0x98] sm:$0xff] %v1833
      %1842 = vst [vmem:[#allocation3 + $0xa0] sm:$0xff] %v1834
      %1843 = vst [vmem:[#allocation3 + $0xa8] sm:$0xff] %v1835
      %1844 = vst [vmem:[#allocation3 + $0xb0] sm:$0xff] %v1836
      %1845 = vst [vmem:[#allocation3 + $0xb8] sm:$0xff] %v1837
      %1846 = vrot.lane.b32.xlu0 %v1590, 1
      %v1847 = vpop.permute.xlu0 %1846
      %1848 = vrot.lane.b32.xlu0 %v1592, 1
      %v1849 = vpop.permute.xlu0 %1848
      %1850 = vrot.lane.b32.xlu0 %v1594, 1
      %v1851 = vpop.permute.xlu0 %1850
      %1852 = vrot.lane.b32.xlu0 %v1596, 1
      %v1853 = vpop.permute.xlu0 %1852
      %1854 = vrot.lane.b32.xlu0 %v1598, 1
      %v1855 = vpop.permute.xlu0 %1854
      %1856 = vrot.lane.b32.xlu0 %v1600, 1
      %v1857 = vpop.permute.xlu0 %1856
      %1858 = vrot.lane.b32.xlu0 %v1602, 1
      %v1859 = vpop.permute.xlu0 %1858
      %1860 = vrot.lane.b32.xlu0 %v1604, 1
      %v1861 = vpop.permute.xlu0 %1860
      %1862 = vrot.lane.b32.xlu0 %v1591, 1
      %v1863 = vpop.permute.xlu0 %1862
      %1864 = vrot.lane.b32.xlu0 %v1593, 1
      %v1865 = vpop.permute.xlu0 %1864
      %1866 = vrot.lane.b32.xlu0 %v1595, 1
      %v1867 = vpop.permute.xlu0 %1866
      %1868 = vrot.lane.b32.xlu0 %v1597, 1
      %v1869 = vpop.permute.xlu0 %1868
      %1870 = vrot.lane.b32.xlu0 %v1599, 1
      %v1871 = vpop.permute.xlu0 %1870
      %1872 = vrot.lane.b32.xlu0 %v1601, 1
      %v1873 = vpop.permute.xlu0 %1872
      %1874 = vrot.lane.b32.xlu0 %v1603, 1
      %v1875 = vpop.permute.xlu0 %1874
      %1876 = vrot.lane.b32.xlu0 %v1605, 1
      %v1877 = vpop.permute.xlu0 %1876
      %v1878 = vsel %vm1293, %v1847, %v1863
      %v1879 = vsel %vm1293, %v1849, %v1865
      %v1880 = vsel %vm1293, %v1851, %v1867
      %v1881 = vsel %vm1293, %v1853, %v1869
      %v1882 = vsel %vm1293, %v1855, %v1871
      %v1883 = vsel %vm1293, %v1857, %v1873
      %v1884 = vsel %vm1293, %v1859, %v1875
      %v1885 = vsel %vm1293, %v1861, %v1877
      %v1886 = vsel %vm1293, %v1863, %v1847
      %v1887 = vsel %vm1293, %v1865, %v1849
      %v1888 = vsel %vm1293, %v1867, %v1851
      %v1889 = vsel %vm1293, %v1869, %v1853
      %v1890 = vsel %vm1293, %v1871, %v1855
      %v1891 = vsel %vm1293, %v1873, %v1857
      %v1892 = vsel %vm1293, %v1875, %v1859
      %v1893 = vsel %vm1293, %v1877, %v1861
      %v1894 = vmul.f32 %v1886, %v1180
      %v1895 = vmul.f32 %v1878, %v1181
      %v1896 = vmul.f32 %v1887, %v1180
      %v1897 = vmul.f32 %v1879, %v1181
      %v1898 = vmul.f32 %v1888, %v1180
      %v1899 = vmul.f32 %v1880, %v1181
      %v1900 = vmul.f32 %v1889, %v1180
      %v1901 = vmul.f32 %v1881, %v1181
      %v1902 = vmul.f32 %v1890, %v1180
      %v1903 = vmul.f32 %v1882, %v1181
      %v1904 = vmul.f32 %v1891, %v1180
      %v1905 = vmul.f32 %v1883, %v1181
      %v1906 = vmul.f32 %v1892, %v1180
      %v1907 = vmul.f32 %v1884, %v1181
      %v1908 = vmul.f32 %v1893, %v1180
      %v1909 = vmul.f32 %v1885, %v1181
      %v1910 = vpack.c.bf16 %v1896, %v1894
      %v1911 = vpack.c.bf16 %v1897, %v1895
      %v1912 = vpack.c.bf16 %v1900, %v1898
      %v1913 = vpack.c.bf16 %v1901, %v1899
      %v1914 = vpack.c.bf16 %v1904, %v1902
      %v1915 = vpack.c.bf16 %v1905, %v1903
      %v1916 = vpack.c.bf16 %v1908, %v1906
      %v1917 = vpack.c.bf16 %v1909, %v1907
      %1918 = vst [vmem:[#allocation3 + $0xc0] sm:$0xff] %v1910
      %1919 = vst [vmem:[#allocation3 + $0xc8] sm:$0xff] %v1911
      %1920 = vst [vmem:[#allocation3 + $0xd0] sm:$0xff] %v1912
      %1921 = vst [vmem:[#allocation3 + $0xd8] sm:$0xff] %v1913
      %1922 = vst [vmem:[#allocation3 + $0xe0] sm:$0xff] %v1914
      %1923 = vst [vmem:[#allocation3 + $0xe8] sm:$0xff] %v1915
      %1924 = vst [vmem:[#allocation3 + $0xf0] sm:$0xff] %v1916
      %1925 = vst [vmem:[#allocation3 + $0xf8] sm:$0xff] %v1917
      %v1926 = vpack.c.bf16 %v1592, %v1590
      %v1927 = vpack.c.bf16 %v1593, %v1591
      %v1928 = vpack.c.bf16 %v1596, %v1594
      %v1929 = vpack.c.bf16 %v1597, %v1595
      %v1930 = vpack.c.bf16 %v1600, %v1598
      %v1931 = vpack.c.bf16 %v1601, %v1599
      %v1932 = vpack.c.bf16 %v1604, %v1602
      %v1933 = vpack.c.bf16 %v1605, %v1603
      %1934 = vst [vmem:[#allocation3 + $0x100] sm:$0xff] %v1926
      %1935 = vst [vmem:[#allocation3 + $0x108] sm:$0xff] %v1927
      %1936 = vst [vmem:[#allocation3 + $0x110] sm:$0xff] %v1928
      %1937 = vst [vmem:[#allocation3 + $0x118] sm:$0xff] %v1929
      %1938 = vst [vmem:[#allocation3 + $0x120] sm:$0xff] %v1930
      %1939 = vst [vmem:[#allocation3 + $0x128] sm:$0xff] %v1931
      %1940 = vst [vmem:[#allocation3 + $0x130] sm:$0xff] %v1932
      %1941 = vst [vmem:[#allocation3 + $0x138] sm:$0xff] %v1933
      %1942 = vrot.lane.b32.xlu0 %v1590, 127
      %v1943 = vpop.permute.xlu0 %1942
      %1944 = vrot.lane.b32.xlu0 %v1592, 127
      %v1945 = vpop.permute.xlu0 %1944
      %1946 = vrot.lane.b32.xlu0 %v1594, 127
      %v1947 = vpop.permute.xlu0 %1946
      %1948 = vrot.lane.b32.xlu0 %v1596, 127
      %v1949 = vpop.permute.xlu0 %1948
      %1950 = vrot.lane.b32.xlu0 %v1598, 127
      %v1951 = vpop.permute.xlu0 %1950
      %1952 = vrot.lane.b32.xlu0 %v1600, 127
      %v1953 = vpop.permute.xlu0 %1952
      %1954 = vrot.lane.b32.xlu0 %v1602, 127
      %v1955 = vpop.permute.xlu0 %1954
      %1956 = vrot.lane.b32.xlu0 %v1604, 127
      %v1957 = vpop.permute.xlu0 %1956
      %1958 = vrot.lane.b32.xlu0 %v1591, 127
      %v1959 = vpop.permute.xlu0 %1958
      %1960 = vrot.lane.b32.xlu0 %v1593, 127
      %v1961 = vpop.permute.xlu0 %1960
      %1962 = vrot.lane.b32.xlu0 %v1595, 127
      %v1963 = vpop.permute.xlu0 %1962
      %1964 = vrot.lane.b32.xlu0 %v1597, 127
      %v1965 = vpop.permute.xlu0 %1964
      %1966 = vrot.lane.b32.xlu0 %v1599, 127
      %v1967 = vpop.permute.xlu0 %1966
      %1968 = vrot.lane.b32.xlu0 %v1601, 127
      %v1969 = vpop.permute.xlu0 %1968
      %1970 = vrot.lane.b32.xlu0 %v1603, 127
      %v1971 = vpop.permute.xlu0 %1970
      %1972 = vrot.lane.b32.xlu0 %v1605, 127
      %v1973 = vpop.permute.xlu0 %1972
      %v1974 = vsel %vm1318, %v1943, %v1959
      %v1975 = vsel %vm1318, %v1945, %v1961
      %v1976 = vsel %vm1318, %v1947, %v1963
      %v1977 = vsel %vm1318, %v1949, %v1965
      %v1978 = vsel %vm1318, %v1951, %v1967
      %v1979 = vsel %vm1318, %v1953, %v1969
      %v1980 = vsel %vm1318, %v1955, %v1971
      %v1981 = vsel %vm1318, %v1957, %v1973
      %v1982 = vsel %vm1318, %v1959, %v1943
      %v1983 = vsel %vm1318, %v1961, %v1945
      %v1984 = vsel %vm1318, %v1963, %v1947
      %v1985 = vsel %vm1318, %v1965, %v1949
      %v1986 = vsel %vm1318, %v1967, %v1951
      %v1987 = vsel %vm1318, %v1969, %v1953
      %v1988 = vsel %vm1318, %v1971, %v1955
      %v1989 = vsel %vm1318, %v1973, %v1957
      %v1990 = vmul.f32 %v1974, %v1188
      %v1991 = vmul.f32 %v1982, %v1189
      %v1992 = vmul.f32 %v1975, %v1188
      %v1993 = vmul.f32 %v1983, %v1189
      %v1994 = vmul.f32 %v1976, %v1188
      %v1995 = vmul.f32 %v1984, %v1189
      %v1996 = vmul.f32 %v1977, %v1188
      %v1997 = vmul.f32 %v1985, %v1189
      %v1998 = vmul.f32 %v1978, %v1188
      %v1999 = vmul.f32 %v1986, %v1189
      %v2000 = vmul.f32 %v1979, %v1188
      %v2001 = vmul.f32 %v1987, %v1189
      %v2002 = vmul.f32 %v1980, %v1188
      %v2003 = vmul.f32 %v1988, %v1189
      %v2004 = vmul.f32 %v1981, %v1188
      %v2005 = vmul.f32 %v1989, %v1189
      %v2006 = vpack.c.bf16 %v1992, %v1990
      %v2007 = vpack.c.bf16 %v1993, %v1991
      %v2008 = vpack.c.bf16 %v1996, %v1994
      %v2009 = vpack.c.bf16 %v1997, %v1995
      %v2010 = vpack.c.bf16 %v2000, %v1998
      %v2011 = vpack.c.bf16 %v2001, %v1999
      %v2012 = vpack.c.bf16 %v2004, %v2002
      %v2013 = vpack.c.bf16 %v2005, %v2003
      %2014 = vst [vmem:[#allocation3 + $0x140] sm:$0xff] %v2006
      %2015 = vst [vmem:[#allocation3 + $0x148] sm:$0xff] %v2007
      %2016 = vst [vmem:[#allocation3 + $0x150] sm:$0xff] %v2008
      %2017 = vst [vmem:[#allocation3 + $0x158] sm:$0xff] %v2009
      %2018 = vst [vmem:[#allocation3 + $0x160] sm:$0xff] %v2010
      %2019 = vst [vmem:[#allocation3 + $0x168] sm:$0xff] %v2011
      %2020 = vst [vmem:[#allocation3 + $0x170] sm:$0xff] %v2012
      %2021 = vst [vmem:[#allocation3 + $0x178] sm:$0xff] %v2013
      %2022 = vrot.lane.b32.xlu0 %v1590, 113
      %v2023 = vpop.permute.xlu0 %2022
      %2024 = vrot.lane.b32.xlu0 %v1592, 113
      %v2025 = vpop.permute.xlu0 %2024
      %2026 = vrot.lane.b32.xlu0 %v1594, 113
      %v2027 = vpop.permute.xlu0 %2026
      %2028 = vrot.lane.b32.xlu0 %v1596, 113
      %v2029 = vpop.permute.xlu0 %2028
      %2030 = vrot.lane.b32.xlu0 %v1598, 113
      %v2031 = vpop.permute.xlu0 %2030
      %2032 = vrot.lane.b32.xlu0 %v1600, 113
      %v2033 = vpop.permute.xlu0 %2032
      %2034 = vrot.lane.b32.xlu0 %v1602, 113
      %v2035 = vpop.permute.xlu0 %2034
      %2036 = vrot.lane.b32.xlu0 %v1604, 113
      %v2037 = vpop.permute.xlu0 %2036
      %2038 = vrot.lane.b32.xlu0 %v1591, 113
      %v2039 = vpop.permute.xlu0 %2038
      %2040 = vrot.lane.b32.xlu0 %v1593, 113
      %v2041 = vpop.permute.xlu0 %2040
      %2042 = vrot.lane.b32.xlu0 %v1595, 113
      %v2043 = vpop.permute.xlu0 %2042
      %2044 = vrot.lane.b32.xlu0 %v1597, 113
      %v2045 = vpop.permute.xlu0 %2044
      %2046 = vrot.lane.b32.xlu0 %v1599, 113
      %v2047 = vpop.permute.xlu0 %2046
      %2048 = vrot.lane.b32.xlu0 %v1601, 113
      %v2049 = vpop.permute.xlu0 %2048
      %2050 = vrot.lane.b32.xlu0 %v1603, 113
      %v2051 = vpop.permute.xlu0 %2050
      %2052 = vrot.lane.b32.xlu0 %v1605, 113
      %v2053 = vpop.permute.xlu0 %2052
      %v2054 = vsel %vm1339, %v2023, %v2039
      %v2055 = vsel %vm1339, %v2025, %v2041
      %v2056 = vsel %vm1339, %v2027, %v2043
      %v2057 = vsel %vm1339, %v2029, %v2045
      %v2058 = vsel %vm1339, %v2031, %v2047
      %v2059 = vsel %vm1339, %v2033, %v2049
      %v2060 = vsel %vm1339, %v2035, %v2051
      %v2061 = vsel %vm1339, %v2037, %v2053
      %v2062 = vsel %vm1339, %v2039, %v2023
      %v2063 = vsel %vm1339, %v2041, %v2025
      %v2064 = vsel %vm1339, %v2043, %v2027
      %v2065 = vsel %vm1339, %v2045, %v2029
      %v2066 = vsel %vm1339, %v2047, %v2031
      %v2067 = vsel %vm1339, %v2049, %v2033
      %v2068 = vsel %vm1339, %v2051, %v2035
      %v2069 = vsel %vm1339, %v2053, %v2037
      %v2070 = vmul.f32 %v2054, %v1204
      %v2071 = vmul.f32 %v2062, %v1205
      %v2072 = vmul.f32 %v2055, %v1204
      %v2073 = vmul.f32 %v2063, %v1205
      %v2074 = vmul.f32 %v2056, %v1204
      %v2075 = vmul.f32 %v2064, %v1205
      %v2076 = vmul.f32 %v2057, %v1204
      %v2077 = vmul.f32 %v2065, %v1205
      %v2078 = vmul.f32 %v2058, %v1204
      %v2079 = vmul.f32 %v2066, %v1205
      %v2080 = vmul.f32 %v2059, %v1204
      %v2081 = vmul.f32 %v2067, %v1205
      %v2082 = vmul.f32 %v2060, %v1204
      %v2083 = vmul.f32 %v2068, %v1205
      %v2084 = vmul.f32 %v2061, %v1204
      %v2085 = vmul.f32 %v2069, %v1205
      %v2086 = vpack.c.bf16 %v2072, %v2070
      %v2087 = vpack.c.bf16 %v2073, %v2071
      %v2088 = vpack.c.bf16 %v2076, %v2074
      %v2089 = vpack.c.bf16 %v2077, %v2075
      %v2090 = vpack.c.bf16 %v2080, %v2078
      %v2091 = vpack.c.bf16 %v2081, %v2079
      %v2092 = vpack.c.bf16 %v2084, %v2082
      %v2093 = vpack.c.bf16 %v2085, %v2083
      %2094 = vst [vmem:[#allocation3 + $0x180] sm:$0xff] %v2086
      %2095 = vst [vmem:[#allocation3 + $0x188] sm:$0xff] %v2087
      %2096 = vst [vmem:[#allocation3 + $0x190] sm:$0xff] %v2088
      %2097 = vst [vmem:[#allocation3 + $0x198] sm:$0xff] %v2089
      %2098 = vst [vmem:[#allocation3 + $0x1a0] sm:$0xff] %v2090
      %2099 = vst [vmem:[#allocation3 + $0x1a8] sm:$0xff] %v2091
      %2100 = vst [vmem:[#allocation3 + $0x1b0] sm:$0xff] %v2092
      %2101 = vst [vmem:[#allocation3 + $0x1b8] sm:$0xff] %v2093
      %2102 = vrot.lane.b32.xlu0 %v1590, 112
      %v2103 = vpop.permute.xlu0 %2102
      %2104 = vrot.lane.b32.xlu0 %v1592, 112
      %v2105 = vpop.permute.xlu0 %2104
      %2106 = vrot.lane.b32.xlu0 %v1594, 112
      %v2107 = vpop.permute.xlu0 %2106
      %2108 = vrot.lane.b32.xlu0 %v1596, 112
      %v2109 = vpop.permute.xlu0 %2108
      %2110 = vrot.lane.b32.xlu0 %v1598, 112
      %v2111 = vpop.permute.xlu0 %2110
      %2112 = vrot.lane.b32.xlu0 %v1600, 112
      %v2113 = vpop.permute.xlu0 %2112
      %2114 = vrot.lane.b32.xlu0 %v1602, 112
      %v2115 = vpop.permute.xlu0 %2114
      %2116 = vrot.lane.b32.xlu0 %v1604, 112
      %v2117 = vpop.permute.xlu0 %2116
      %2118 = vrot.lane.b32.xlu0 %v1591, 112
      %v2119 = vpop.permute.xlu0 %2118
      %2120 = vrot.lane.b32.xlu0 %v1593, 112
      %v2121 = vpop.permute.xlu0 %2120
      %2122 = vrot.lane.b32.xlu0 %v1595, 112
      %v2123 = vpop.permute.xlu0 %2122
      %2124 = vrot.lane.b32.xlu0 %v1597, 112
      %v2125 = vpop.permute.xlu0 %2124
      %2126 = vrot.lane.b32.xlu0 %v1599, 112
      %v2127 = vpop.permute.xlu0 %2126
      %2128 = vrot.lane.b32.xlu0 %v1601, 112
      %v2129 = vpop.permute.xlu0 %2128
      %2130 = vrot.lane.b32.xlu0 %v1603, 112
      %v2131 = vpop.permute.xlu0 %2130
      %2132 = vrot.lane.b32.xlu0 %v1605, 112
      %v2133 = vpop.permute.xlu0 %2132
      %v2134 = vsel %vm1360, %v2103, %v2119
      %v2135 = vsel %vm1360, %v2105, %v2121
      %v2136 = vsel %vm1360, %v2107, %v2123
      %v2137 = vsel %vm1360, %v2109, %v2125
      %v2138 = vsel %vm1360, %v2111, %v2127
      %v2139 = vsel %vm1360, %v2113, %v2129
      %v2140 = vsel %vm1360, %v2115, %v2131
      %v2141 = vsel %vm1360, %v2117, %v2133
      %v2142 = vsel %vm1360, %v2119, %v2103
      %v2143 = vsel %vm1360, %v2121, %v2105
      %v2144 = vsel %vm1360, %v2123, %v2107
      %v2145 = vsel %vm1360, %v2125, %v2109
      %v2146 = vsel %vm1360, %v2127, %v2111
      %v2147 = vsel %vm1360, %v2129, %v2113
      %v2148 = vsel %vm1360, %v2131, %v2115
      %v2149 = vsel %vm1360, %v2133, %v2117
      %v2150 = vmul.f32 %v2134, %v1212
      %v2151 = vmul.f32 %v2142, %v1213
      %v2152 = vmul.f32 %v2135, %v1212
      %v2153 = vmul.f32 %v2143, %v1213
      %v2154 = vmul.f32 %v2136, %v1212
      %v2155 = vmul.f32 %v2144, %v1213
      %v2156 = vmul.f32 %v2137, %v1212
      %v2157 = vmul.f32 %v2145, %v1213
      %v2158 = vmul.f32 %v2138, %v1212
      %v2159 = vmul.f32 %v2146, %v1213
      %v2160 = vmul.f32 %v2139, %v1212
      %v2161 = vmul.f32 %v2147, %v1213
      %v2162 = vmul.f32 %v2140, %v1212
      %v2163 = vmul.f32 %v2148, %v1213
      %v2164 = vmul.f32 %v2141, %v1212
      %v2165 = vmul.f32 %v2149, %v1213
      %v2166 = vpack.c.bf16 %v2152, %v2150
      %v2167 = vpack.c.bf16 %v2153, %v2151
      %v2168 = vpack.c.bf16 %v2156, %v2154
      %v2169 = vpack.c.bf16 %v2157, %v2155
      %v2170 = vpack.c.bf16 %v2160, %v2158
      %v2171 = vpack.c.bf16 %v2161, %v2159
      %v2172 = vpack.c.bf16 %v2164, %v2162
      %v2173 = vpack.c.bf16 %v2165, %v2163
      %2174 = vst [vmem:[#allocation3 + $0x1c0] sm:$0xff] %v2166
      %2175 = vst [vmem:[#allocation3 + $0x1c8] sm:$0xff] %v2167
      %2176 = vst [vmem:[#allocation3 + $0x1d0] sm:$0xff] %v2168
      %2177 = vst [vmem:[#allocation3 + $0x1d8] sm:$0xff] %v2169
      %2178 = vst [vmem:[#allocation3 + $0x1e0] sm:$0xff] %v2170
      %2179 = vst [vmem:[#allocation3 + $0x1e8] sm:$0xff] %v2171
      %2180 = vst [vmem:[#allocation3 + $0x1f0] sm:$0xff] %v2172
      %2181 = vst [vmem:[#allocation3 + $0x1f8] sm:$0xff] %v2173
      %2182 = vrot.lane.b32.xlu0 %v1590, 111
      %v2183 = vpop.permute.xlu0 %2182
      %2184 = vrot.lane.b32.xlu0 %v1592, 111
      %v2185 = vpop.permute.xlu0 %2184
      %2186 = vrot.lane.b32.xlu0 %v1594, 111
      %v2187 = vpop.permute.xlu0 %2186
      %2188 = vrot.lane.b32.xlu0 %v1596, 111
      %v2189 = vpop.permute.xlu0 %2188
      %2190 = vrot.lane.b32.xlu0 %v1598, 111
      %v2191 = vpop.permute.xlu0 %2190
      %2192 = vrot.lane.b32.xlu0 %v1600, 111
      %v2193 = vpop.permute.xlu0 %2192
      %2194 = vrot.lane.b32.xlu0 %v1602, 111
      %v2195 = vpop.permute.xlu0 %2194
      %2196 = vrot.lane.b32.xlu0 %v1604, 111
      %v2197 = vpop.permute.xlu0 %2196
      %2198 = vrot.lane.b32.xlu0 %v1591, 111
      %v2199 = vpop.permute.xlu0 %2198
      %2200 = vrot.lane.b32.xlu0 %v1593, 111
      %v2201 = vpop.permute.xlu0 %2200
      %2202 = vrot.lane.b32.xlu0 %v1595, 111
      %v2203 = vpop.permute.xlu0 %2202
      %2204 = vrot.lane.b32.xlu0 %v1597, 111
      %v2205 = vpop.permute.xlu0 %2204
      %2206 = vrot.lane.b32.xlu0 %v1599, 111
      %v2207 = vpop.permute.xlu0 %2206
      %2208 = vrot.lane.b32.xlu0 %v1601, 111
      %v2209 = vpop.permute.xlu0 %2208
      %2210 = vrot.lane.b32.xlu0 %v1603, 111
      %v2211 = vpop.permute.xlu0 %2210
      %2212 = vrot.lane.b32.xlu0 %v1605, 111
      %v2213 = vpop.permute.xlu0 %2212
      %v2214 = vsel %vm1381, %v2183, %v2199
      %v2215 = vsel %vm1381, %v2185, %v2201
      %v2216 = vsel %vm1381, %v2187, %v2203
      %v2217 = vsel %vm1381, %v2189, %v2205
      %v2218 = vsel %vm1381, %v2191, %v2207
      %v2219 = vsel %vm1381, %v2193, %v2209
      %v2220 = vsel %vm1381, %v2195, %v2211
      %v2221 = vsel %vm1381, %v2197, %v2213
      %v2222 = vsel %vm1381, %v2199, %v2183
      %v2223 = vsel %vm1381, %v2201, %v2185
      %v2224 = vsel %vm1381, %v2203, %v2187
      %v2225 = vsel %vm1381, %v2205, %v2189
      %v2226 = vsel %vm1381, %v2207, %v2191
      %v2227 = vsel %vm1381, %v2209, %v2193
      %v2228 = vsel %vm1381, %v2211, %v2195
      %v2229 = vsel %vm1381, %v2213, %v2197
      %v2230 = vmul.f32 %v2214, %v1220
      %v2231 = vmul.f32 %v2222, %v1221
      %v2232 = vmul.f32 %v2215, %v1220
      %v2233 = vmul.f32 %v2223, %v1221
      %v2234 = vmul.f32 %v2216, %v1220
      %v2235 = vmul.f32 %v2224, %v1221
      %v2236 = vmul.f32 %v2217, %v1220
      %v2237 = vmul.f32 %v2225, %v1221
      %v2238 = vmul.f32 %v2218, %v1220
      %v2239 = vmul.f32 %v2226, %v1221
      %v2240 = vmul.f32 %v2219, %v1220
      %v2241 = vmul.f32 %v2227, %v1221
      %v2242 = vmul.f32 %v2220, %v1220
      %v2243 = vmul.f32 %v2228, %v1221
      %v2244 = vmul.f32 %v2221, %v1220
      %v2245 = vmul.f32 %v2229, %v1221
      %v2246 = vpack.c.bf16 %v2232, %v2230
      %v2247 = vpack.c.bf16 %v2233, %v2231
      %v2248 = vpack.c.bf16 %v2236, %v2234
      %v2249 = vpack.c.bf16 %v2237, %v2235
      %v2250 = vpack.c.bf16 %v2240, %v2238
      %v2251 = vpack.c.bf16 %v2241, %v2239
      %v2252 = vpack.c.bf16 %v2244, %v2242
      %v2253 = vpack.c.bf16 %v2245, %v2243
      %2254 = vst [vmem:[#allocation3 + $0x200] sm:$0xff] %v2246
      %2255 = vst [vmem:[#allocation3 + $0x208] sm:$0xff] %v2247
      %2256 = vst [vmem:[#allocation3 + $0x210] sm:$0xff] %v2248
      %2257 = vst [vmem:[#allocation3 + $0x218] sm:$0xff] %v2249
      %2258 = vst [vmem:[#allocation3 + $0x220] sm:$0xff] %v2250
      %2259 = vst [vmem:[#allocation3 + $0x228] sm:$0xff] %v2251
      %2260 = vst [vmem:[#allocation3 + $0x230] sm:$0xff] %v2252
      %2261 = vst [vmem:[#allocation3 + $0x238] sm:$0xff] %v2253
      %v2262 = vld [vmem:[%s9] sm:$0xff]
      %v2263 = vld [vmem:[%s9 + $0x8] sm:$0xff]
      %v2264 = vld [vmem:[%s9 + $0x10] sm:$0xf]
      %v2265 = vld [vmem:[%s9 + $0x14] sm:$0xff]
      %v2266 = vld [vmem:[%s9 + $0x1c] sm:$0xff]
      %v2267 = vld [vmem:[%s9 + $0x24] sm:$0xf]
      %v2268 = vld [vmem:[%s9 + $0x28] sm:$0xff]
      %v2269 = vld [vmem:[%s9 + $0x30] sm:$0xff]
      %v2270 = vld [vmem:[%s9 + $0x38] sm:$0xf]
      %v2271 = vld [vmem:[%s9 + $0x3c] sm:$0xff]
      %v2272 = vld [vmem:[%s9 + $0x44] sm:$0xff]
      %v2273 = vld [vmem:[%s9 + $0x4c] sm:$0xf]
      %v2274 = vld [vmem:[%s9 + $0x50] sm:$0xff]
      %v2275 = vld [vmem:[%s9 + $0x58] sm:$0xff]
      %v2276 = vld [vmem:[%s9 + $0x60] sm:$0xf]
      %v2277 = vld [vmem:[%s9 + $0x64] sm:$0xff]
      %v2278 = vld [vmem:[%s9 + $0x6c] sm:$0xff]
      %v2279 = vld [vmem:[%s9 + $0x74] sm:$0xf]
      %v2280 = vld [vmem:[%s9 + $0x78] sm:$0xff]
      %v2281 = vld [vmem:[%s9 + $0x80] sm:$0xff]
      %v2282 = vld [vmem:[%s9 + $0x88] sm:$0xf]
      %v2283 = vld [vmem:[%s9 + $0x8c] sm:$0xff]
      %v2284 = vld [vmem:[%s9 + $0x94] sm:$0xff]
      %v2285 = vld [vmem:[%s9 + $0x9c] sm:$0xf]
      %v2286 = vld [vmem:[#allocation3] sm:$0xff]
      %v2287 = vld [vmem:[#allocation3 + $0x8] sm:$0xff]
      %v2288 = vld [vmem:[#allocation3 + $0x10] sm:$0xff]
      %v2289 = vld [vmem:[#allocation3 + $0x18] sm:$0xff]
      %v2290 = vld [vmem:[#allocation3 + $0x20] sm:$0xff]
      %v2291 = vld [vmem:[#allocation3 + $0x28] sm:$0xff]
      %v2292 = vld [vmem:[#allocation3 + $0x30] sm:$0xff]
      %v2293 = vld [vmem:[#allocation3 + $0x38] sm:$0xff]
      %v2294 = vld [vmem:[#allocation3 + $0x40] sm:$0xff]
      %v2295 = vld [vmem:[#allocation3 + $0x48] sm:$0xff]
      %v2296 = vld [vmem:[#allocation3 + $0x50] sm:$0xff]
      %v2297 = vld [vmem:[#allocation3 + $0x58] sm:$0xff]
      %v2298 = vld [vmem:[#allocation3 + $0x60] sm:$0xff]
      %v2299 = vld [vmem:[#allocation3 + $0x68] sm:$0xff]
      %v2300 = vld [vmem:[#allocation3 + $0x70] sm:$0xff]
      %v2301 = vld [vmem:[#allocation3 + $0x78] sm:$0xff]
      %v2302 = vld [vmem:[#allocation3 + $0x80] sm:$0xff]
      %v2303 = vld [vmem:[#allocation3 + $0x88] sm:$0xff]
      %v2304 = vld [vmem:[#allocation3 + $0x90] sm:$0xff]
      %v2305 = vld [vmem:[#allocation3 + $0x98] sm:$0xff]
      %v2306 = vld [vmem:[#allocation3 + $0xa0] sm:$0xff]
      %v2307 = vld [vmem:[#allocation3 + $0xa8] sm:$0xff]
      %v2308 = vld [vmem:[#allocation3 + $0xb0] sm:$0xff]
      %v2309 = vld [vmem:[#allocation3 + $0xb8] sm:$0xff]
      %v2310 = vld [vmem:[#allocation3 + $0xc0] sm:$0xff]
      %v2311 = vld [vmem:[#allocation3 + $0xc8] sm:$0xff]
      %v2312 = vld [vmem:[#allocation3 + $0xd0] sm:$0xff]
      %v2313 = vld [vmem:[#allocation3 + $0xd8] sm:$0xff]
      %v2314 = vld [vmem:[#allocation3 + $0xe0] sm:$0xff]
      %v2315 = vld [vmem:[#allocation3 + $0xe8] sm:$0xff]
      %v2316 = vld [vmem:[#allocation3 + $0xf0] sm:$0xff]
      %v2317 = vld [vmem:[#allocation3 + $0xf8] sm:$0xff]
      %v2318 = vld [vmem:[#allocation3 + $0x100] sm:$0xff]
      %v2319 = vld [vmem:[#allocation3 + $0x108] sm:$0xff]
      %v2320 = vld [vmem:[#allocation3 + $0x110] sm:$0xff]
      %v2321 = vld [vmem:[#allocation3 + $0x118] sm:$0xff]
      %v2322 = vld [vmem:[#allocation3 + $0x120] sm:$0xff]
      %v2323 = vld [vmem:[#allocation3 + $0x128] sm:$0xff]
      %v2324 = vld [vmem:[#allocation3 + $0x130] sm:$0xff]
      %v2325 = vld [vmem:[#allocation3 + $0x138] sm:$0xff]
      %v2326 = vld [vmem:[#allocation3 + $0x140] sm:$0xff]
      %v2327 = vld [vmem:[#allocation3 + $0x148] sm:$0xff]
      %v2328 = vld [vmem:[#allocation3 + $0x150] sm:$0xff]
      %v2329 = vld [vmem:[#allocation3 + $0x158] sm:$0xff]
      %v2330 = vld [vmem:[#allocation3 + $0x160] sm:$0xff]
      %v2331 = vld [vmem:[#allocation3 + $0x168] sm:$0xff]
      %v2332 = vld [vmem:[#allocation3 + $0x170] sm:$0xff]
      %v2333 = vld [vmem:[#allocation3 + $0x178] sm:$0xff]
      %v2334 = vld [vmem:[#allocation3 + $0x180] sm:$0xff]
      %v2335 = vld [vmem:[#allocation3 + $0x188] sm:$0xff]
      %v2336 = vld [vmem:[#allocation3 + $0x190] sm:$0xff]
      %v2337 = vld [vmem:[#allocation3 + $0x198] sm:$0xff]
      %v2338 = vld [vmem:[#allocation3 + $0x1a0] sm:$0xff]
      %v2339 = vld [vmem:[#allocation3 + $0x1a8] sm:$0xff]
      %v2340 = vld [vmem:[#allocation3 + $0x1b0] sm:$0xff]
      %v2341 = vld [vmem:[#allocation3 + $0x1b8] sm:$0xff]
      %v2342 = vld [vmem:[#allocation3 + $0x1c0] sm:$0xff]
      %v2343 = vld [vmem:[#allocation3 + $0x1c8] sm:$0xff]
      %v2344 = vld [vmem:[#allocation3 + $0x1d0] sm:$0xff]
      %v2345 = vld [vmem:[#allocation3 + $0x1d8] sm:$0xff]
      %v2346 = vld [vmem:[#allocation3 + $0x1e0] sm:$0xff]
      %v2347 = vld [vmem:[#allocation3 + $0x1e8] sm:$0xff]
      %v2348 = vld [vmem:[#allocation3 + $0x1f0] sm:$0xff]
      %v2349 = vld [vmem:[#allocation3 + $0x1f8] sm:$0xff]
      %v2350 = vld [vmem:[#allocation3 + $0x200] sm:$0xff]
      %v2351 = vld [vmem:[#allocation3 + $0x208] sm:$0xff]
      %v2352 = vld [vmem:[#allocation3 + $0x210] sm:$0xff]
      %v2353 = vld [vmem:[#allocation3 + $0x218] sm:$0xff]
      %v2354 = vld [vmem:[#allocation3 + $0x220] sm:$0xff]
      %v2355 = vld [vmem:[#allocation3 + $0x228] sm:$0xff]
      %v2356 = vld [vmem:[#allocation3 + $0x230] sm:$0xff]
      %v2357 = vld [vmem:[#allocation3 + $0x238] sm:$0xff]
      %v2358 = vld [vmem:[%s10] sm:$0xff]
      %v2359 = vld [vmem:[%s10 + $0x8] sm:$0xff]
      %v2360 = vld [vmem:[%s10 + $0x10] sm:$0xff]
      %v2361 = vld [vmem:[%s10 + $0x18] sm:$0xff]
      %v2362 = vld [vmem:[%s10 + $0x20] sm:$0xff]
      %v2363 = vld [vmem:[%s10 + $0x28] sm:$0xff]
      %v2364 = vld [vmem:[%s10 + $0x30] sm:$0xff]
      %v2365 = vld [vmem:[%s10 + $0x38] sm:$0xff]
      %2367 = vset.pattern.permute.xlu0 0
      %2368 = vperm.xlu0 %2367, %v2358
      %v2369 = vpop.permute.xlu0 %2368
      %2372 = vset.pattern.permute.xlu0 0
      %2373 = vperm.xlu0 %2372, %v2359
      %v2374 = vpop.permute.xlu0 %2373
      %2377 = vset.pattern.permute.xlu0 0
      %2378 = vperm.xlu0 %2377, %v2360
      %v2379 = vpop.permute.xlu0 %2378
      %2382 = vset.pattern.permute.xlu0 0
      %2383 = vperm.xlu0 %2382, %v2361
      %v2384 = vpop.permute.xlu0 %2383
      %2387 = vset.pattern.permute.xlu0 0
      %2388 = vperm.xlu0 %2387, %v2362
      %v2389 = vpop.permute.xlu0 %2388
      %2392 = vset.pattern.permute.xlu0 0
      %2393 = vperm.xlu0 %2392, %v2363
      %v2394 = vpop.permute.xlu0 %2393
      %2397 = vset.pattern.permute.xlu0 0
      %2398 = vperm.xlu0 %2397, %v2364
      %v2399 = vpop.permute.xlu0 %2398
      %2402 = vset.pattern.permute.xlu0 0
      %2403 = vperm.xlu0 %2402, %v2365
      %v2404 = vpop.permute.xlu0 %2403
      %v2430 = vunpack.c.l.b16 %v2262
      %v2431 = vunpack.c.h.b16 %v2262
      %v2432 = vunpack.c.l.b16 %v2263
      %v2433 = vunpack.c.h.b16 %v2263
      %v2434 = vunpack.c.l.b16 %v2264
      %v2435 = vunpack.c.l.b16 %v2265
      %v2436 = vunpack.c.h.b16 %v2265
      %v2437 = vunpack.c.l.b16 %v2266
      %v2438 = vunpack.c.h.b16 %v2266
      %v2439 = vunpack.c.l.b16 %v2267
      %v2440 = vunpack.c.l.b16 %v2268
      %v2441 = vunpack.c.h.b16 %v2268
      %v2442 = vunpack.c.l.b16 %v2269
      %v2443 = vunpack.c.h.b16 %v2269
      %v2444 = vunpack.c.l.b16 %v2270
      %v2445 = vunpack.c.l.b16 %v2271
      %v2446 = vunpack.c.h.b16 %v2271
      %v2447 = vunpack.c.l.b16 %v2272
      %v2448 = vunpack.c.h.b16 %v2272
      %v2449 = vunpack.c.l.b16 %v2273
      %v2450 = vunpack.c.l.b16 %v2274
      %v2451 = vunpack.c.h.b16 %v2274
      %v2452 = vunpack.c.l.b16 %v2275
      %v2453 = vunpack.c.h.b16 %v2275
      %v2454 = vunpack.c.l.b16 %v2276
      %v2455 = vunpack.c.l.b16 %v2277
      %v2456 = vunpack.c.h.b16 %v2277
      %v2457 = vunpack.c.l.b16 %v2278
      %v2458 = vunpack.c.h.b16 %v2278
      %v2459 = vunpack.c.l.b16 %v2279
      %v2460 = vunpack.c.l.b16 %v2280
      %v2461 = vunpack.c.h.b16 %v2280
      %v2462 = vunpack.c.l.b16 %v2281
      %v2463 = vunpack.c.h.b16 %v2281
      %v2464 = vunpack.c.l.b16 %v2282
      %v2465 = vunpack.c.l.b16 %v2283
      %v2466 = vunpack.c.h.b16 %v2283
      %v2467 = vunpack.c.l.b16 %v2284
      %v2468 = vunpack.c.h.b16 %v2284
      %v2469 = vunpack.c.l.b16 %v2285
      %v2470 = vpack.c.b16 %v2435, %v2430
      %v2471 = vpack.c.b16 %v2436, %v2431
      %v2472 = vpack.c.b16 %v2437, %v2432
      %v2473 = vpack.c.b16 %v2438, %v2433
      %v2474 = vpack.c.b16 %v2439, %v2434
      %v2475 = vpack.c.b16 %v2445, %v2440
      %v2476 = vpack.c.b16 %v2446, %v2441
      %v2477 = vpack.c.b16 %v2447, %v2442
      %v2478 = vpack.c.b16 %v2448, %v2443
      %v2479 = vpack.c.b16 %v2449, %v2444
      %v2480 = vpack.c.b16 %v2455, %v2450
      %v2481 = vpack.c.b16 %v2456, %v2451
      %v2482 = vpack.c.b16 %v2457, %v2452
      %v2483 = vpack.c.b16 %v2458, %v2453
      %v2484 = vpack.c.b16 %v2459, %v2454
      %v2485 = vpack.c.b16 %v2465, %v2460
      %v2486 = vpack.c.b16 %v2466, %v2461
      %v2487 = vpack.c.b16 %v2467, %v2462
      %v2488 = vpack.c.b16 %v2468, %v2463
      %v2489 = vpack.c.b16 %v2469, %v2464
      %vm2506 = vcmask 523264
      %v2508 = vsel %vm2506, %v2474, 0
      %v2511 = vsel %vm2506, %v2479, 0
      %v2514 = vsel %vm2506, %v2484, 0
      %v2517 = vsel %vm2506, %v2489, 0
      %2519 = vmatprep.subr.bf16.mxu0 %v2287
      %2520 = vmatpush1.bf16.msra.mxu0 %v2286
      %2521 = vmatprep.subr.bf16.mxu0 %v2289
      %2522 = vmatpush1.bf16.msra.mxu0 %v2288
      %2523 = vmatprep.subr.bf16.mxu0 %v2291
      %2524 = vmatpush1.bf16.msra.mxu0 %v2290
      %2525 = vmatprep.subr.bf16.mxu0 %v2293
      %2526 = vmatpush1.bf16.msra.mxu0 %v2292
      %2527 = vmatprep.subr.bf16.mxu0 %v2295
      %2528 = vmatpush1.bf16.msra.mxu0 %v2294
      %2529 = vmatprep.subr.bf16.mxu0 %v2297
      %2530 = vmatpush1.bf16.msra.mxu0 %v2296
      %2531 = vmatprep.subr.bf16.mxu0 %v2299
      %2532 = vmatpush1.bf16.msra.mxu0 %v2298
      %2533 = vmatprep.subr.bf16.mxu0 %v2301
      %2534 = vmatpush1.bf16.msra.mxu0 %v2300
      %2535 = vmatprep.subr.bf16.mxu0 %v2303
      %2536 = vmatpush1.bf16.msra.mxu0 %v2302
      %2537 = vmatprep.subr.bf16.mxu0 %v2305
      %2538 = vmatpush1.bf16.msra.mxu0 %v2304
      %2539 = vmatprep.subr.bf16.mxu0 %v2307
      %2540 = vmatpush1.bf16.msra.mxu0 %v2306
      %2541 = vmatprep.subr.bf16.mxu0 %v2309
      %2542 = vmatpush1.bf16.msra.mxu0 %v2308
      %2543 = vmatprep.subr.bf16.mxu0 %v2311
      %2544 = vmatpush1.bf16.msra.mxu0 %v2310
      %2545 = vmatprep.subr.bf16.mxu0 %v2313
      %2546 = vmatpush1.bf16.msra.mxu0 %v2312
      %2547 = vmatprep.subr.bf16.mxu0 %v2315
      %2548 = vmatpush1.bf16.msra.mxu0 %v2314
      %2549 = vmatprep.subr.bf16.mxu0 %v2317
      %2550 = vmatpush1.bf16.msra.mxu0 %v2316
      %2551 = vmatprep.mubr.bf16.mxu0 %v2471
      %2552 = vmatmul.mubr.bf16.gmra.mrb[0].mxu0 %v2470
      %v2553 = vpop.f32.mrb[0].mxu0
      %v2554 = vadd.f32 %v2369, %v2553
      %v2555 = vpop.f32.mrb[0].mxu0
      %v2556 = vadd.f32 %v2369, %v2555
      %v2557 = vpop.f32.mrb[0].mxu0
      %v2558 = vadd.f32 %v2374, %v2557
      %v2559 = vpop.f32.mrb[0].mxu0
      %v2560 = vadd.f32 %v2374, %v2559
      %2561 = vmatprep.mubr.bf16.mxu0 %v2476
      %2562 = vmatmul.mubr.bf16.gmra.mrb[0].mxu0 %v2475
      %v2563 = vpop.f32.mrb[0].mxu0
      %v2564 = vadd.f32 %v2379, %v2563
      %v2565 = vpop.f32.mrb[0].mxu0
      %v2566 = vadd.f32 %v2379, %v2565
      %v2567 = vpop.f32.mrb[0].mxu0
      %v2568 = vadd.f32 %v2384, %v2567
      %v2569 = vpop.f32.mrb[0].mxu0
      %v2570 = vadd.f32 %v2384, %v2569
      %2571 = vmatprep.mubr.bf16.mxu0 %v2481
      %2572 = vmatmul.mubr.bf16.gmra.mrb[0].mxu0 %v2480
      %v2573 = vpop.f32.mrb[0].mxu0
      %v2574 = vadd.f32 %v2389, %v2573
      %v2575 = vpop.f32.mrb[0].mxu0
      %v2576 = vadd.f32 %v2389, %v2575
      %v2577 = vpop.f32.mrb[0].mxu0
      %v2578 = vadd.f32 %v2394, %v2577
      %v2579 = vpop.f32.mrb[0].mxu0
      %v2580 = vadd.f32 %v2394, %v2579
      %2581 = vmatprep.mubr.bf16.mxu0 %v2486
      %2582 = vmatmul.mubr.bf16.gmra.mrb[0].mxu0 %v2485
      %v2583 = vpop.f32.mrb[0].mxu0
      %v2584 = vadd.f32 %v2399, %v2583
      %v2585 = vpop.f32.mrb[0].mxu0
      %v2586 = vadd.f32 %v2399, %v2585
      %v2587 = vpop.f32.mrb[0].mxu0
      %v2588 = vadd.f32 %v2404, %v2587
      %v2589 = vpop.f32.mrb[0].mxu0
      %v2590 = vadd.f32 %v2404, %v2589
      %2591 = vdwg.mxu0
      %2592 = vmatprep.subr.bf16.mxu0 %v2319
      %2593 = vmatpush1.bf16.msra.mxu0 %v2318
      %2594 = vmatprep.subr.bf16.mxu0 %v2321
      %2595 = vmatpush1.bf16.msra.mxu0 %v2320
      %2596 = vmatprep.subr.bf16.mxu0 %v2323
      %2597 = vmatpush1.bf16.msra.mxu0 %v2322
      %2598 = vmatprep.subr.bf16.mxu0 %v2325
      %2599 = vmatpush1.bf16.msra.mxu0 %v2324
      %2600 = vmatprep.subr.bf16.mxu0 %v2327
      %2601 = vmatpush1.bf16.msra.mxu0 %v2326
      %2602 = vmatprep.subr.bf16.mxu0 %v2329
      %2603 = vmatpush1.bf16.msra.mxu0 %v2328
      %2604 = vmatprep.subr.bf16.mxu0 %v2331
      %2605 = vmatpush1.bf16.msra.mxu0 %v2330
      %2606 = vmatprep.subr.bf16.mxu0 %v2333
      %2607 = vmatpush1.bf16.msra.mxu0 %v2332
      %2608 = vmatprep.subr.bf16.mxu0 %v2335
      %2609 = vmatpush1.bf16.msra.mxu0 %v2334
      %2610 = vmatprep.subr.bf16.mxu0 %v2337
      %2611 = vmatpush1.bf16.msra.mxu0 %v2336
      %2612 = vmatprep.subr.bf16.mxu0 %v2339
      %2613 = vmatpush1.bf16.msra.mxu0 %v2338
      %2614 = vmatprep.subr.bf16.mxu0 %v2341
      %2615 = vmatpush1.bf16.msra.mxu0 %v2340
      %2616 = vmatprep.subr.bf16.mxu0 %v2343
      %2617 = vmatpush1.bf16.msra.mxu0 %v2342
      %2618 = vmatprep.subr.bf16.mxu0 %v2345
      %2619 = vmatpush1.bf16.msra.mxu0 %v2344
      %2620 = vmatprep.subr.bf16.mxu0 %v2347
      %2621 = vmatpush1.bf16.msra.mxu0 %v2346
      %2622 = vmatprep.subr.bf16.mxu0 %v2349
      %2623 = vmatpush1.bf16.msra.mxu0 %v2348
      %2624 = vmatprep.mubr.bf16.mxu0 %v2473
      %2625 = vmatmul.mubr.bf16.gmra.mrb[0].mxu0 %v2472
      %v2626 = vpop.f32.mrb[0].mxu0
      %v2627 = vadd.f32 %v2554, %v2626
      %v2628 = vpop.f32.mrb[0].mxu0
      %v2629 = vadd.f32 %v2556, %v2628
      %v2630 = vpop.f32.mrb[0].mxu0
      %v2631 = vadd.f32 %v2558, %v2630
      %v2632 = vpop.f32.mrb[0].mxu0
      %v2633 = vadd.f32 %v2560, %v2632
      %2634 = vmatprep.mubr.bf16.mxu0 %v2478
      %2635 = vmatmul.mubr.bf16.gmra.mrb[0].mxu0 %v2477
      %v2636 = vpop.f32.mrb[0].mxu0
      %v2637 = vadd.f32 %v2564, %v2636
      %v2638 = vpop.f32.mrb[0].mxu0
      %v2639 = vadd.f32 %v2566, %v2638
      %v2640 = vpop.f32.mrb[0].mxu0
      %v2641 = vadd.f32 %v2568, %v2640
      %v2642 = vpop.f32.mrb[0].mxu0
      %v2643 = vadd.f32 %v2570, %v2642
      %2644 = vmatprep.mubr.bf16.mxu0 %v2483
      %2645 = vmatmul.mubr.bf16.gmra.mrb[0].mxu0 %v2482
      %v2646 = vpop.f32.mrb[0].mxu0
      %v2647 = vadd.f32 %v2574, %v2646
      %v2648 = vpop.f32.mrb[0].mxu0
      %v2649 = vadd.f32 %v2576, %v2648
      %v2650 = vpop.f32.mrb[0].mxu0
      %v2651 = vadd.f32 %v2578, %v2650
      %v2652 = vpop.f32.mrb[0].mxu0
      %v2653 = vadd.f32 %v2580, %v2652
      %2654 = vmatprep.mubr.bf16.mxu0 %v2488
      %2655 = vmatmul.mubr.bf16.gmra.mrb[0].mxu0 %v2487
      %v2656 = vpop.f32.mrb[0].mxu0
      %v2657 = vadd.f32 %v2584, %v2656
      %v2658 = vpop.f32.mrb[0].mxu0
      %v2659 = vadd.f32 %v2586, %v2658
      %v2660 = vpop.f32.mrb[0].mxu0
      %v2661 = vadd.f32 %v2588, %v2660
      %v2662 = vpop.f32.mrb[0].mxu0
      %v2663 = vadd.f32 %v2590, %v2662
      %2664 = vdwg.mxu0
      %2665 = vmatprep.subr.bf16.mxu0 %v2351
      %2666 = vmatpush1.bf16.msra.mxu0 %v2350
      %2667 = vmatprep.subr.bf16.mxu0 %v2353
      %2668 = vmatpush1.bf16.msra.mxu0 %v2352
      %2669 = vmatprep.subr.bf16.mxu0 %v2355
      %2670 = vmatpush1.bf16.msra.mxu0 %v2354
      %2671 = vmatprep.subr.bf16.mxu0 %v2357
      %2672 = vmatpush1.bf16.msra.mxu0 %v2356
      %2673 = vmatprep.subr.bf16.mxu0 0
      %2674 = vmatpush1.bf16.msra.mxu0 0
      %2675 = vmatprep.subr.bf16.mxu0 0
      %2676 = vmatpush1.bf16.msra.mxu0 0
      %2677 = vmatprep.subr.bf16.mxu0 0
      %2678 = vmatpush1.bf16.msra.mxu0 0
      %2679 = vmatprep.subr.bf16.mxu0 0
      %2680 = vmatpush1.bf16.msra.mxu0 0
      %2681 = vmatprep.subr.bf16.mxu0 0
      %2682 = vmatpush1.bf16.msra.mxu0 0
      %2683 = vmatprep.subr.bf16.mxu0 0
      %2684 = vmatpush1.bf16.msra.mxu0 0
      %2685 = vmatprep.subr.bf16.mxu0 0
      %2686 = vmatpush1.bf16.msra.mxu0 0
      %2687 = vmatprep.subr.bf16.mxu0 0
      %2688 = vmatpush1.bf16.msra.mxu0 0
      %2689 = vmatprep.subr.bf16.mxu0 0
      %2690 = vmatpush1.bf16.msra.mxu0 0
      %2691 = vmatprep.subr.bf16.mxu0 0
      %2692 = vmatpush1.bf16.msra.mxu0 0
      %2693 = vmatprep.subr.bf16.mxu0 0
      %2694 = vmatpush1.bf16.msra.mxu0 0
      %2695 = vmatprep.subr.bf16.mxu0 0
      %2696 = vmatpush1.bf16.msra.mxu0 0
      %2697 = vmatprep.mubr.bf16.mxu0 0
      %2698 = vmatmul.mubr.bf16.gmra.mrb[0].mxu0 %v2508
      %v2699 = vpop.f32.mrb[0].mxu0
      %v2700 = vadd.f32 %v2627, %v2699
      %v2701 = vpop.f32.mrb[0].mxu0
      %v2702 = vadd.f32 %v2629, %v2701
      %v2703 = vpop.f32.mrb[0].mxu0
      %v2704 = vadd.f32 %v2631, %v2703
      %v2705 = vpop.f32.mrb[0].mxu0
      %v2706 = vadd.f32 %v2633, %v2705
      %2707 = vmatprep.mubr.bf16.mxu0 0
      %2708 = vmatmul.mubr.bf16.gmra.mrb[0].mxu0 %v2511
      %v2709 = vpop.f32.mrb[0].mxu0
      %v2710 = vadd.f32 %v2637, %v2709
      %v2711 = vpop.f32.mrb[0].mxu0
      %v2712 = vadd.f32 %v2639, %v2711
      %v2713 = vpop.f32.mrb[0].mxu0
      %v2714 = vadd.f32 %v2641, %v2713
      %v2715 = vpop.f32.mrb[0].mxu0
      %v2716 = vadd.f32 %v2643, %v2715
      %2717 = vmatprep.mubr.bf16.mxu0 0
      %2718 = vmatmul.mubr.bf16.gmra.mrb[0].mxu0 %v2514
      %v2719 = vpop.f32.mrb[0].mxu0
      %v2720 = vadd.f32 %v2647, %v2719
      %v2721 = vpop.f32.mrb[0].mxu0
      %v2722 = vadd.f32 %v2649, %v2721
      %v2723 = vpop.f32.mrb[0].mxu0
      %v2724 = vadd.f32 %v2651, %v2723
      %v2725 = vpop.f32.mrb[0].mxu0
      %v2726 = vadd.f32 %v2653, %v2725
      %2727 = vmatprep.mubr.bf16.mxu0 0
      %2728 = vmatmul.mubr.bf16.gmra.mrb[0].mxu0 %v2517
      %v2729 = vpop.f32.mrb[0].mxu0
      %v2730 = vadd.f32 %v2657, %v2729
      %v2731 = vpop.f32.mrb[0].mxu0
      %v2732 = vadd.f32 %v2659, %v2731
      %v2733 = vpop.f32.mrb[0].mxu0
      %v2734 = vadd.f32 %v2661, %v2733
      %v2735 = vpop.f32.mrb[0].mxu0
      %v2736 = vadd.f32 %v2663, %v2735
      %2737 = vdwg.mxu0
      %v2738 = vmax.f32 %v2700, 0.0
      %v2739 = vmax.f32 %v2702, 0.0
      %v2740 = vmax.f32 %v2704, 0.0
      %v2741 = vmax.f32 %v2706, 0.0
      %v2742 = vmax.f32 %v2710, 0.0
      %v2743 = vmax.f32 %v2712, 0.0
      %v2744 = vmax.f32 %v2714, 0.0
      %v2745 = vmax.f32 %v2716, 0.0
      %v2746 = vmax.f32 %v2720, 0.0
      %v2747 = vmax.f32 %v2722, 0.0
      %v2748 = vmax.f32 %v2724, 0.0
      %v2749 = vmax.f32 %v2726, 0.0
      %v2750 = vmax.f32 %v2730, 0.0
      %v2751 = vmax.f32 %v2732, 0.0
      %v2752 = vmax.f32 %v2734, 0.0
      %v2753 = vmax.f32 %v2736, 0.0
      %2754 = vrot.lane.b32.xlu0 %v2738, 17
      %v2755 = vpop.permute.xlu0 %2754
      %2756 = vrot.lane.b32.xlu0 %v2740, 17
      %v2757 = vpop.permute.xlu0 %2756
      %2758 = vrot.lane.b32.xlu0 %v2742, 17
      %v2759 = vpop.permute.xlu0 %2758
      %2760 = vrot.lane.b32.xlu0 %v2744, 17
      %v2761 = vpop.permute.xlu0 %2760
      %2762 = vrot.lane.b32.xlu0 %v2746, 17
      %v2763 = vpop.permute.xlu0 %2762
      %2764 = vrot.lane.b32.xlu0 %v2748, 17
      %v2765 = vpop.permute.xlu0 %2764
      %2766 = vrot.lane.b32.xlu0 %v2750, 17
      %v2767 = vpop.permute.xlu0 %2766
      %2768 = vrot.lane.b32.xlu0 %v2752, 17
      %v2769 = vpop.permute.xlu0 %2768
      %2770 = vrot.lane.b32.xlu0 %v2739, 17
      %v2771 = vpop.permute.xlu0 %2770
      %2772 = vrot.lane.b32.xlu0 %v2741, 17
      %v2773 = vpop.permute.xlu0 %2772
      %2774 = vrot.lane.b32.xlu0 %v2743, 17
      %v2775 = vpop.permute.xlu0 %2774
      %2776 = vrot.lane.b32.xlu0 %v2745, 17
      %v2777 = vpop.permute.xlu0 %2776
      %2778 = vrot.lane.b32.xlu0 %v2747, 17
      %v2779 = vpop.permute.xlu0 %2778
      %2780 = vrot.lane.b32.xlu0 %v2749, 17
      %v2781 = vpop.permute.xlu0 %2780
      %2782 = vrot.lane.b32.xlu0 %v2751, 17
      %v2783 = vpop.permute.xlu0 %2782
      %2784 = vrot.lane.b32.xlu0 %v2753, 17
      %v2785 = vpop.permute.xlu0 %2784
      %v2786 = vsel %vm1230, %v2755, %v2771
      %v2787 = vsel %vm1230, %v2757, %v2773
      %v2788 = vsel %vm1230, %v2759, %v2775
      %v2789 = vsel %vm1230, %v2761, %v2777
      %v2790 = vsel %vm1230, %v2763, %v2779
      %v2791 = vsel %vm1230, %v2765, %v2781
      %v2792 = vsel %vm1230, %v2767, %v2783
      %v2793 = vsel %vm1230, %v2769, %v2785
      %v2794 = vsel %vm1230, %v2771, %v2755
      %v2795 = vsel %vm1230, %v2773, %v2757
      %v2796 = vsel %vm1230, %v2775, %v2759
      %v2797 = vsel %vm1230, %v2777, %v2761
      %v2798 = vsel %vm1230, %v2779, %v2763
      %v2799 = vsel %vm1230, %v2781, %v2765
      %v2800 = vsel %vm1230, %v2783, %v2767
      %v2801 = vsel %vm1230, %v2785, %v2769
      %v2802 = vmul.f32 %v2794, %v1140
      %v2803 = vmul.f32 %v2786, %v1141
      %v2804 = vmul.f32 %v2795, %v1140
      %v2805 = vmul.f32 %v2787, %v1141
      %v2806 = vmul.f32 %v2796, %v1140
      %v2807 = vmul.f32 %v2788, %v1141
      %v2808 = vmul.f32 %v2797, %v1140
      %v2809 = vmul.f32 %v2789, %v1141
      %v2810 = vmul.f32 %v2798, %v1140
      %v2811 = vmul.f32 %v2790, %v1141
      %v2812 = vmul.f32 %v2799, %v1140
      %v2813 = vmul.f32 %v2791, %v1141
      %v2814 = vmul.f32 %v2800, %v1140
      %v2815 = vmul.f32 %v2792, %v1141
      %v2816 = vmul.f32 %v2801, %v1140
      %v2817 = vmul.f32 %v2793, %v1141
      %v2818 = vpack.c.bf16 %v2804, %v2802
      %v2819 = vpack.c.bf16 %v2805, %v2803
      %v2820 = vpack.c.bf16 %v2808, %v2806
      %v2821 = vpack.c.bf16 %v2809, %v2807
      %v2822 = vpack.c.bf16 %v2812, %v2810
      %v2823 = vpack.c.bf16 %v2813, %v2811
      %v2824 = vpack.c.bf16 %v2816, %v2814
      %v2825 = vpack.c.bf16 %v2817, %v2815
      %2826 = vst [vmem:[#allocation3] sm:$0xff] %v2818
      %2827 = vst [vmem:[#allocation3 + $0x8] sm:$0xff] %v2819
      %2828 = vst [vmem:[#allocation3 + $0x10] sm:$0xff] %v2820
      %2829 = vst [vmem:[#allocation3 + $0x18] sm:$0xff] %v2821
      %2830 = vst [vmem:[#allocation3 + $0x20] sm:$0xff] %v2822
      %2831 = vst [vmem:[#allocation3 + $0x28] sm:$0xff] %v2823
      %2832 = vst [vmem:[#allocation3 + $0x30] sm:$0xff] %v2824
      %2833 = vst [vmem:[#allocation3 + $0x38] sm:$0xff] %v2825
      %2834 = vrot.lane.b32.xlu0 %v2738, 16
      %v2835 = vpop.permute.xlu0 %2834
      %2836 = vrot.lane.b32.xlu0 %v2740, 16
      %v2837 = vpop.permute.xlu0 %2836
      %2838 = vrot.lane.b32.xlu0 %v2742, 16
      %v2839 = vpop.permute.xlu0 %2838
      %2840 = vrot.lane.b32.xlu0 %v2744, 16
      %v2841 = vpop.permute.xlu0 %2840
      %2842 = vrot.lane.b32.xlu0 %v2746, 16
      %v2843 = vpop.permute.xlu0 %2842
      %2844 = vrot.lane.b32.xlu0 %v2748, 16
      %v2845 = vpop.permute.xlu0 %2844
      %2846 = vrot.lane.b32.xlu0 %v2750, 16
      %v2847 = vpop.permute.xlu0 %2846
      %2848 = vrot.lane.b32.xlu0 %v2752, 16
      %v2849 = vpop.permute.xlu0 %2848
      %2850 = vrot.lane.b32.xlu0 %v2739, 16
      %v2851 = vpop.permute.xlu0 %2850
      %2852 = vrot.lane.b32.xlu0 %v2741, 16
      %v2853 = vpop.permute.xlu0 %2852
      %2854 = vrot.lane.b32.xlu0 %v2743, 16
      %v2855 = vpop.permute.xlu0 %2854
      %2856 = vrot.lane.b32.xlu0 %v2745, 16
      %v2857 = vpop.permute.xlu0 %2856
      %2858 = vrot.lane.b32.xlu0 %v2747, 16
      %v2859 = vpop.permute.xlu0 %2858
      %2860 = vrot.lane.b32.xlu0 %v2749, 16
      %v2861 = vpop.permute.xlu0 %2860
      %2862 = vrot.lane.b32.xlu0 %v2751, 16
      %v2863 = vpop.permute.xlu0 %2862
      %2864 = vrot.lane.b32.xlu0 %v2753, 16
      %v2865 = vpop.permute.xlu0 %2864
      %v2866 = vsel %vm1251, %v2835, %v2851
      %v2867 = vsel %vm1251, %v2837, %v2853
      %v2868 = vsel %vm1251, %v2839, %v2855
      %v2869 = vsel %vm1251, %v2841, %v2857
      %v2870 = vsel %vm1251, %v2843, %v2859
      %v2871 = vsel %vm1251, %v2845, %v2861
      %v2872 = vsel %vm1251, %v2847, %v2863
      %v2873 = vsel %vm1251, %v2849, %v2865
      %v2874 = vsel %vm1251, %v2851, %v2835
      %v2875 = vsel %vm1251, %v2853, %v2837
      %v2876 = vsel %vm1251, %v2855, %v2839
      %v2877 = vsel %vm1251, %v2857, %v2841
      %v2878 = vsel %vm1251, %v2859, %v2843
      %v2879 = vsel %vm1251, %v2861, %v2845
      %v2880 = vsel %vm1251, %v2863, %v2847
      %v2881 = vsel %vm1251, %v2865, %v2849
      %v2882 = vmul.f32 %v2874, %v1152
      %v2883 = vmul.f32 %v2866, %v1153
      %v2884 = vmul.f32 %v2875, %v1152
      %v2885 = vmul.f32 %v2867, %v1153
      %v2886 = vmul.f32 %v2876, %v1152
      %v2887 = vmul.f32 %v2868, %v1153
      %v2888 = vmul.f32 %v2877, %v1152
      %v2889 = vmul.f32 %v2869, %v1153
      %v2890 = vmul.f32 %v2878, %v1152
      %v2891 = vmul.f32 %v2870, %v1153
      %v2892 = vmul.f32 %v2879, %v1152
      %v2893 = vmul.f32 %v2871, %v1153
      %v2894 = vmul.f32 %v2880, %v1152
      %v2895 = vmul.f32 %v2872, %v1153
      %v2896 = vmul.f32 %v2881, %v1152
      %v2897 = vmul.f32 %v2873, %v1153
      %v2898 = vpack.c.bf16 %v2884, %v2882
      %v2899 = vpack.c.bf16 %v2885, %v2883
      %v2900 = vpack.c.bf16 %v2888, %v2886
      %v2901 = vpack.c.bf16 %v2889, %v2887
      %v2902 = vpack.c.bf16 %v2892, %v2890
      %v2903 = vpack.c.bf16 %v2893, %v2891
      %v2904 = vpack.c.bf16 %v2896, %v2894
      %v2905 = vpack.c.bf16 %v2897, %v2895
      %2906 = vst [vmem:[#allocation3 + $0x40] sm:$0xff] %v2898
      %2907 = vst [vmem:[#allocation3 + $0x48] sm:$0xff] %v2899
      %2908 = vst [vmem:[#allocation3 + $0x50] sm:$0xff] %v2900
      %2909 = vst [vmem:[#allocation3 + $0x58] sm:$0xff] %v2901
      %2910 = vst [vmem:[#allocation3 + $0x60] sm:$0xff] %v2902
      %2911 = vst [vmem:[#allocation3 + $0x68] sm:$0xff] %v2903
      %2912 = vst [vmem:[#allocation3 + $0x70] sm:$0xff] %v2904
      %2913 = vst [vmem:[#allocation3 + $0x78] sm:$0xff] %v2905
      %2914 = vrot.lane.b32.xlu0 %v2738, 15
      %v2915 = vpop.permute.xlu0 %2914
      %2916 = vrot.lane.b32.xlu0 %v2740, 15
      %v2917 = vpop.permute.xlu0 %2916
      %2918 = vrot.lane.b32.xlu0 %v2742, 15
      %v2919 = vpop.permute.xlu0 %2918
      %2920 = vrot.lane.b32.xlu0 %v2744, 15
      %v2921 = vpop.permute.xlu0 %2920
      %2922 = vrot.lane.b32.xlu0 %v2746, 15
      %v2923 = vpop.permute.xlu0 %2922
      %2924 = vrot.lane.b32.xlu0 %v2748, 15
      %v2925 = vpop.permute.xlu0 %2924
      %2926 = vrot.lane.b32.xlu0 %v2750, 15
      %v2927 = vpop.permute.xlu0 %2926
      %2928 = vrot.lane.b32.xlu0 %v2752, 15
      %v2929 = vpop.permute.xlu0 %2928
      %2930 = vrot.lane.b32.xlu0 %v2739, 15
      %v2931 = vpop.permute.xlu0 %2930
      %2932 = vrot.lane.b32.xlu0 %v2741, 15
      %v2933 = vpop.permute.xlu0 %2932
      %2934 = vrot.lane.b32.xlu0 %v2743, 15
      %v2935 = vpop.permute.xlu0 %2934
      %2936 = vrot.lane.b32.xlu0 %v2745, 15
      %v2937 = vpop.permute.xlu0 %2936
      %2938 = vrot.lane.b32.xlu0 %v2747, 15
      %v2939 = vpop.permute.xlu0 %2938
      %2940 = vrot.lane.b32.xlu0 %v2749, 15
      %v2941 = vpop.permute.xlu0 %2940
      %2942 = vrot.lane.b32.xlu0 %v2751, 15
      %v2943 = vpop.permute.xlu0 %2942
      %2944 = vrot.lane.b32.xlu0 %v2753, 15
      %v2945 = vpop.permute.xlu0 %2944
      %v2946 = vsel %vm1272, %v2915, %v2931
      %v2947 = vsel %vm1272, %v2917, %v2933
      %v2948 = vsel %vm1272, %v2919, %v2935
      %v2949 = vsel %vm1272, %v2921, %v2937
      %v2950 = vsel %vm1272, %v2923, %v2939
      %v2951 = vsel %vm1272, %v2925, %v2941
      %v2952 = vsel %vm1272, %v2927, %v2943
      %v2953 = vsel %vm1272, %v2929, %v2945
      %v2954 = vsel %vm1272, %v2931, %v2915
      %v2955 = vsel %vm1272, %v2933, %v2917
      %v2956 = vsel %vm1272, %v2935, %v2919
      %v2957 = vsel %vm1272, %v2937, %v2921
      %v2958 = vsel %vm1272, %v2939, %v2923
      %v2959 = vsel %vm1272, %v2941, %v2925
      %v2960 = vsel %vm1272, %v2943, %v2927
      %v2961 = vsel %vm1272, %v2945, %v2929
      %v2962 = vmul.f32 %v2954, %v1166
      %v2963 = vmul.f32 %v2946, %v1167
      %v2964 = vmul.f32 %v2955, %v1166
      %v2965 = vmul.f32 %v2947, %v1167
      %v2966 = vmul.f32 %v2956, %v1166
      %v2967 = vmul.f32 %v2948, %v1167
      %v2968 = vmul.f32 %v2957, %v1166
      %v2969 = vmul.f32 %v2949, %v1167
      %v2970 = vmul.f32 %v2958, %v1166
      %v2971 = vmul.f32 %v2950, %v1167
      %v2972 = vmul.f32 %v2959, %v1166
      %v2973 = vmul.f32 %v2951, %v1167
      %v2974 = vmul.f32 %v2960, %v1166
      %v2975 = vmul.f32 %v2952, %v1167
      %v2976 = vmul.f32 %v2961, %v1166
      %v2977 = vmul.f32 %v2953, %v1167
      %v2978 = vpack.c.bf16 %v2964, %v2962
      %v2979 = vpack.c.bf16 %v2965, %v2963
      %v2980 = vpack.c.bf16 %v2968, %v2966
      %v2981 = vpack.c.bf16 %v2969, %v2967
      %v2982 = vpack.c.bf16 %v2972, %v2970
      %v2983 = vpack.c.bf16 %v2973, %v2971
      %v2984 = vpack.c.bf16 %v2976, %v2974
      %v2985 = vpack.c.bf16 %v2977, %v2975
      %2986 = vst [vmem:[#allocation3 + $0x80] sm:$0xff] %v2978
      %2987 = vst [vmem:[#allocation3 + $0x88] sm:$0xff] %v2979
      %2988 = vst [vmem:[#allocation3 + $0x90] sm:$0xff] %v2980
      %2989 = vst [vmem:[#allocation3 + $0x98] sm:$0xff] %v2981
      %2990 = vst [vmem:[#allocation3 + $0xa0] sm:$0xff] %v2982
      %2991 = vst [vmem:[#allocation3 + $0xa8] sm:$0xff] %v2983
      %2992 = vst [vmem:[#allocation3 + $0xb0] sm:$0xff] %v2984
      %2993 = vst [vmem:[#allocation3 + $0xb8] sm:$0xff] %v2985
      %2994 = vrot.lane.b32.xlu0 %v2738, 1
      %v2995 = vpop.permute.xlu0 %2994
      %2996 = vrot.lane.b32.xlu0 %v2740, 1
      %v2997 = vpop.permute.xlu0 %2996
      %2998 = vrot.lane.b32.xlu0 %v2742, 1
      %v2999 = vpop.permute.xlu0 %2998
      %3000 = vrot.lane.b32.xlu0 %v2744, 1
      %v3001 = vpop.permute.xlu0 %3000
      %3002 = vrot.lane.b32.xlu0 %v2746, 1
      %v3003 = vpop.permute.xlu0 %3002
      %3004 = vrot.lane.b32.xlu0 %v2748, 1
      %v3005 = vpop.permute.xlu0 %3004
      %3006 = vrot.lane.b32.xlu0 %v2750, 1
      %v3007 = vpop.permute.xlu0 %3006
      %3008 = vrot.lane.b32.xlu0 %v2752, 1
      %v3009 = vpop.permute.xlu0 %3008
      %3010 = vrot.lane.b32.xlu0 %v2739, 1
      %v3011 = vpop.permute.xlu0 %3010
      %3012 = vrot.lane.b32.xlu0 %v2741, 1
      %v3013 = vpop.permute.xlu0 %3012
      %3014 = vrot.lane.b32.xlu0 %v2743, 1
      %v3015 = vpop.permute.xlu0 %3014
      %3016 = vrot.lane.b32.xlu0 %v2745, 1
      %v3017 = vpop.permute.xlu0 %3016
      %3018 = vrot.lane.b32.xlu0 %v2747, 1
      %v3019 = vpop.permute.xlu0 %3018
      %3020 = vrot.lane.b32.xlu0 %v2749, 1
      %v3021 = vpop.permute.xlu0 %3020
      %3022 = vrot.lane.b32.xlu0 %v2751, 1
      %v3023 = vpop.permute.xlu0 %3022
      %3024 = vrot.lane.b32.xlu0 %v2753, 1
      %v3025 = vpop.permute.xlu0 %3024
      %v3026 = vsel %vm1293, %v2995, %v3011
      %v3027 = vsel %vm1293, %v2997, %v3013
      %v3028 = vsel %vm1293, %v2999, %v3015
      %v3029 = vsel %vm1293, %v3001, %v3017
      %v3030 = vsel %vm1293, %v3003, %v3019
      %v3031 = vsel %vm1293, %v3005, %v3021
      %v3032 = vsel %vm1293, %v3007, %v3023
      %v3033 = vsel %vm1293, %v3009, %v3025
      %v3034 = vsel %vm1293, %v3011, %v2995
      %v3035 = vsel %vm1293, %v3013, %v2997
      %v3036 = vsel %vm1293, %v3015, %v2999
      %v3037 = vsel %vm1293, %v3017, %v3001
      %v3038 = vsel %vm1293, %v3019, %v3003
      %v3039 = vsel %vm1293, %v3021, %v3005
      %v3040 = vsel %vm1293, %v3023, %v3007
      %v3041 = vsel %vm1293, %v3025, %v3009
      %v3042 = vmul.f32 %v3034, %v1180
      %v3043 = vmul.f32 %v3026, %v1181
      %v3044 = vmul.f32 %v3035, %v1180
      %v3045 = vmul.f32 %v3027, %v1181
      %v3046 = vmul.f32 %v3036, %v1180
      %v3047 = vmul.f32 %v3028, %v1181
      %v3048 = vmul.f32 %v3037, %v1180
      %v3049 = vmul.f32 %v3029, %v1181
      %v3050 = vmul.f32 %v3038, %v1180
      %v3051 = vmul.f32 %v3030, %v1181
      %v3052 = vmul.f32 %v3039, %v1180
      %v3053 = vmul.f32 %v3031, %v1181
      %v3054 = vmul.f32 %v3040, %v1180
      %v3055 = vmul.f32 %v3032, %v1181
      %v3056 = vmul.f32 %v3041, %v1180
      %v3057 = vmul.f32 %v3033, %v1181
      %v3058 = vpack.c.bf16 %v3044, %v3042
      %v3059 = vpack.c.bf16 %v3045, %v3043
      %v3060 = vpack.c.bf16 %v3048, %v3046
      %v3061 = vpack.c.bf16 %v3049, %v3047
      %v3062 = vpack.c.bf16 %v3052, %v3050
      %v3063 = vpack.c.bf16 %v3053, %v3051
      %v3064 = vpack.c.bf16 %v3056, %v3054
      %v3065 = vpack.c.bf16 %v3057, %v3055
      %3066 = vst [vmem:[#allocation3 + $0xc0] sm:$0xff] %v3058
      %3067 = vst [vmem:[#allocation3 + $0xc8] sm:$0xff] %v3059
      %3068 = vst [vmem:[#allocation3 + $0xd0] sm:$0xff] %v3060
      %3069 = vst [vmem:[#allocation3 + $0xd8] sm:$0xff] %v3061
      %3070 = vst [vmem:[#allocation3 + $0xe0] sm:$0xff] %v3062
      %3071 = vst [vmem:[#allocation3 + $0xe8] sm:$0xff] %v3063
      %3072 = vst [vmem:[#allocation3 + $0xf0] sm:$0xff] %v3064
      %3073 = vst [vmem:[#allocation3 + $0xf8] sm:$0xff] %v3065
      %v3074 = vpack.c.bf16 %v2740, %v2738
      %v3075 = vpack.c.bf16 %v2741, %v2739
      %v3076 = vpack.c.bf16 %v2744, %v2742
      %v3077 = vpack.c.bf16 %v2745, %v2743
      %v3078 = vpack.c.bf16 %v2748, %v2746
      %v3079 = vpack.c.bf16 %v2749, %v2747
      %v3080 = vpack.c.bf16 %v2752, %v2750
      %v3081 = vpack.c.bf16 %v2753, %v2751
      %3082 = vst [vmem:[#allocation3 + $0x100] sm:$0xff] %v3074
      %3083 = vst [vmem:[#allocation3 + $0x108] sm:$0xff] %v3075
      %3084 = vst [vmem:[#allocation3 + $0x110] sm:$0xff] %v3076
      %3085 = vst [vmem:[#allocation3 + $0x118] sm:$0xff] %v3077
      %3086 = vst [vmem:[#allocation3 + $0x120] sm:$0xff] %v3078
      %3087 = vst [vmem:[#allocation3 + $0x128] sm:$0xff] %v3079
      %3088 = vst [vmem:[#allocation3 + $0x130] sm:$0xff] %v3080
      %3089 = vst [vmem:[#allocation3 + $0x138] sm:$0xff] %v3081
      %3090 = vrot.lane.b32.xlu0 %v2738, 127
      %v3091 = vpop.permute.xlu0 %3090
      %3092 = vrot.lane.b32.xlu0 %v2740, 127
      %v3093 = vpop.permute.xlu0 %3092
      %3094 = vrot.lane.b32.xlu0 %v2742, 127
      %v3095 = vpop.permute.xlu0 %3094
      %3096 = vrot.lane.b32.xlu0 %v2744, 127
      %v3097 = vpop.permute.xlu0 %3096
      %3098 = vrot.lane.b32.xlu0 %v2746, 127
      %v3099 = vpop.permute.xlu0 %3098
      %3100 = vrot.lane.b32.xlu0 %v2748, 127
      %v3101 = vpop.permute.xlu0 %3100
      %3102 = vrot.lane.b32.xlu0 %v2750, 127
      %v3103 = vpop.permute.xlu0 %3102
      %3104 = vrot.lane.b32.xlu0 %v2752, 127
      %v3105 = vpop.permute.xlu0 %3104
      %3106 = vrot.lane.b32.xlu0 %v2739, 127
      %v3107 = vpop.permute.xlu0 %3106
      %3108 = vrot.lane.b32.xlu0 %v2741, 127
      %v3109 = vpop.permute.xlu0 %3108
      %3110 = vrot.lane.b32.xlu0 %v2743, 127
      %v3111 = vpop.permute.xlu0 %3110
      %3112 = vrot.lane.b32.xlu0 %v2745, 127
      %v3113 = vpop.permute.xlu0 %3112
      %3114 = vrot.lane.b32.xlu0 %v2747, 127
      %v3115 = vpop.permute.xlu0 %3114
      %3116 = vrot.lane.b32.xlu0 %v2749, 127
      %v3117 = vpop.permute.xlu0 %3116
      %3118 = vrot.lane.b32.xlu0 %v2751, 127
      %v3119 = vpop.permute.xlu0 %3118
      %3120 = vrot.lane.b32.xlu0 %v2753, 127
      %v3121 = vpop.permute.xlu0 %3120
      %v3122 = vsel %vm1318, %v3091, %v3107
      %v3123 = vsel %vm1318, %v3093, %v3109
      %v3124 = vsel %vm1318, %v3095, %v3111
      %v3125 = vsel %vm1318, %v3097, %v3113
      %v3126 = vsel %vm1318, %v3099, %v3115
      %v3127 = vsel %vm1318, %v3101, %v3117
      %v3128 = vsel %vm1318, %v3103, %v3119
      %v3129 = vsel %vm1318, %v3105, %v3121
      %v3130 = vsel %vm1318, %v3107, %v3091
      %v3131 = vsel %vm1318, %v3109, %v3093
      %v3132 = vsel %vm1318, %v3111, %v3095
      %v3133 = vsel %vm1318, %v3113, %v3097
      %v3134 = vsel %vm1318, %v3115, %v3099
      %v3135 = vsel %vm1318, %v3117, %v3101
      %v3136 = vsel %vm1318, %v3119, %v3103
      %v3137 = vsel %vm1318, %v3121, %v3105
      %v3138 = vmul.f32 %v3122, %v1188
      %v3139 = vmul.f32 %v3130, %v1189
      %v3140 = vmul.f32 %v3123, %v1188
      %v3141 = vmul.f32 %v3131, %v1189
      %v3142 = vmul.f32 %v3124, %v1188
      %v3143 = vmul.f32 %v3132, %v1189
      %v3144 = vmul.f32 %v3125, %v1188
      %v3145 = vmul.f32 %v3133, %v1189
      %v3146 = vmul.f32 %v3126, %v1188
      %v3147 = vmul.f32 %v3134, %v1189
      %v3148 = vmul.f32 %v3127, %v1188
      %v3149 = vmul.f32 %v3135, %v1189
      %v3150 = vmul.f32 %v3128, %v1188
      %v3151 = vmul.f32 %v3136, %v1189
      %v3152 = vmul.f32 %v3129, %v1188
      %v3153 = vmul.f32 %v3137, %v1189
      %v3154 = vpack.c.bf16 %v3140, %v3138
      %v3155 = vpack.c.bf16 %v3141, %v3139
      %v3156 = vpack.c.bf16 %v3144, %v3142
      %v3157 = vpack.c.bf16 %v3145, %v3143
      %v3158 = vpack.c.bf16 %v3148, %v3146
      %v3159 = vpack.c.bf16 %v3149, %v3147
      %v3160 = vpack.c.bf16 %v3152, %v3150
      %v3161 = vpack.c.bf16 %v3153, %v3151
      %3162 = vst [vmem:[#allocation3 + $0x140] sm:$0xff] %v3154
      %3163 = vst [vmem:[#allocation3 + $0x148] sm:$0xff] %v3155
      %3164 = vst [vmem:[#allocation3 + $0x150] sm:$0xff] %v3156
      %3165 = vst [vmem:[#allocation3 + $0x158] sm:$0xff] %v3157
      %3166 = vst [vmem:[#allocation3 + $0x160] sm:$0xff] %v3158
      %3167 = vst [vmem:[#allocation3 + $0x168] sm:$0xff] %v3159
      %3168 = vst [vmem:[#allocation3 + $0x170] sm:$0xff] %v3160
      %3169 = vst [vmem:[#allocation3 + $0x178] sm:$0xff] %v3161
      %3170 = vrot.lane.b32.xlu0 %v2738, 113
      %v3171 = vpop.permute.xlu0 %3170
      %3172 = vrot.lane.b32.xlu0 %v2740, 113
      %v3173 = vpop.permute.xlu0 %3172
      %3174 = vrot.lane.b32.xlu0 %v2742, 113
      %v3175 = vpop.permute.xlu0 %3174
      %3176 = vrot.lane.b32.xlu0 %v2744, 113
      %v3177 = vpop.permute.xlu0 %3176
      %3178 = vrot.lane.b32.xlu0 %v2746, 113
      %v3179 = vpop.permute.xlu0 %3178
      %3180 = vrot.lane.b32.xlu0 %v2748, 113
      %v3181 = vpop.permute.xlu0 %3180
      %3182 = vrot.lane.b32.xlu0 %v2750, 113
      %v3183 = vpop.permute.xlu0 %3182
      %3184 = vrot.lane.b32.xlu0 %v2752, 113
      %v3185 = vpop.permute.xlu0 %3184
      %3186 = vrot.lane.b32.xlu0 %v2739, 113
      %v3187 = vpop.permute.xlu0 %3186
      %3188 = vrot.lane.b32.xlu0 %v2741, 113
      %v3189 = vpop.permute.xlu0 %3188
      %3190 = vrot.lane.b32.xlu0 %v2743, 113
      %v3191 = vpop.permute.xlu0 %3190
      %3192 = vrot.lane.b32.xlu0 %v2745, 113
      %v3193 = vpop.permute.xlu0 %3192
      %3194 = vrot.lane.b32.xlu0 %v2747, 113
      %v3195 = vpop.permute.xlu0 %3194
      %3196 = vrot.lane.b32.xlu0 %v2749, 113
      %v3197 = vpop.permute.xlu0 %3196
      %3198 = vrot.lane.b32.xlu0 %v2751, 113
      %v3199 = vpop.permute.xlu0 %3198
      %3200 = vrot.lane.b32.xlu0 %v2753, 113
      %v3201 = vpop.permute.xlu0 %3200
      %v3202 = vsel %vm1339, %v3171, %v3187
      %v3203 = vsel %vm1339, %v3173, %v3189
      %v3204 = vsel %vm1339, %v3175, %v3191
      %v3205 = vsel %vm1339, %v3177, %v3193
      %v3206 = vsel %vm1339, %v3179, %v3195
      %v3207 = vsel %vm1339, %v3181, %v3197
      %v3208 = vsel %vm1339, %v3183, %v3199
      %v3209 = vsel %vm1339, %v3185, %v3201
      %v3210 = vsel %vm1339, %v3187, %v3171
      %v3211 = vsel %vm1339, %v3189, %v3173
      %v3212 = vsel %vm1339, %v3191, %v3175
      %v3213 = vsel %vm1339, %v3193, %v3177
      %v3214 = vsel %vm1339, %v3195, %v3179
      %v3215 = vsel %vm1339, %v3197, %v3181
      %v3216 = vsel %vm1339, %v3199, %v3183
      %v3217 = vsel %vm1339, %v3201, %v3185
      %v3218 = vmul.f32 %v3202, %v1204
      %v3219 = vmul.f32 %v3210, %v1205
      %v3220 = vmul.f32 %v3203, %v1204
      %v3221 = vmul.f32 %v3211, %v1205
      %v3222 = vmul.f32 %v3204, %v1204
      %v3223 = vmul.f32 %v3212, %v1205
      %v3224 = vmul.f32 %v3205, %v1204
      %v3225 = vmul.f32 %v3213, %v1205
      %v3226 = vmul.f32 %v3206, %v1204
      %v3227 = vmul.f32 %v3214, %v1205
      %v3228 = vmul.f32 %v3207, %v1204
      %v3229 = vmul.f32 %v3215, %v1205
      %v3230 = vmul.f32 %v3208, %v1204
      %v3231 = vmul.f32 %v3216, %v1205
      %v3232 = vmul.f32 %v3209, %v1204
      %v3233 = vmul.f32 %v3217, %v1205
      %v3234 = vpack.c.bf16 %v3220, %v3218
      %v3235 = vpack.c.bf16 %v3221, %v3219
      %v3236 = vpack.c.bf16 %v3224, %v3222
      %v3237 = vpack.c.bf16 %v3225, %v3223
      %v3238 = vpack.c.bf16 %v3228, %v3226
      %v3239 = vpack.c.bf16 %v3229, %v3227
      %v3240 = vpack.c.bf16 %v3232, %v3230
      %v3241 = vpack.c.bf16 %v3233, %v3231
      %3242 = vst [vmem:[#allocation3 + $0x180] sm:$0xff] %v3234
      %3243 = vst [vmem:[#allocation3 + $0x188] sm:$0xff] %v3235
      %3244 = vst [vmem:[#allocation3 + $0x190] sm:$0xff] %v3236
      %3245 = vst [vmem:[#allocation3 + $0x198] sm:$0xff] %v3237
      %3246 = vst [vmem:[#allocation3 + $0x1a0] sm:$0xff] %v3238
      %3247 = vst [vmem:[#allocation3 + $0x1a8] sm:$0xff] %v3239
      %3248 = vst [vmem:[#allocation3 + $0x1b0] sm:$0xff] %v3240
      %3249 = vst [vmem:[#allocation3 + $0x1b8] sm:$0xff] %v3241
      %3250 = vrot.lane.b32.xlu0 %v2738, 112
      %v3251 = vpop.permute.xlu0 %3250
      %3252 = vrot.lane.b32.xlu0 %v2740, 112
      %v3253 = vpop.permute.xlu0 %3252
      %3254 = vrot.lane.b32.xlu0 %v2742, 112
      %v3255 = vpop.permute.xlu0 %3254
      %3256 = vrot.lane.b32.xlu0 %v2744, 112
      %v3257 = vpop.permute.xlu0 %3256
      %3258 = vrot.lane.b32.xlu0 %v2746, 112
      %v3259 = vpop.permute.xlu0 %3258
      %3260 = vrot.lane.b32.xlu0 %v2748, 112
      %v3261 = vpop.permute.xlu0 %3260
      %3262 = vrot.lane.b32.xlu0 %v2750, 112
      %v3263 = vpop.permute.xlu0 %3262
      %3264 = vrot.lane.b32.xlu0 %v2752, 112
      %v3265 = vpop.permute.xlu0 %3264
      %3266 = vrot.lane.b32.xlu0 %v2739, 112
      %v3267 = vpop.permute.xlu0 %3266
      %3268 = vrot.lane.b32.xlu0 %v2741, 112
      %v3269 = vpop.permute.xlu0 %3268
      %3270 = vrot.lane.b32.xlu0 %v2743, 112
      %v3271 = vpop.permute.xlu0 %3270
      %3272 = vrot.lane.b32.xlu0 %v2745, 112
      %v3273 = vpop.permute.xlu0 %3272
      %3274 = vrot.lane.b32.xlu0 %v2747, 112
      %v3275 = vpop.permute.xlu0 %3274
      %3276 = vrot.lane.b32.xlu0 %v2749, 112
      %v3277 = vpop.permute.xlu0 %3276
      %3278 = vrot.lane.b32.xlu0 %v2751, 112
      %v3279 = vpop.permute.xlu0 %3278
      %3280 = vrot.lane.b32.xlu0 %v2753, 112
      %v3281 = vpop.permute.xlu0 %3280
      %v3282 = vsel %vm1360, %v3251, %v3267
      %v3283 = vsel %vm1360, %v3253, %v3269
      %v3284 = vsel %vm1360, %v3255, %v3271
      %v3285 = vsel %vm1360, %v3257, %v3273
      %v3286 = vsel %vm1360, %v3259, %v3275
      %v3287 = vsel %vm1360, %v3261, %v3277
      %v3288 = vsel %vm1360, %v3263, %v3279
      %v3289 = vsel %vm1360, %v3265, %v3281
      %v3290 = vsel %vm1360, %v3267, %v3251
      %v3291 = vsel %vm1360, %v3269, %v3253
      %v3292 = vsel %vm1360, %v3271, %v3255
      %v3293 = vsel %vm1360, %v3273, %v3257
      %v3294 = vsel %vm1360, %v3275, %v3259
      %v3295 = vsel %vm1360, %v3277, %v3261
      %v3296 = vsel %vm1360, %v3279, %v3263
      %v3297 = vsel %vm1360, %v3281, %v3265
      %v3298 = vmul.f32 %v3282, %v1212
      %v3299 = vmul.f32 %v3290, %v1213
      %v3300 = vmul.f32 %v3283, %v1212
      %v3301 = vmul.f32 %v3291, %v1213
      %v3302 = vmul.f32 %v3284, %v1212
      %v3303 = vmul.f32 %v3292, %v1213
      %v3304 = vmul.f32 %v3285, %v1212
      %v3305 = vmul.f32 %v3293, %v1213
      %v3306 = vmul.f32 %v3286, %v1212
      %v3307 = vmul.f32 %v3294, %v1213
      %v3308 = vmul.f32 %v3287, %v1212
      %v3309 = vmul.f32 %v3295, %v1213
      %v3310 = vmul.f32 %v3288, %v1212
      %v3311 = vmul.f32 %v3296, %v1213
      %v3312 = vmul.f32 %v3289, %v1212
      %v3313 = vmul.f32 %v3297, %v1213
      %v3314 = vpack.c.bf16 %v3300, %v3298
      %v3315 = vpack.c.bf16 %v3301, %v3299
      %v3316 = vpack.c.bf16 %v3304, %v3302
      %v3317 = vpack.c.bf16 %v3305, %v3303
      %v3318 = vpack.c.bf16 %v3308, %v3306
      %v3319 = vpack.c.bf16 %v3309, %v3307
      %v3320 = vpack.c.bf16 %v3312, %v3310
      %v3321 = vpack.c.bf16 %v3313, %v3311
      %3322 = vst [vmem:[#allocation3 + $0x1c0] sm:$0xff] %v3314
      %3323 = vst [vmem:[#allocation3 + $0x1c8] sm:$0xff] %v3315
      %3324 = vst [vmem:[#allocation3 + $0x1d0] sm:$0xff] %v3316
      %3325 = vst [vmem:[#allocation3 + $0x1d8] sm:$0xff] %v3317
      %3326 = vst [vmem:[#allocation3 + $0x1e0] sm:$0xff] %v3318
      %3327 = vst [vmem:[#allocation3 + $0x1e8] sm:$0xff] %v3319
      %3328 = vst [vmem:[#allocation3 + $0x1f0] sm:$0xff] %v3320
      %3329 = vst [vmem:[#allocation3 + $0x1f8] sm:$0xff] %v3321
      %3330 = vrot.lane.b32.xlu0 %v2738, 111
      %v3331 = vpop.permute.xlu0 %3330
      %3332 = vrot.lane.b32.xlu0 %v2740, 111
      %v3333 = vpop.permute.xlu0 %3332
      %3334 = vrot.lane.b32.xlu0 %v2742, 111
      %v3335 = vpop.permute.xlu0 %3334
      %3336 = vrot.lane.b32.xlu0 %v2744, 111
      %v3337 = vpop.permute.xlu0 %3336
      %3338 = vrot.lane.b32.xlu0 %v2746, 111
      %v3339 = vpop.permute.xlu0 %3338
      %3340 = vrot.lane.b32.xlu0 %v2748, 111
      %v3341 = vpop.permute.xlu0 %3340
      %3342 = vrot.lane.b32.xlu0 %v2750, 111
      %v3343 = vpop.permute.xlu0 %3342
      %3344 = vrot.lane.b32.xlu0 %v2752, 111
      %v3345 = vpop.permute.xlu0 %3344
      %3346 = vrot.lane.b32.xlu0 %v2739, 111
      %v3347 = vpop.permute.xlu0 %3346
      %3348 = vrot.lane.b32.xlu0 %v2741, 111
      %v3349 = vpop.permute.xlu0 %3348
      %3350 = vrot.lane.b32.xlu0 %v2743, 111
      %v3351 = vpop.permute.xlu0 %3350
      %3352 = vrot.lane.b32.xlu0 %v2745, 111
      %v3353 = vpop.permute.xlu0 %3352
      %3354 = vrot.lane.b32.xlu0 %v2747, 111
      %v3355 = vpop.permute.xlu0 %3354
      %3356 = vrot.lane.b32.xlu0 %v2749, 111
      %v3357 = vpop.permute.xlu0 %3356
      %3358 = vrot.lane.b32.xlu0 %v2751, 111
      %v3359 = vpop.permute.xlu0 %3358
      %3360 = vrot.lane.b32.xlu0 %v2753, 111
      %v3361 = vpop.permute.xlu0 %3360
      %v3362 = vsel %vm1381, %v3331, %v3347
      %v3363 = vsel %vm1381, %v3333, %v3349
      %v3364 = vsel %vm1381, %v3335, %v3351
      %v3365 = vsel %vm1381, %v3337, %v3353
      %v3366 = vsel %vm1381, %v3339, %v3355
      %v3367 = vsel %vm1381, %v3341, %v3357
      %v3368 = vsel %vm1381, %v3343, %v3359
      %v3369 = vsel %vm1381, %v3345, %v3361
      %v3370 = vsel %vm1381, %v3347, %v3331
      %v3371 = vsel %vm1381, %v3349, %v3333
      %v3372 = vsel %vm1381, %v3351, %v3335
      %v3373 = vsel %vm1381, %v3353, %v3337
      %v3374 = vsel %vm1381, %v3355, %v3339
      %v3375 = vsel %vm1381, %v3357, %v3341
      %v3376 = vsel %vm1381, %v3359, %v3343
      %v3377 = vsel %vm1381, %v3361, %v3345
      %v3378 = vmul.f32 %v3362, %v1220
      %v3379 = vmul.f32 %v3370, %v1221
      %v3380 = vmul.f32 %v3363, %v1220
      %v3381 = vmul.f32 %v3371, %v1221
      %v3382 = vmul.f32 %v3364, %v1220
      %v3383 = vmul.f32 %v3372, %v1221
      %v3384 = vmul.f32 %v3365, %v1220
      %v3385 = vmul.f32 %v3373, %v1221
      %v3386 = vmul.f32 %v3366, %v1220
      %v3387 = vmul.f32 %v3374, %v1221
      %v3388 = vmul.f32 %v3367, %v1220
      %v3389 = vmul.f32 %v3375, %v1221
      %v3390 = vmul.f32 %v3368, %v1220
      %v3391 = vmul.f32 %v3376, %v1221
      %v3392 = vmul.f32 %v3369, %v1220
      %v3393 = vmul.f32 %v3377, %v1221
      %v3394 = vpack.c.bf16 %v3380, %v3378
      %v3395 = vpack.c.bf16 %v3381, %v3379
      %v3396 = vpack.c.bf16 %v3384, %v3382
      %v3397 = vpack.c.bf16 %v3385, %v3383
      %v3398 = vpack.c.bf16 %v3388, %v3386
      %v3399 = vpack.c.bf16 %v3389, %v3387
      %v3400 = vpack.c.bf16 %v3392, %v3390
      %v3401 = vpack.c.bf16 %v3393, %v3391
      %3402 = vst [vmem:[#allocation3 + $0x200] sm:$0xff] %v3394
      %3403 = vst [vmem:[#allocation3 + $0x208] sm:$0xff] %v3395
      %3404 = vst [vmem:[#allocation3 + $0x210] sm:$0xff] %v3396
      %3405 = vst [vmem:[#allocation3 + $0x218] sm:$0xff] %v3397
      %3406 = vst [vmem:[#allocation3 + $0x220] sm:$0xff] %v3398
      %3407 = vst [vmem:[#allocation3 + $0x228] sm:$0xff] %v3399
      %3408 = vst [vmem:[#allocation3 + $0x230] sm:$0xff] %v3400
      %3409 = vst [vmem:[#allocation3 + $0x238] sm:$0xff] %v3401
      %v3410 = vld [vmem:[%s11] sm:$0xff]
      %v3411 = vld [vmem:[%s11 + $0x8] sm:$0x3]
      %v3412 = vld [vmem:[#allocation3] sm:$0xff]
      %v3413 = vld [vmem:[#allocation3 + $0x8] sm:$0xff]
      %v3414 = vld [vmem:[#allocation3 + $0x10] sm:$0xff]
      %v3415 = vld [vmem:[#allocation3 + $0x18] sm:$0xff]
      %v3416 = vld [vmem:[#allocation3 + $0x20] sm:$0xff]
      %v3417 = vld [vmem:[#allocation3 + $0x28] sm:$0xff]
      %v3418 = vld [vmem:[#allocation3 + $0x30] sm:$0xff]
      %v3419 = vld [vmem:[#allocation3 + $0x38] sm:$0xff]
      %v3420 = vld [vmem:[#allocation3 + $0x40] sm:$0xff]
      %v3421 = vld [vmem:[#allocation3 + $0x48] sm:$0xff]
      %v3422 = vld [vmem:[#allocation3 + $0x50] sm:$0xff]
      %v3423 = vld [vmem:[#allocation3 + $0x58] sm:$0xff]
      %v3424 = vld [vmem:[#allocation3 + $0x60] sm:$0xff]
      %v3425 = vld [vmem:[#allocation3 + $0x68] sm:$0xff]
      %v3426 = vld [vmem:[#allocation3 + $0x70] sm:$0xff]
      %v3427 = vld [vmem:[#allocation3 + $0x78] sm:$0xff]
      %v3428 = vld [vmem:[#allocation3 + $0x80] sm:$0xff]
      %v3429 = vld [vmem:[#allocation3 + $0x88] sm:$0xff]
      %v3430 = vld [vmem:[#allocation3 + $0x90] sm:$0xff]
      %v3431 = vld [vmem:[#allocation3 + $0x98] sm:$0xff]
      %v3432 = vld [vmem:[#allocation3 + $0xa0] sm:$0xff]
      %v3433 = vld [vmem:[#allocation3 + $0xa8] sm:$0xff]
      %v3434 = vld [vmem:[#allocation3 + $0xb0] sm:$0xff]
      %v3435 = vld [vmem:[#allocation3 + $0xb8] sm:$0xff]
      %v3436 = vld [vmem:[#allocation3 + $0xc0] sm:$0xff]
      %v3437 = vld [vmem:[#allocation3 + $0xc8] sm:$0xff]
      %v3438 = vld [vmem:[#allocation3 + $0xd0] sm:$0xff]
      %v3439 = vld [vmem:[#allocation3 + $0xd8] sm:$0xff]
      %v3440 = vld [vmem:[#allocation3 + $0xe0] sm:$0xff]
      %v3441 = vld [vmem:[#allocation3 + $0xe8] sm:$0xff]
      %v3442 = vld [vmem:[#allocation3 + $0xf0] sm:$0xff]
      %v3443 = vld [vmem:[#allocation3 + $0xf8] sm:$0xff]
      %v3444 = vld [vmem:[#allocation3 + $0x100] sm:$0xff]
      %v3445 = vld [vmem:[#allocation3 + $0x108] sm:$0xff]
      %v3446 = vld [vmem:[#allocation3 + $0x110] sm:$0xff]
      %v3447 = vld [vmem:[#allocation3 + $0x118] sm:$0xff]
      %v3448 = vld [vmem:[#allocation3 + $0x120] sm:$0xff]
      %v3449 = vld [vmem:[#allocation3 + $0x128] sm:$0xff]
      %v3450 = vld [vmem:[#allocation3 + $0x130] sm:$0xff]
      %v3451 = vld [vmem:[#allocation3 + $0x138] sm:$0xff]
      %v3452 = vld [vmem:[#allocation3 + $0x140] sm:$0xff]
      %v3453 = vld [vmem:[#allocation3 + $0x148] sm:$0xff]
      %v3454 = vld [vmem:[#allocation3 + $0x150] sm:$0xff]
      %v3455 = vld [vmem:[#allocation3 + $0x158] sm:$0xff]
      %v3456 = vld [vmem:[#allocation3 + $0x160] sm:$0xff]
      %v3457 = vld [vmem:[#allocation3 + $0x168] sm:$0xff]
      %v3458 = vld [vmem:[#allocation3 + $0x170] sm:$0xff]
      %v3459 = vld [vmem:[#allocation3 + $0x178] sm:$0xff]
      %v3460 = vld [vmem:[#allocation3 + $0x180] sm:$0xff]
      %v3461 = vld [vmem:[#allocation3 + $0x188] sm:$0xff]
      %v3462 = vld [vmem:[#allocation3 + $0x190] sm:$0xff]
      %v3463 = vld [vmem:[#allocation3 + $0x198] sm:$0xff]
      %v3464 = vld [vmem:[#allocation3 + $0x1a0] sm:$0xff]
      %v3465 = vld [vmem:[#allocation3 + $0x1a8] sm:$0xff]
      %v3466 = vld [vmem:[#allocation3 + $0x1b0] sm:$0xff]
      %v3467 = vld [vmem:[#allocation3 + $0x1b8] sm:$0xff]
      %v3468 = vld [vmem:[#allocation3 + $0x1c0] sm:$0xff]
      %v3469 = vld [vmem:[#allocation3 + $0x1c8] sm:$0xff]
      %v3470 = vld [vmem:[#allocation3 + $0x1d0] sm:$0xff]
      %v3471 = vld [vmem:[#allocation3 + $0x1d8] sm:$0xff]
      %v3472 = vld [vmem:[#allocation3 + $0x1e0] sm:$0xff]
      %v3473 = vld [vmem:[#allocation3 + $0x1e8] sm:$0xff]
      %v3474 = vld [vmem:[#allocation3 + $0x1f0] sm:$0xff]
      %v3475 = vld [vmem:[#allocation3 + $0x1f8] sm:$0xff]
      %v3476 = vld [vmem:[#allocation3 + $0x200] sm:$0xff]
      %v3477 = vld [vmem:[#allocation3 + $0x208] sm:$0xff]
      %v3478 = vld [vmem:[#allocation3 + $0x210] sm:$0xff]
      %v3479 = vld [vmem:[#allocation3 + $0x218] sm:$0xff]
      %v3480 = vld [vmem:[#allocation3 + $0x220] sm:$0xff]
      %v3481 = vld [vmem:[#allocation3 + $0x228] sm:$0xff]
      %v3482 = vld [vmem:[#allocation3 + $0x230] sm:$0xff]
      %v3483 = vld [vmem:[#allocation3 + $0x238] sm:$0xff]
      %v3484 = vld [vmem:[%s12] sm:$0x7]
      %3486 = vset.pattern.permute.xlu0 0
      %3487 = vperm.xlu0 %3486, %v3484
      %v3488 = vpop.permute.xlu0 %3487
      %v3492 = vcombine.high %v3410, %v3410
      %v3494 = vunpack.c.l.s4 1983009808
      %v3495 = vunpack.c.0.s8 %v3494
      %v3496 = vlaneseq
      %v3497 = vshrl.u32 %v3496, 7
      %v3498 = vsub.s32 %v3495, %v3497
      %v3499 = vrot.slane %v3410, %v3498
      %v3501 = vunpack.c.l.s4 1983009808
      %v3502 = vunpack.c.0.s8 %v3501
      %v3503 = vlaneseq
      %v3504 = vshrl.u32 %v3503, 7
      %v3505 = vsub.s32 %v3502, %v3504
      %v3506 = vrot.slane %v3492, %v3505
      %v3507 = vcombine.high %v3499, %v3499
      %v3508 = vcombine.high %v3506, %v3506
      %v3510 = vunpack.c.l.s4 1983009808
      %v3511 = vunpack.c.0.s8 %v3510
      %v3512 = vlaneseq
      %v3513 = vshrl.u32 %v3512, 7
      %v3514 = vsub.s32 %v3511, %v3513
      %v3515 = vrot.slane %v3411, %v3514
      %v3521 = vsel %vm2506, %v3515, 0
      %3523 = vmatprep.subr.bf16.mxu0 %v3413
      %3524 = vmatpush1.bf16.msra.mxu0 %v3412
      %3525 = vmatprep.subr.bf16.mxu0 %v3415
      %3526 = vmatpush1.bf16.msra.mxu0 %v3414
      %3527 = vmatprep.subr.bf16.mxu0 %v3417
      %3528 = vmatpush1.bf16.msra.mxu0 %v3416
      %3529 = vmatprep.subr.bf16.mxu0 %v3419
      %3530 = vmatpush1.bf16.msra.mxu0 %v3418
      %3531 = vmatprep.subr.bf16.mxu0 %v3421
      %3532 = vmatpush1.bf16.msra.mxu0 %v3420
      %3533 = vmatprep.subr.bf16.mxu0 %v3423
      %3534 = vmatpush1.bf16.msra.mxu0 %v3422
      %3535 = vmatprep.subr.bf16.mxu0 %v3425
      %3536 = vmatpush1.bf16.msra.mxu0 %v3424
      %3537 = vmatprep.subr.bf16.mxu0 %v3427
      %3538 = vmatpush1.bf16.msra.mxu0 %v3426
      %3539 = vmatprep.subr.bf16.mxu0 %v3429
      %3540 = vmatpush1.bf16.msra.mxu0 %v3428
      %3541 = vmatprep.subr.bf16.mxu0 %v3431
      %3542 = vmatpush1.bf16.msra.mxu0 %v3430
      %3543 = vmatprep.subr.bf16.mxu0 %v3433
      %3544 = vmatpush1.bf16.msra.mxu0 %v3432
      %3545 = vmatprep.subr.bf16.mxu0 %v3435
      %3546 = vmatpush1.bf16.msra.mxu0 %v3434
      %3547 = vmatprep.subr.bf16.mxu0 %v3437
      %3548 = vmatpush1.bf16.msra.mxu0 %v3436
      %3549 = vmatprep.subr.bf16.mxu0 %v3439
      %3550 = vmatpush1.bf16.msra.mxu0 %v3438
      %3551 = vmatprep.subr.bf16.mxu0 %v3441
      %3552 = vmatpush1.bf16.msra.mxu0 %v3440
      %3553 = vmatprep.subr.bf16.mxu0 %v3443
      %3554 = vmatpush1.bf16.msra.mxu0 %v3442
      %3555 = vmatprep.mubr.bf16.mxu0 %v3507
      %3556 = vmatmul.mubr.bf16.gmra.mrb[0].mxu0 %v3499
      %v3557 = vpop.f32.mrb[0].mxu0
      %v3558 = vadd.f32 %v3488, %v3557
      %v3559 = vpop.f32.mrb[0].mxu0
      %v3560 = vadd.f32 %v3488, %v3559
      %v3561 = vpop.f32.mrb[0].mxu0
      %v3562 = vpop.f32.mrb[0].mxu0
      %3563 = vdwg.mxu0
      %3564 = vmatprep.subr.bf16.mxu0 %v3445
      %3565 = vmatpush1.bf16.msra.mxu0 %v3444
      %3566 = vmatprep.subr.bf16.mxu0 %v3447
      %3567 = vmatpush1.bf16.msra.mxu0 %v3446
      %3568 = vmatprep.subr.bf16.mxu0 %v3449
      %3569 = vmatpush1.bf16.msra.mxu0 %v3448
      %3570 = vmatprep.subr.bf16.mxu0 %v3451
      %3571 = vmatpush1.bf16.msra.mxu0 %v3450
      %3572 = vmatprep.subr.bf16.mxu0 %v3453
      %3573 = vmatpush1.bf16.msra.mxu0 %v3452
      %3574 = vmatprep.subr.bf16.mxu0 %v3455
      %3575 = vmatpush1.bf16.msra.mxu0 %v3454
      %3576 = vmatprep.subr.bf16.mxu0 %v3457
      %3577 = vmatpush1.bf16.msra.mxu0 %v3456
      %3578 = vmatprep.subr.bf16.mxu0 %v3459
      %3579 = vmatpush1.bf16.msra.mxu0 %v3458
      %3580 = vmatprep.subr.bf16.mxu0 %v3461
      %3581 = vmatpush1.bf16.msra.mxu0 %v3460
      %3582 = vmatprep.subr.bf16.mxu0 %v3463
      %3583 = vmatpush1.bf16.msra.mxu0 %v3462
      %3584 = vmatprep.subr.bf16.mxu0 %v3465
      %3585 = vmatpush1.bf16.msra.mxu0 %v3464
      %3586 = vmatprep.subr.bf16.mxu0 %v3467
      %3587 = vmatpush1.bf16.msra.mxu0 %v3466
      %3588 = vmatprep.subr.bf16.mxu0 %v3469
      %3589 = vmatpush1.bf16.msra.mxu0 %v3468
      %3590 = vmatprep.subr.bf16.mxu0 %v3471
      %3591 = vmatpush1.bf16.msra.mxu0 %v3470
      %3592 = vmatprep.subr.bf16.mxu0 %v3473
      %3593 = vmatpush1.bf16.msra.mxu0 %v3472
      %3594 = vmatprep.subr.bf16.mxu0 %v3475
      %3595 = vmatpush1.bf16.msra.mxu0 %v3474
      %3596 = vmatprep.mubr.bf16.mxu0 %v3508
      %3597 = vmatmul.mubr.bf16.gmra.mrb[0].mxu0 %v3506
      %v3598 = vpop.f32.mrb[0].mxu0
      %v3599 = vadd.f32 %v3558, %v3598
      %v3600 = vpop.f32.mrb[0].mxu0
      %v3601 = vadd.f32 %v3560, %v3600
      %v3602 = vpop.f32.mrb[0].mxu0
      %v3603 = vpop.f32.mrb[0].mxu0
      %3604 = vdwg.mxu0
      %3605 = vmatprep.subr.bf16.mxu0 %v3477
      %3606 = vmatpush1.bf16.msra.mxu0 %v3476
      %3607 = vmatprep.subr.bf16.mxu0 %v3479
      %3608 = vmatpush1.bf16.msra.mxu0 %v3478
      %3609 = vmatprep.subr.bf16.mxu0 %v3481
      %3610 = vmatpush1.bf16.msra.mxu0 %v3480
      %3611 = vmatprep.subr.bf16.mxu0 %v3483
      %3612 = vmatpush1.bf16.msra.mxu0 %v3482
      %3613 = vmatprep.subr.bf16.mxu0 0
      %3614 = vmatpush1.bf16.msra.mxu0 0
      %3615 = vmatprep.subr.bf16.mxu0 0
      %3616 = vmatpush1.bf16.msra.mxu0 0
      %3617 = vmatprep.subr.bf16.mxu0 0
      %3618 = vmatpush1.bf16.msra.mxu0 0
      %3619 = vmatprep.subr.bf16.mxu0 0
      %3620 = vmatpush1.bf16.msra.mxu0 0
      %3621 = vmatprep.subr.bf16.mxu0 0
      %3622 = vmatpush1.bf16.msra.mxu0 0
      %3623 = vmatprep.subr.bf16.mxu0 0
      %3624 = vmatpush1.bf16.msra.mxu0 0
      %3625 = vmatprep.subr.bf16.mxu0 0
      %3626 = vmatpush1.bf16.msra.mxu0 0
      %3627 = vmatprep.subr.bf16.mxu0 0
      %3628 = vmatpush1.bf16.msra.mxu0 0
      %3629 = vmatprep.subr.bf16.mxu0 0
      %3630 = vmatpush1.bf16.msra.mxu0 0
      %3631 = vmatprep.subr.bf16.mxu0 0
      %3632 = vmatpush1.bf16.msra.mxu0 0
      %3633 = vmatprep.subr.bf16.mxu0 0
      %3634 = vmatpush1.bf16.msra.mxu0 0
      %3635 = vmatprep.subr.bf16.mxu0 0
      %3636 = vmatpush1.bf16.msra.mxu0 0
      %3637 = vmatprep.mubr.bf16.mxu0 0
      %3638 = vmatmul.mubr.bf16.gmra.mrb[0].mxu0 %v3521
      %v3639 = vpop.f32.mrb[0].mxu0
      %v3640 = vadd.f32 %v3599, %v3639
      %v3641 = vpop.f32.mrb[0].mxu0
      %v3642 = vadd.f32 %v3601, %v3641
      %v3643 = vpop.f32.mrb[0].mxu0
      %v3644 = vpop.f32.mrb[0].mxu0
      %3645 = vdwg.mxu0
      %v3646 = vtanh.pop %v3640
      %v3647 = vtanh.pop %v3642
      %v3650 = vcombine.low %v3646, %v3647
      %3652 = vst [vmem:[%s534] sm:$0x77] %v3650
      %p3653 = scmp.lt.s32.totalorder %s26, 1
      %s3654 = scalar_select %p3653, %s26, 1
      %s3655 = smul.addr %s3654, 4
      %s3656 = smul.addr %s3655, 8
      %s3657 = scalar_lea.vmem %s13, %s3656
      %p3658 = scmp.lt.s32.totalorder %s26, 1
      %s3659 = scalar_select %p3658, %s26, 1
      %s3660 = smul.addr %s3659, 2
      %s3661 = smul.addr %s3660, 4
      %s3662 = scalar_lea.vmem %s14, %s3661
      // Predicated region
      $region73: #{lp_generator_forward.1} parent=71 // pred_check
        %p3663 = pneg %p337
      $region74: #{lp_generator_forward.1} parent=71 // pred_check_branch
        %3665 = sbr.rel (%p3663) target = $region76
      $region75: #{lp_generator_forward.1} parent=71 // pred_region
        _
      $region76: #{lp_generator_forward.1} parent=71 // pred_fallthru
        _
      // Predicated region
      $region77: #{lp_generator_forward.1} parent=71 // pred_check
        %p3666 = pneg %p363
      $region78: #{lp_generator_forward.1} parent=71 // pred_check_branch
        %3668 = sbr.rel (%p3666) target = $region80
      $region79: #{lp_generator_forward.1} parent=71 // pred_region
        _
      $region80: #{lp_generator_forward.1} parent=71 // pred_fallthru
        _
    $region72: #{lp_generator_forward.1} parent=5 // pred_fallthru
      _
    %p3669 = scmp.le.s32.totalorder 2, %s21
    // Predicated region
    $region81: #{lp_generator_forward.1} parent=5 // pred_check
      %p3670 = pneg %p3669
    $region82: #{lp_generator_forward.1} parent=5 // pred_check_branch
      %3672 = sbr.rel (%p3670) target = $region84
    $region83: #{lp_generator_forward.1} parent=5 // pred_region
      %s3673 = ssub.s32 %s21, 2
      // Predicated region
      $region85: #{lp_generator_forward.1} parent=83 // pred_check
        %p3674 = pneg %p343
      $region86: #{lp_generator_forward.1} parent=83 // pred_check_branch
        %3676 = sbr.rel (%p3674) target = $region88
      $region87: #{lp_generator_forward.1} parent=83 // pred_region
        %p3677 = scmp.lt.s32.totalorder %s27, 1
        %s3678 = scalar_select %p3677, %s27, 1
        %s3679 = smul.addr %s3678, 4
        %s3680 = smul.addr %s3679, 8
        %s3681 = scalar_lea.vmem %s13, %s3680
      $region88: #{lp_generator_forward.1} parent=83 // pred_fallthru
        _
      // Predicated region
      $region89: #{lp_generator_forward.1} parent=83 // pred_check
        %p3682 = pneg %p369
      $region90: #{lp_generator_forward.1} parent=83 // pred_check_branch
        %3684 = sbr.rel (%p3682) target = $region92
      $region91: #{lp_generator_forward.1} parent=83 // pred_region
        %p3685 = scmp.lt.s32.totalorder %s27, 1
        %s3686 = scalar_select %p3685, %s27, 1
        %s3687 = smul.addr %s3686, 2
        %s3688 = smul.addr %s3687, 4
        %s3689 = scalar_lea.vmem %s14, %s3688
      $region92: #{lp_generator_forward.1} parent=83 // pred_fallthru
        _
    $region84: #{lp_generator_forward.1} parent=5 // pred_fallthru
      _
  $region6: #{lp_generator_forward.1} parent=0 // loop_footer
    %s25 = sadd.s32 1, %s21
  $region7: #{lp_generator_forward.1} parent=0 // loop_footer_branch
    %20 = sbr.rel target = $region3
  $region8: #{lp_generator_forward.1} parent=0 // loop_exit
    _

</llo_original>
